<compile_context>
chip_gen: v7x
topology: tpu7x:2x2x1
jax: 0.10.0
libtpu: 0.0.40
codegen_flags: <defaults>
</compile_context>

<pallas_src>
import functools

import jax
import jax.numpy as jnp
from jax.experimental import pallas as pl
from jax.experimental.pallas import tpu as pltpu


# ----------------------------------------------------------------------------
# Pallas kernel: one image per grid step, fully processed in VMEM.
# ----------------------------------------------------------------------------
def _cbam_kernel(x_ref, w1_ref, s1_ref, b1_ref, w2_ref, s2_ref, b2_ref,
                 wf1t_ref, wf2_ref, wsa_ref, o_ref,
                 pad_ref, col_ref, sa_ref,
                 *, H, W, C2, C1P, CHP, C2P, K_SA, ADD):
    f32 = jnp.float32
    bf16 = jnp.bfloat16
    HW = H * W

    # ---------------- cv1: 1x1 conv (per-pixel matmul) + folded BN + SiLU ----
    xf = x_ref[0].reshape(HW, C1P)                          # bf16 (HW, C1P)
    h = jnp.dot(xf, w1_ref[...], preferred_element_type=f32)
    h = h * s1_ref[...] + b1_ref[...]
    h = h * jax.nn.sigmoid(h)                               # SiLU, f32 (HW, CHP)

    # ---------------- cv2: 3x3 conv (pad 1) via im2col + one MXU matmul ------
    # Zero only the 1-pixel halo strips (cheap; kept per-step for multi-core
    # correctness, see header note), then write the interior once.
    pad_ref[0:1, :, :] = jnp.zeros((1, W + 2, CHP), f32)
    pad_ref[H + 1:H + 2, :, :] = jnp.zeros((1, W + 2, CHP), f32)
    pad_ref[:, 0:1, :] = jnp.zeros((H + 2, 1, CHP), f32)
    pad_ref[:, W + 1:W + 2, :] = jnp.zeros((H + 2, 1, CHP), f32)
    pad_ref[1:1 + H, 1:1 + W, :] = h.reshape(H, W, CHP)

    # Stage the nine shifted taps into the (HW, 9*CHP) bf16 im2col buffer
    # (one lane-aligned 128-wide column-block write per tap) ...
    for dy in range(3):
        for dx in range(3):
            t = dy * 3 + dx
            tap = pad_ref[dy:dy + H, dx:dx + W, :]          # (H, W, CHP) f32
            col_ref[:, t * CHP:(t + 1) * CHP] = tap.reshape(HW, CHP).astype(bf16)

    # ... and contract everything in a single K = 9*CHP bf16 MXU matmul.
    x2 = jnp.dot(col_ref[...], w2_ref[...], preferred_element_type=f32)
    x2 = x2 * s2_ref[...] + b2_ref[...]
    x2 = x2 * jax.nn.sigmoid(x2)                            # SiLU, f32 (HW, C2P)

    # ---------------- channel attention --------------------------------------
    avg_c = jnp.mean(x2, axis=0, keepdims=True)             # (1, C2P)
    max_c = jnp.max(x2, axis=0, keepdims=True)              # (1, C2P)

    def mlp(v):                                             # v: (1, C2P) f32
        hm = jnp.dot(v, wf1t_ref[...], preferred_element_type=f32)
        hm = jnp.maximum(hm, 0.0)                           # ReLU  (1, HIDP)
        return jnp.dot(hm, wf2_ref[...], preferred_element_type=f32)

    ca = jax.nn.sigmoid(mlp(avg_c) + mlp(max_c))            # (1, C2P)
    out = x2 * ca                                           # (HW, C2P)
    out3 = out.reshape(H, W, C2P)

    # ---------------- spatial attention --------------------------------------
    # Padded channels are exactly zero, so the lane-sum only needs / C2.
    avg_s = jnp.sum(out3, axis=-1) * (1.0 / C2)             # (H, W)
    if C2 < C2P:
        lane = jax.lax.broadcasted_iota(jnp.int32, out3.shape, 2)
        max_s = jnp.max(jnp.where(lane < C2, out3, -jnp.inf), axis=-1)
    else:
        max_s = jnp.max(out3, axis=-1)                      # (H, W)

    P = K_SA // 2
    HP, WP = H + 2 * P, W + 2 * P
    sa_ref[:, 0:P, :] = jnp.zeros((2, P, WP), f32)
    sa_ref[:, H + P:HP, :] = jnp.zeros((2, P, WP), f32)
    sa_ref[:, :, 0:P] = jnp.zeros((2, HP, P), f32)
    sa_ref[:, :, W + P:WP] = jnp.zeros((2, HP, P), f32)
    sa_ref[0, P:P + H, P:P + W] = avg_s
    sa_ref[1, P:P + H, P:P + W] = max_s

    logit = None
    for c in range(2):                                      # 0 = mean, 1 = max
        for dy in range(K_SA):
            for dx in range(K_SA):
                wv = wsa_ref[(c * K_SA + dy) * K_SA + dx]   # SMEM scalar
                t = sa_ref[c, dy:dy + H, dx:dx + W] * wv
                logit = t if logit is None else logit + t
    sa = jax.nn.sigmoid(logit)                              # (H, W)

    out3 = out3 * sa[:, :, None]                            # (H, W, C2P)
    if ADD:
        out3 = out3 + x_ref[0].astype(f32)                  # residual (c1 == c2)
    o_ref[0] = out3.astype(o_ref.dtype)


# ----------------------------------------------------------------------------
# Wrapper (NHWC in / NHWC out; channel dims zero-padded to 128 for the kernel)
# ----------------------------------------------------------------------------
def _round_up(n, m):
    return ((n + m - 1) // m) * m


def cbam_bottleneck_pallas(x_nhwc, params, *, k_sa=3, shortcut=True):
    w1, s1, b1, w2, s2, b2, wf1, wf2, w_sa = params
    N, H, W, C1 = x_nhwc.shape
    C_ = w1.shape[1]
    C2 = w2.shape[1]
    hid = wf1.shape[0]
    add = bool(shortcut and (C1 == C2))
    P = k_sa // 2

    LANE = 128
    C1P = _round_up(C1, LANE)
    CHP = _round_up(C_, LANE)
    C2P = _round_up(C2, LANE)
    HIDP = _round_up(hid, LANE)

    f32, bf16 = jnp.float32, jnp.bfloat16

    # Zero-pad channel dims to the 128-lane tile; cast MXU operands to bf16.
    xp = jnp.pad(x_nhwc.astype(bf16), ((0, 0), (0, 0), (0, 0), (0, C1P - C1)))
    w1p = jnp.zeros((C1P, CHP), f32).at[:C1, :C_].set(w1).astype(bf16)
    s1p = jnp.zeros((1, CHP), f32).at[:, :C_].set(s1)
    b1p = jnp.zeros((1, CHP), f32).at[:, :C_].set(b1)
    w2p = (jnp.zeros((9, CHP, C2P), f32).at[:, :C_, :C2]
           .set(w2.reshape(9, C_, C2)).reshape(9 * CHP, C2P).astype(bf16))
    s2p = jnp.zeros((1, C2P), f32).at[:, :C2].set(s2)
    b2p = jnp.zeros((1, C2P), f32).at[:, :C2].set(b2)
    wf1t = jnp.zeros((C2P, HIDP), f32).at[:C2, :hid].set(wf1.T)
    wf2p = jnp.zeros((HIDP, C2P), f32).at[:hid, :C2].set(wf2)
    wsa = w_sa.reshape(2 * k_sa * k_sa).astype(f32)          # -> SMEM scalars

    kernel = functools.partial(_cbam_kernel, H=H, W=W, C2=C2, C1P=C1P,
                               CHP=CHP, C2P=C2P, K_SA=k_sa, ADD=add)

    out_p = pl.pallas_call(
        kernel,
        out_shape=jax.ShapeDtypeStruct((N, H, W, C2P), jnp.float32),
        grid_spec=pltpu.PrefetchScalarGridSpec(
            num_scalar_prefetch=0,
            grid=(N,),
            in_specs=[
                pl.BlockSpec((1, H, W, C1P), lambda n: (n, 0, 0, 0)),   # x bf16
                pl.BlockSpec((C1P, CHP), lambda n: (0, 0)),             # w1 bf16
                pl.BlockSpec((1, CHP), lambda n: (0, 0)),               # s1
                pl.BlockSpec((1, CHP), lambda n: (0, 0)),               # b1
                pl.BlockSpec((9 * CHP, C2P), lambda n: (0, 0)),         # w2 bf16
                pl.BlockSpec((1, C2P), lambda n: (0, 0)),               # s2
                pl.BlockSpec((1, C2P), lambda n: (0, 0)),               # b2
                pl.BlockSpec((C2P, HIDP), lambda n: (0, 0)),            # CA f1^T
                pl.BlockSpec((HIDP, C2P), lambda n: (0, 0)),            # CA f2
                pl.BlockSpec(memory_space=pltpu.MemorySpace.SMEM),      # SA w
            ],
            out_specs=pl.BlockSpec((1, H, W, C2P), lambda n: (n, 0, 0, 0)),
            scratch_shapes=[
                pltpu.VMEM((H + 2, W + 2, CHP), jnp.float32),           # cv2 pad
                pltpu.VMEM((H * W, 9 * CHP), jnp.bfloat16),             # im2col
                pltpu.VMEM((2, H + 2 * P, W + 2 * P), jnp.float32),     # SA pad
            ],
        ),
        compiler_params=pltpu.CompilerParams(
            dimension_semantics=("parallel",)),
    )(xp, w1p, s1p, b1p, w2p, s2p, b2p, wf1t, wf2p, wsa)

    return out_p[..., :C2]


def cbam_bottleneck_pallas_nchw(x_nchw, params, *, k_sa=3, shortcut=True):
    """PyTorch-layout adapter (NCHW in / NCHW out). Prefer the NHWC entry."""
    x = jnp.transpose(x_nchw, (0, 2, 3, 1))
    y = cbam_bottleneck_pallas(x, params, k_sa=k_sa, shortcut=shortcut)
    return jnp.transpose(y, (0, 3, 1, 2))


# ----------------------------------------------------------------------------
# Deterministic parameter construction (eval-mode BN folded into scale/bias)
# ----------------------------------------------------------------------------
def make_params(key, c1, c2, *, e=0.5, ratio=16, k_sa=3):
    c_ = int(c2 * e)
    hid = c2 // ratio
    assert hid >= 1, "channel-attention hidden width must be >= 1"
    eps = 1e-5
    ks = jax.random.split(key, 7)

    def bn_fold(k4, c):
        kg, kb, km, kv = jax.random.split(k4, 4)
        gamma = jax.random.uniform(kg, (c,), jnp.float32, 0.8, 1.2)
        beta = 0.1 * jax.random.normal(kb, (c,), jnp.float32)
        mean = 0.1 * jax.random.normal(km, (c,), jnp.float32)
        var = jax.random.uniform(kv, (c,), jnp.float32, 0.8, 1.2)
        scale = gamma / jnp.sqrt(var + eps)
        bias = beta - mean * scale
        return scale.reshape(1, c), bias.reshape(1, c)

    def bf16ify(w):  # keep matmul weights exactly bf16-representable
        return w.astype(jnp.bfloat16).astype(jnp.float32)

    w1 = bf16ify(jax.random.normal(ks[0], (c1, c_), jnp.float32) / jnp.sqrt(c1))
    s1, b1 = bn_fold(ks[1], c_)
    w2 = bf16ify(jax.random.normal(ks[2], (9 * c_, c2), jnp.float32)
                 / jnp.sqrt(9.0 * c_))
    s2, b2 = bn_fold(ks[3], c2)
    wf1 = jax.random.normal(ks[4], (hid, c2), jnp.float32) / jnp.sqrt(c2)
    wf2 = jax.random.normal(ks[5], (hid, c2), jnp.float32) / jnp.sqrt(hid)
    w_sa = (jax.random.normal(ks[6], (2, k_sa, k_sa), jnp.float32)
            / jnp.sqrt(2.0 * k_sa * k_sa))
    return (w1, s1, b1, w2, s2, b2, wf1, wf2, w_sa)


# ----------------------------------------------------------------------------
# Pure-JAX f32 reference (NHWC, correctness spot-check)
# ----------------------------------------------------------------------------
def cbam_ref(x, params, *, k_sa=3, shortcut=True):
    w1, s1, b1, w2, s2, b2, wf1, wf2, w_sa = params
    N, H, W, C1 = x.shape
    C_ = w1.shape[1]
    C2 = w2.shape[1]
    hi = jax.lax.Precision.HIGHEST

    h = jnp.einsum('nhwc,cd->nhwd', x, w1, precision=hi) * s1[0] + b1[0]
    h = h * jax.nn.sigmoid(h)

    w2_k = w2.reshape(3, 3, C_, C2)
    h_pad = jnp.pad(h, ((0, 0), (1, 1), (1, 1), (0, 0)))
    x2 = jnp.zeros((N, H, W, C2), jnp.float32)
    for dy in range(3):
        for dx in range(3):
            x2 = x2 + jnp.einsum('nhwc,cd->nhwd',
                                 h_pad[:, dy:dy + H, dx:dx + W, :],
                                 w2_k[dy, dx], precision=hi)
    x2 = x2 * s2[0] + b2[0]
    x2 = x2 * jax.nn.sigmoid(x2)

    avg = jnp.mean(x2, axis=(1, 2))
    mx = jnp.max(x2, axis=(1, 2))

    def mlp(v):
        hm = jnp.maximum(jnp.einsum('nc,jc->nj', v, wf1, precision=hi), 0.0)
        return jnp.einsum('nj,jc->nc', hm, wf2, precision=hi)

    ca = jax.nn.sigmoid(mlp(avg) + mlp(mx))
    out = x2 * ca[:, None, None, :]

    avg_s = jnp.mean(out, axis=-1)
    max_s = jnp.max(out, axis=-1)
    P = k_sa // 2
    cat = jnp.stack([avg_s, max_s], axis=-1)                 # (N,H,W,2)
    cat_p = jnp.pad(cat, ((0, 0), (P, P), (P, P), (0, 0)))
    sa = jnp.zeros((N, H, W), jnp.float32)
    for c in range(2):
        for dy in range(k_sa):
            for dx in range(k_sa):
                sa = sa + cat_p[:, dy:dy + H, dx:dx + W, c] * w_sa[c, dy, dx]
    sa = jax.nn.sigmoid(sa)
    out = out * sa[..., None]
    if shortcut and C1 == C2:
        out = out + x
    return out


if __name__ == "__main__":
    key = jax.random.PRNGKey(0)
    kx, kp = jax.random.split(key)

    # c1 == c2 so the residual shortcut is exercised; c2 >= ratio so the
    # channel-attention bottleneck (c2 // 16) is non-degenerate.
    N, C1, C2, H, W = 2, 32, 32, 16, 16

    # Input is pre-rounded to bf16 values (the kernel DMAs activations as
    # bf16), so kernel and reference see exactly the same input.
    x = jax.random.normal(kx, (N, H, W, C1), jnp.float32)
    x = x.astype(jnp.bfloat16).astype(jnp.float32)
    params = make_params(kp, C1, C2, e=0.5, ratio=16, k_sa=3)

    out = jax.block_until_ready(
        cbam_bottleneck_pallas(x, params, k_sa=3, shortcut=True))
    ref = jax.block_until_ready(cbam_ref(x, params, k_sa=3, shortcut=True))

    assert out.shape == (N, H, W, C2)
    # bf16 matmul inputs with f32 accumulation -> loosened tolerance.
    if not jnp.allclose(out, ref, rtol=2e-2, atol=2e-2):
        err = float(jnp.max(jnp.abs(out - ref)))
        raise AssertionError(f"Pallas CBAMBottleneck mismatch (max abs err {err})")
    print("KERNEL_OK")
</pallas_src>

<mosaic_0001>
module attributes {stable_mosaic.version = 11 : i64} {
  func.func @_cbam_kernel(%arg0: i32, %arg1: memref<1x16x16x128xbf16, #tpu.memory_space<vmem>>, %arg2: memref<128x128xbf16, #tpu.memory_space<vmem>>, %arg3: memref<1x128xf32, #tpu.memory_space<vmem>>, %arg4: memref<1x128xf32, #tpu.memory_space<vmem>>, %arg5: memref<1152x128xbf16, #tpu.memory_space<vmem>>, %arg6: memref<1x128xf32, #tpu.memory_space<vmem>>, %arg7: memref<1x128xf32, #tpu.memory_space<vmem>>, %arg8: memref<128x128xf32, #tpu.memory_space<vmem>>, %arg9: memref<128x128xf32, #tpu.memory_space<vmem>>, %arg10: memref<18xf32, #tpu.memory_space<smem>>, %arg11: memref<1x16x16x128xf32, #tpu.memory_space<vmem>>, %arg12: memref<18x18x128xf32, #tpu.memory_space<vmem>>, %arg13: memref<256x1152xbf16, #tpu.memory_space<vmem>>, %arg14: memref<2x18x18xf32, #tpu.memory_space<vmem>>) attributes {dimension_semantics = [#tpu.dimension_semantics<parallel>], iteration_bounds = array<i64: 2>, scalar_prefetch = 0 : i64, scratch_operands = 3 : i64, tpu.core_type = #tpu.core_type<tc>, window_params = [{transform_indices = @transform_0, window_bounds = array<i64: 1, 16, 16, 128>}, {pipeline_mode = #tpu.pipeline_mode<synchronous>, transform_indices = @transform_1, window_bounds = array<i64: 128, 128>}, {pipeline_mode = #tpu.pipeline_mode<synchronous>, transform_indices = @transform_2, window_bounds = array<i64: 1, 128>}, {pipeline_mode = #tpu.pipeline_mode<synchronous>, transform_indices = @transform_3, window_bounds = array<i64: 1, 128>}, {pipeline_mode = #tpu.pipeline_mode<synchronous>, transform_indices = @transform_4, window_bounds = array<i64: 1152, 128>}, {pipeline_mode = #tpu.pipeline_mode<synchronous>, transform_indices = @transform_5, window_bounds = array<i64: 1, 128>}, {pipeline_mode = #tpu.pipeline_mode<synchronous>, transform_indices = @transform_6, window_bounds = array<i64: 1, 128>}, {pipeline_mode = #tpu.pipeline_mode<synchronous>, transform_indices = @transform_7, window_bounds = array<i64: 128, 128>}, {pipeline_mode = #tpu.pipeline_mode<synchronous>, transform_indices = @transform_8, window_bounds = array<i64: 128, 128>}, {transform_indices = @transform_9, window_bounds = array<i64: 18>}, {transform_indices = @transform_10, window_bounds = array<i64: 1, 16, 16, 128>}]} {
    %c0 = arith.constant 0 : index
    %c0_0 = arith.constant 0 : index
    %c0_1 = arith.constant 0 : index
    %c0_2 = arith.constant 0 : index
    %0 = vector.load %arg1[%c0, %c0_0, %c0_1, %c0_2] : memref<1x16x16x128xbf16, #tpu.memory_space<vmem>>, vector<1x16x16x128xbf16>
    %1 = vector.shape_cast %0 : vector<1x16x16x128xbf16> to vector<16x16x128xbf16>
    %2 = vector.shape_cast %1 : vector<16x16x128xbf16> to vector<256x128xbf16>
    %c0_3 = arith.constant 0 : index
    %c0_4 = arith.constant 0 : index
    %3 = vector.load %arg2[%c0_3, %c0_4] : memref<128x128xbf16, #tpu.memory_space<vmem>>, vector<128x128xbf16>
    %cst = arith.constant dense<0.000000e+00> : vector<256x128xf32>
    %4 = tpu.matmul %2, %3, %cst {dimension_numbers = #tpu.dot_dimension_numbers<[1], [0], [0], [1], [0, 0, 1, 1], [], []>} : vector<256x128xbf16>, vector<128x128xbf16>, vector<256x128xf32> -> vector<256x128xf32>
    %c0_5 = arith.constant 0 : index
    %c0_6 = arith.constant 0 : index
    %5 = vector.load %arg3[%c0_5, %c0_6] : memref<1x128xf32, #tpu.memory_space<vmem>>, vector<1x128xf32>
    %6 = vector.broadcast %5 : vector<1x128xf32> to vector<256x128xf32>
    %7 = arith.mulf %4, %6 : vector<256x128xf32>
    %c0_7 = arith.constant 0 : index
    %c0_8 = arith.constant 0 : index
    %8 = vector.load %arg4[%c0_7, %c0_8] : memref<1x128xf32, #tpu.memory_space<vmem>>, vector<1x128xf32>
    %9 = vector.broadcast %8 : vector<1x128xf32> to vector<256x128xf32>
    %10 = arith.addf %7, %9 : vector<256x128xf32>
    %11 = arith.negf %10 : vector<256x128xf32>
    %12 = math.exp %11 : vector<256x128xf32>
    %cst_9 = arith.constant 1.000000e+00 : f32
    %13 = vector.broadcast %cst_9 : f32 to vector<256x128xf32>
    %14 = arith.addf %13, %12 : vector<256x128xf32>
    %15 = arith.divf %13, %14 : vector<256x128xf32>
    %16 = arith.mulf %10, %15 : vector<256x128xf32>
    %cst_10 = arith.constant 0.000000e+00 : f32
    %17 = vector.broadcast %cst_10 : f32 to vector<1x18x128xf32>
    %c0_11 = arith.constant 0 : index
    %c0_12 = arith.constant 0 : index
    %c0_13 = arith.constant 0 : index
    %18 = vector.load %arg12[%c0_11, %c0_12, %c0_13] : memref<18x18x128xf32, #tpu.memory_space<vmem>>, vector<1x18x128xf32>
    tpu.vector_store %arg12[%c0_11, %c0_12, %c0_13], %17 {strides = array<i32>} : memref<18x18x128xf32, #tpu.memory_space<vmem>>, vector<1x18x128xf32>,
    %cst_14 = arith.constant 0.000000e+00 : f32
    %19 = vector.broadcast %cst_14 : f32 to vector<1x18x128xf32>
    %c17 = arith.constant 17 : index
    %c0_15 = arith.constant 0 : index
    %c0_16 = arith.constant 0 : index
    %20 = vector.load %arg12[%c17, %c0_15, %c0_16] : memref<18x18x128xf32, #tpu.memory_space<vmem>>, vector<1x18x128xf32>
    tpu.vector_store %arg12[%c17, %c0_15, %c0_16], %19 {strides = array<i32>} : memref<18x18x128xf32, #tpu.memory_space<vmem>>, vector<1x18x128xf32>,
    %cst_17 = arith.constant 0.000000e+00 : f32
    %21 = vector.broadcast %cst_17 : f32 to vector<18x1x128xf32>
    %c0_18 = arith.constant 0 : index
    %c0_19 = arith.constant 0 : index
    %c0_20 = arith.constant 0 : index
    %22 = vector.load %arg12[%c0_18, %c0_19, %c0_20] : memref<18x18x128xf32, #tpu.memory_space<vmem>>, vector<18x1x128xf32>
    tpu.vector_store %arg12[%c0_18, %c0_19, %c0_20], %21 {strides = array<i32>} : memref<18x18x128xf32, #tpu.memory_space<vmem>>, vector<18x1x128xf32>,
    %cst_21 = arith.constant 0.000000e+00 : f32
    %23 = vector.broadcast %cst_21 : f32 to vector<18x1x128xf32>
    %c0_22 = arith.constant 0 : index
    %c17_23 = arith.constant 17 : index
    %c0_24 = arith.constant 0 : index
    %24 = vector.load %arg12[%c0_22, %c17_23, %c0_24] : memref<18x18x128xf32, #tpu.memory_space<vmem>>, vector<18x1x128xf32>
    tpu.vector_store %arg12[%c0_22, %c17_23, %c0_24], %23 {strides = array<i32>} : memref<18x18x128xf32, #tpu.memory_space<vmem>>, vector<18x1x128xf32>,
    %25 = vector.shape_cast %16 : vector<256x128xf32> to vector<16x16x128xf32>
    %c1 = arith.constant 1 : index
    %c1_25 = arith.constant 1 : index
    %c0_26 = arith.constant 0 : index
    %26 = vector.load %arg12[%c1, %c1_25, %c0_26] : memref<18x18x128xf32, #tpu.memory_space<vmem>>, vector<16x16x128xf32>
    tpu.vector_store %arg12[%c1, %c1_25, %c0_26], %25 {strides = array<i32>} : memref<18x18x128xf32, #tpu.memory_space<vmem>>, vector<16x16x128xf32>,
    %c0_27 = arith.constant 0 : index
    %c0_28 = arith.constant 0 : index
    %c0_29 = arith.constant 0 : index
    %27 = vector.load %arg12[%c0_27, %c0_28, %c0_29] : memref<18x18x128xf32, #tpu.memory_space<vmem>>, vector<16x16x128xf32>
    %28 = vector.shape_cast %27 : vector<16x16x128xf32> to vector<256x128xf32>
    %29 = arith.truncf %28 : vector<256x128xf32> to vector<256x128xbf16>
    %c0_30 = arith.constant 0 : index
    %c0_31 = arith.constant 0 : index
    %30 = vector.load %arg13[%c0_30, %c0_31] : memref<256x1152xbf16, #tpu.memory_space<vmem>>, vector<256x128xbf16>
    tpu.vector_store %arg13[%c0_30, %c0_31], %29 {strides = array<i32>} : memref<256x1152xbf16, #tpu.memory_space<vmem>>, vector<256x128xbf16>,
    %c0_32 = arith.constant 0 : index
    %c1_33 = arith.constant 1 : index
    %c0_34 = arith.constant 0 : index
    %31 = vector.load %arg12[%c0_32, %c1_33, %c0_34] : memref<18x18x128xf32, #tpu.memory_space<vmem>>, vector<16x16x128xf32>
    %32 = vector.shape_cast %31 : vector<16x16x128xf32> to vector<256x128xf32>
    %33 = arith.truncf %32 : vector<256x128xf32> to vector<256x128xbf16>
    %c0_35 = arith.constant 0 : index
    %c128 = arith.constant 128 : index
    %34 = vector.load %arg13[%c0_35, %c128] : memref<256x1152xbf16, #tpu.memory_space<vmem>>, vector<256x128xbf16>
    tpu.vector_store %arg13[%c0_35, %c128], %33 {strides = array<i32>} : memref<256x1152xbf16, #tpu.memory_space<vmem>>, vector<256x128xbf16>,
    %c0_36 = arith.constant 0 : index
    %c2 = arith.constant 2 : index
    %c0_37 = arith.constant 0 : index
    %35 = vector.load %arg12[%c0_36, %c2, %c0_37] : memref<18x18x128xf32, #tpu.memory_space<vmem>>, vector<16x16x128xf32>
    %36 = vector.shape_cast %35 : vector<16x16x128xf32> to vector<256x128xf32>
    %37 = arith.truncf %36 : vector<256x128xf32> to vector<256x128xbf16>
    %c0_38 = arith.constant 0 : index
    %c256 = arith.constant 256 : index
    %38 = vector.load %arg13[%c0_38, %c256] : memref<256x1152xbf16, #tpu.memory_space<vmem>>, vector<256x128xbf16>
    tpu.vector_store %arg13[%c0_38, %c256], %37 {strides = array<i32>} : memref<256x1152xbf16, #tpu.memory_space<vmem>>, vector<256x128xbf16>,
    %c1_39 = arith.constant 1 : index
    %c0_40 = arith.constant 0 : index
    %c0_41 = arith.constant 0 : index
    %39 = vector.load %arg12[%c1_39, %c0_40, %c0_41] : memref<18x18x128xf32, #tpu.memory_space<vmem>>, vector<16x16x128xf32>
    %40 = vector.shape_cast %39 : vector<16x16x128xf32> to vector<256x128xf32>
    %41 = arith.truncf %40 : vector<256x128xf32> to vector<256x128xbf16>
    %c0_42 = arith.constant 0 : index
    %c384 = arith.constant 384 : index
    %42 = vector.load %arg13[%c0_42, %c384] : memref<256x1152xbf16, #tpu.memory_space<vmem>>, vector<256x128xbf16>
    tpu.vector_store %arg13[%c0_42, %c384], %41 {strides = array<i32>} : memref<256x1152xbf16, #tpu.memory_space<vmem>>, vector<256x128xbf16>,
    %c1_43 = arith.constant 1 : index
    %c1_44 = arith.constant 1 : index
    %c0_45 = arith.constant 0 : index
    %43 = vector.load %arg12[%c1_43, %c1_44, %c0_45] : memref<18x18x128xf32, #tpu.memory_space<vmem>>, vector<16x16x128xf32>
    %44 = vector.shape_cast %43 : vector<16x16x128xf32> to vector<256x128xf32>
    %45 = arith.truncf %44 : vector<256x128xf32> to vector<256x128xbf16>
    %c0_46 = arith.constant 0 : index
    %c512 = arith.constant 512 : index
    %46 = vector.load %arg13[%c0_46, %c512] : memref<256x1152xbf16, #tpu.memory_space<vmem>>, vector<256x128xbf16>
    tpu.vector_store %arg13[%c0_46, %c512], %45 {strides = array<i32>} : memref<256x1152xbf16, #tpu.memory_space<vmem>>, vector<256x128xbf16>,
    %c1_47 = arith.constant 1 : index
    %c2_48 = arith.constant 2 : index
    %c0_49 = arith.constant 0 : index
    %47 = vector.load %arg12[%c1_47, %c2_48, %c0_49] : memref<18x18x128xf32, #tpu.memory_space<vmem>>, vector<16x16x128xf32>
    %48 = vector.shape_cast %47 : vector<16x16x128xf32> to vector<256x128xf32>
    %49 = arith.truncf %48 : vector<256x128xf32> to vector<256x128xbf16>
    %c0_50 = arith.constant 0 : index
    %c640 = arith.constant 640 : index
    %50 = vector.load %arg13[%c0_50, %c640] : memref<256x1152xbf16, #tpu.memory_space<vmem>>, vector<256x128xbf16>
    tpu.vector_store %arg13[%c0_50, %c640], %49 {strides = array<i32>} : memref<256x1152xbf16, #tpu.memory_space<vmem>>, vector<256x128xbf16>,
    %c2_51 = arith.constant 2 : index
    %c0_52 = arith.constant 0 : index
    %c0_53 = arith.constant 0 : index
    %51 = vector.load %arg12[%c2_51, %c0_52, %c0_53] : memref<18x18x128xf32, #tpu.memory_space<vmem>>, vector<16x16x128xf32>
    %52 = vector.shape_cast %51 : vector<16x16x128xf32> to vector<256x128xf32>
    %53 = arith.truncf %52 : vector<256x128xf32> to vector<256x128xbf16>
    %c0_54 = arith.constant 0 : index
    %c768 = arith.constant 768 : index
    %54 = vector.load %arg13[%c0_54, %c768] : memref<256x1152xbf16, #tpu.memory_space<vmem>>, vector<256x128xbf16>
    tpu.vector_store %arg13[%c0_54, %c768], %53 {strides = array<i32>} : memref<256x1152xbf16, #tpu.memory_space<vmem>>, vector<256x128xbf16>,
    %c2_55 = arith.constant 2 : index
    %c1_56 = arith.constant 1 : index
    %c0_57 = arith.constant 0 : index
    %55 = vector.load %arg12[%c2_55, %c1_56, %c0_57] : memref<18x18x128xf32, #tpu.memory_space<vmem>>, vector<16x16x128xf32>
    %56 = vector.shape_cast %55 : vector<16x16x128xf32> to vector<256x128xf32>
    %57 = arith.truncf %56 : vector<256x128xf32> to vector<256x128xbf16>
    %c0_58 = arith.constant 0 : index
    %c896 = arith.constant 896 : index
    %58 = vector.load %arg13[%c0_58, %c896] : memref<256x1152xbf16, #tpu.memory_space<vmem>>, vector<256x128xbf16>
    tpu.vector_store %arg13[%c0_58, %c896], %57 {strides = array<i32>} : memref<256x1152xbf16, #tpu.memory_space<vmem>>, vector<256x128xbf16>,
    %c2_59 = arith.constant 2 : index
    %c2_60 = arith.constant 2 : index
    %c0_61 = arith.constant 0 : index
    %59 = vector.load %arg12[%c2_59, %c2_60, %c0_61] : memref<18x18x128xf32, #tpu.memory_space<vmem>>, vector<16x16x128xf32>
    %60 = vector.shape_cast %59 : vector<16x16x128xf32> to vector<256x128xf32>
    %61 = arith.truncf %60 : vector<256x128xf32> to vector<256x128xbf16>
    %c0_62 = arith.constant 0 : index
    %c1024 = arith.constant 1024 : index
    %62 = vector.load %arg13[%c0_62, %c1024] : memref<256x1152xbf16, #tpu.memory_space<vmem>>, vector<256x128xbf16>
    tpu.vector_store %arg13[%c0_62, %c1024], %61 {strides = array<i32>} : memref<256x1152xbf16, #tpu.memory_space<vmem>>, vector<256x128xbf16>,
    %c0_63 = arith.constant 0 : index
    %c0_64 = arith.constant 0 : index
    %63 = vector.load %arg13[%c0_63, %c0_64] : memref<256x1152xbf16, #tpu.memory_space<vmem>>, vector<256x1152xbf16>
    %c0_65 = arith.constant 0 : index
    %c0_66 = arith.constant 0 : index
    %64 = vector.load %arg5[%c0_65, %c0_66] : memref<1152x128xbf16, #tpu.memory_space<vmem>>, vector<1152x128xbf16>
    %cst_67 = arith.constant dense<0.000000e+00> : vector<256x128xf32>
    %65 = tpu.matmul %63, %64, %cst_67 {dimension_numbers = #tpu.dot_dimension_numbers<[1], [0], [0], [1], [0, 0, 1, 1], [], []>} : vector<256x1152xbf16>, vector<1152x128xbf16>, vector<256x128xf32> -> vector<256x128xf32>
    %c0_68 = arith.constant 0 : index
    %c0_69 = arith.constant 0 : index
    %66 = vector.load %arg6[%c0_68, %c0_69] : memref<1x128xf32, #tpu.memory_space<vmem>>, vector<1x128xf32>
    %67 = vector.broadcast %66 : vector<1x128xf32> to vector<256x128xf32>
    %68 = arith.mulf %65, %67 : vector<256x128xf32>
    %c0_70 = arith.constant 0 : index
    %c0_71 = arith.constant 0 : index
    %69 = vector.load %arg7[%c0_70, %c0_71] : memref<1x128xf32, #tpu.memory_space<vmem>>, vector<1x128xf32>
    %70 = vector.broadcast %69 : vector<1x128xf32> to vector<256x128xf32>
    %71 = arith.addf %68, %70 : vector<256x128xf32>
    %72 = arith.negf %71 : vector<256x128xf32>
    %73 = math.exp %72 : vector<256x128xf32>
    %cst_72 = arith.constant 1.000000e+00 : f32
    %74 = vector.broadcast %cst_72 : f32 to vector<256x128xf32>
    %75 = arith.addf %74, %73 : vector<256x128xf32>
    %76 = arith.divf %74, %75 : vector<256x128xf32>
    %77 = arith.mulf %71, %76 : vector<256x128xf32>
    %cst_73 = arith.constant dense<0.000000e+00> : vector<128xf32>
    %78 = vector.multi_reduction <add>, %77, %cst_73 [0] : vector<256x128xf32> to vector<128xf32>
    %79 = vector.shape_cast %78 : vector<128xf32> to vector<1x128xf32>
    %cst_74 = arith.constant 2.560000e+02 : f32
    %80 = vector.broadcast %cst_74 : f32 to vector<1x128xf32>
    %81 = arith.divf %79, %80 : vector<1x128xf32>
    %cst_75 = arith.constant dense<0xFF800000> : vector<128xf32>
    %82 = vector.multi_reduction <maximumf>, %77, %cst_75 [0] : vector<256x128xf32> to vector<128xf32>
    %83 = vector.shape_cast %82 : vector<128xf32> to vector<1x128xf32>
    %c0_76 = arith.constant 0 : index
    %c0_77 = arith.constant 0 : index
    %84 = vector.load %arg8[%c0_76, %c0_77] : memref<128x128xf32, #tpu.memory_space<vmem>>, vector<128x128xf32>
    %cst_78 = arith.constant dense<0.000000e+00> : vector<1x128xf32>
    %85 = tpu.matmul %81, %84, %cst_78 {dimension_numbers = #tpu.dot_dimension_numbers<[1], [0], [0], [1], [0, 0, 1, 1], [], []>} : vector<1x128xf32>, vector<128x128xf32>, vector<1x128xf32> -> vector<1x128xf32>
    %cst_79 = arith.constant 0.000000e+00 : f32
    %86 = vector.broadcast %cst_79 : f32 to vector<1x128xf32>
    %87 = arith.maximumf %85, %86 : vector<1x128xf32>
    %c0_80 = arith.constant 0 : index
    %c0_81 = arith.constant 0 : index
    %88 = vector.load %arg9[%c0_80, %c0_81] : memref<128x128xf32, #tpu.memory_space<vmem>>, vector<128x128xf32>
    %cst_82 = arith.constant dense<0.000000e+00> : vector<1x128xf32>
    %89 = tpu.matmul %87, %88, %cst_82 {dimension_numbers = #tpu.dot_dimension_numbers<[1], [0], [0], [1], [0, 0, 1, 1], [], []>} : vector<1x128xf32>, vector<128x128xf32>, vector<1x128xf32> -> vector<1x128xf32>
    %c0_83 = arith.constant 0 : index
    %c0_84 = arith.constant 0 : index
    %90 = vector.load %arg8[%c0_83, %c0_84] : memref<128x128xf32, #tpu.memory_space<vmem>>, vector<128x128xf32>
    %cst_85 = arith.constant dense<0.000000e+00> : vector<1x128xf32>
    %91 = tpu.matmul %83, %90, %cst_85 {dimension_numbers = #tpu.dot_dimension_numbers<[1], [0], [0], [1], [0, 0, 1, 1], [], []>} : vector<1x128xf32>, vector<128x128xf32>, vector<1x128xf32> -> vector<1x128xf32>
    %cst_86 = arith.constant 0.000000e+00 : f32
    %92 = vector.broadcast %cst_86 : f32 to vector<1x128xf32>
    %93 = arith.maximumf %91, %92 : vector<1x128xf32>
    %c0_87 = arith.constant 0 : index
    %c0_88 = arith.constant 0 : index
    %94 = vector.load %arg9[%c0_87, %c0_88] : memref<128x128xf32, #tpu.memory_space<vmem>>, vector<128x128xf32>
    %cst_89 = arith.constant dense<0.000000e+00> : vector<1x128xf32>
    %95 = tpu.matmul %93, %94, %cst_89 {dimension_numbers = #tpu.dot_dimension_numbers<[1], [0], [0], [1], [0, 0, 1, 1], [], []>} : vector<1x128xf32>, vector<128x128xf32>, vector<1x128xf32> -> vector<1x128xf32>
    %96 = arith.addf %89, %95 : vector<1x128xf32>
    %97 = arith.negf %96 : vector<1x128xf32>
    %98 = math.exp %97 : vector<1x128xf32>
    %cst_90 = arith.constant 1.000000e+00 : f32
    %99 = vector.broadcast %cst_90 : f32 to vector<1x128xf32>
    %100 = arith.addf %99, %98 : vector<1x128xf32>
    %101 = arith.divf %99, %100 : vector<1x128xf32>
    %102 = vector.broadcast %101 : vector<1x128xf32> to vector<256x128xf32>
    %103 = arith.mulf %77, %102 : vector<256x128xf32>
    %104 = vector.shape_cast %103 : vector<256x128xf32> to vector<16x16x128xf32>
    %cst_91 = arith.constant dense<0.000000e+00> : vector<16x16xf32>
    %105 = vector.multi_reduction <add>, %104, %cst_91 [2] : vector<16x16x128xf32> to vector<16x16xf32>
    %cst_92 = arith.constant 3.125000e-02 : f32
    %106 = vector.broadcast %cst_92 : f32 to vector<16x16xf32>
    %107 = arith.mulf %105, %106 : vector<16x16xf32>
    %108 = tpu.iota {dimensions = array<i32: 2>} : vector<16x16x128xi32>
    %c32_i32 = arith.constant 32 : i32
    %109 = vector.broadcast %c32_i32 : i32 to vector<16x16x128xi32>
    %110 = arith.cmpi slt, %108, %109 : vector<16x16x128xi32>
    %cst_93 = arith.constant 0xFF800000 : f32
    %111 = vector.broadcast %cst_93 : f32 to vector<16x16x128xf32>
    %112 = arith.select %110, %104, %111 : vector<16x16x128xi1>, vector<16x16x128xf32>
    %cst_94 = arith.constant dense<0xFF800000> : vector<16x16xf32>
    %113 = vector.multi_reduction <maximumf>, %112, %cst_94 [2] : vector<16x16x128xf32> to vector<16x16xf32>
    %cst_95 = arith.constant 0.000000e+00 : f32
    %114 = vector.broadcast %cst_95 : f32 to vector<2x1x18xf32>
    %c0_96 = arith.constant 0 : index
    %c0_97 = arith.constant 0 : index
    %c0_98 = arith.constant 0 : index
    %115 = vector.load %arg14[%c0_96, %c0_97, %c0_98] : memref<2x18x18xf32, #tpu.memory_space<vmem>>, vector<2x1x18xf32>
    tpu.vector_store %arg14[%c0_96, %c0_97, %c0_98], %114 {strides = array<i32>} : memref<2x18x18xf32, #tpu.memory_space<vmem>>, vector<2x1x18xf32>,
    %cst_99 = arith.constant 0.000000e+00 : f32
    %116 = vector.broadcast %cst_99 : f32 to vector<2x1x18xf32>
    %c0_100 = arith.constant 0 : index
    %c17_101 = arith.constant 17 : index
    %c0_102 = arith.constant 0 : index
    %117 = vector.load %arg14[%c0_100, %c17_101, %c0_102] : memref<2x18x18xf32, #tpu.memory_space<vmem>>, vector<2x1x18xf32>
    tpu.vector_store %arg14[%c0_100, %c17_101, %c0_102], %116 {strides = array<i32>} : memref<2x18x18xf32, #tpu.memory_space<vmem>>, vector<2x1x18xf32>,
    %cst_103 = arith.constant 0.000000e+00 : f32
    %118 = vector.broadcast %cst_103 : f32 to vector<2x18x1xf32>
    %c0_104 = arith.constant 0 : index
    %c0_105 = arith.constant 0 : index
    %c0_106 = arith.constant 0 : index
    %119 = vector.load %arg14[%c0_104, %c0_105, %c0_106] : memref<2x18x18xf32, #tpu.memory_space<vmem>>, vector<2x18x1xf32>
    tpu.vector_store %arg14[%c0_104, %c0_105, %c0_106], %118 {strides = array<i32>} : memref<2x18x18xf32, #tpu.memory_space<vmem>>, vector<2x18x1xf32>,
    %cst_107 = arith.constant 0.000000e+00 : f32
    %120 = vector.broadcast %cst_107 : f32 to vector<2x18x1xf32>
    %c0_108 = arith.constant 0 : index
    %c0_109 = arith.constant 0 : index
    %c17_110 = arith.constant 17 : index
    %121 = vector.load %arg14[%c0_108, %c0_109, %c17_110] : memref<2x18x18xf32, #tpu.memory_space<vmem>>, vector<2x18x1xf32>
    tpu.vector_store %arg14[%c0_108, %c0_109, %c17_110], %120 {strides = array<i32>} : memref<2x18x18xf32, #tpu.memory_space<vmem>>, vector<2x18x1xf32>,
    %c0_111 = arith.constant 0 : index
    %c1_112 = arith.constant 1 : index
    %c1_113 = arith.constant 1 : index
    %122 = vector.load %arg14[%c0_111, %c1_112, %c1_113] : memref<2x18x18xf32, #tpu.memory_space<vmem>>, vector<1x16x16xf32>
    %123 = vector.shape_cast %122 : vector<1x16x16xf32> to vector<16x16xf32>
    %124 = vector.shape_cast %107 : vector<16x16xf32> to vector<1x16x16xf32>
    tpu.vector_store %arg14[%c0_111, %c1_112, %c1_113], %124 {strides = array<i32>} : memref<2x18x18xf32, #tpu.memory_space<vmem>>, vector<1x16x16xf32>,
    %c1_114 = arith.constant 1 : index
    %c1_115 = arith.constant 1 : index
    %c1_116 = arith.constant 1 : index
    %125 = vector.load %arg14[%c1_114, %c1_115, %c1_116] : memref<2x18x18xf32, #tpu.memory_space<vmem>>, vector<1x16x16xf32>
    %126 = vector.shape_cast %125 : vector<1x16x16xf32> to vector<16x16xf32>
    %127 = vector.shape_cast %113 : vector<16x16xf32> to vector<1x16x16xf32>
    tpu.vector_store %arg14[%c1_114, %c1_115, %c1_116], %127 {strides = array<i32>} : memref<2x18x18xf32, #tpu.memory_space<vmem>>, vector<1x16x16xf32>,
    %c0_117 = arith.constant 0 : index
    %128 = memref.load %arg10[%c0_117] : memref<18xf32, #tpu.memory_space<smem>>
    %c0_118 = arith.constant 0 : index
    %c0_119 = arith.constant 0 : index
    %c0_120 = arith.constant 0 : index
    %129 = vector.load %arg14[%c0_118, %c0_119, %c0_120] : memref<2x18x18xf32, #tpu.memory_space<vmem>>, vector<1x16x16xf32>
    %130 = vector.shape_cast %129 : vector<1x16x16xf32> to vector<16x16xf32>
    %131 = vector.broadcast %128 : f32 to vector<16x16xf32>
    %132 = arith.mulf %130, %131 : vector<16x16xf32>
    %c1_121 = arith.constant 1 : index
    %133 = memref.load %arg10[%c1_121] : memref<18xf32, #tpu.memory_space<smem>>
    %c0_122 = arith.constant 0 : index
    %c0_123 = arith.constant 0 : index
    %c1_124 = arith.constant 1 : index
    %134 = vector.load %arg14[%c0_122, %c0_123, %c1_124] : memref<2x18x18xf32, #tpu.memory_space<vmem>>, vector<1x16x16xf32>
    %135 = vector.shape_cast %134 : vector<1x16x16xf32> to vector<16x16xf32>
    %136 = vector.broadcast %133 : f32 to vector<16x16xf32>
    %137 = arith.mulf %135, %136 : vector<16x16xf32>
    %138 = arith.addf %132, %137 : vector<16x16xf32>
    %c2_125 = arith.constant 2 : index
    %139 = memref.load %arg10[%c2_125] : memref<18xf32, #tpu.memory_space<smem>>
    %c0_126 = arith.constant 0 : index
    %c0_127 = arith.constant 0 : index
    %c2_128 = arith.constant 2 : index
    %140 = vector.load %arg14[%c0_126, %c0_127, %c2_128] : memref<2x18x18xf32, #tpu.memory_space<vmem>>, vector<1x16x16xf32>
    %141 = vector.shape_cast %140 : vector<1x16x16xf32> to vector<16x16xf32>
    %142 = vector.broadcast %139 : f32 to vector<16x16xf32>
    %143 = arith.mulf %141, %142 : vector<16x16xf32>
    %144 = arith.addf %138, %143 : vector<16x16xf32>
    %c3 = arith.constant 3 : index
    %145 = memref.load %arg10[%c3] : memref<18xf32, #tpu.memory_space<smem>>
    %c0_129 = arith.constant 0 : index
    %c1_130 = arith.constant 1 : index
    %c0_131 = arith.constant 0 : index
    %146 = vector.load %arg14[%c0_129, %c1_130, %c0_131] : memref<2x18x18xf32, #tpu.memory_space<vmem>>, vector<1x16x16xf32>
    %147 = vector.shape_cast %146 : vector<1x16x16xf32> to vector<16x16xf32>
    %148 = vector.broadcast %145 : f32 to vector<16x16xf32>
    %149 = arith.mulf %147, %148 : vector<16x16xf32>
    %150 = arith.addf %144, %149 : vector<16x16xf32>
    %c4 = arith.constant 4 : index
    %151 = memref.load %arg10[%c4] : memref<18xf32, #tpu.memory_space<smem>>
    %c0_132 = arith.constant 0 : index
    %c1_133 = arith.constant 1 : index
    %c1_134 = arith.constant 1 : index
    %152 = vector.load %arg14[%c0_132, %c1_133, %c1_134] : memref<2x18x18xf32, #tpu.memory_space<vmem>>, vector<1x16x16xf32>
    %153 = vector.shape_cast %152 : vector<1x16x16xf32> to vector<16x16xf32>
    %154 = vector.broadcast %151 : f32 to vector<16x16xf32>
    %155 = arith.mulf %153, %154 : vector<16x16xf32>
    %156 = arith.addf %150, %155 : vector<16x16xf32>
    %c5 = arith.constant 5 : index
    %157 = memref.load %arg10[%c5] : memref<18xf32, #tpu.memory_space<smem>>
    %c0_135 = arith.constant 0 : index
    %c1_136 = arith.constant 1 : index
    %c2_137 = arith.constant 2 : index
    %158 = vector.load %arg14[%c0_135, %c1_136, %c2_137] : memref<2x18x18xf32, #tpu.memory_space<vmem>>, vector<1x16x16xf32>
    %159 = vector.shape_cast %158 : vector<1x16x16xf32> to vector<16x16xf32>
    %160 = vector.broadcast %157 : f32 to vector<16x16xf32>
    %161 = arith.mulf %159, %160 : vector<16x16xf32>
    %162 = arith.addf %156, %161 : vector<16x16xf32>
    %c6 = arith.constant 6 : index
    %163 = memref.load %arg10[%c6] : memref<18xf32, #tpu.memory_space<smem>>
    %c0_138 = arith.constant 0 : index
    %c2_139 = arith.constant 2 : index
    %c0_140 = arith.constant 0 : index
    %164 = vector.load %arg14[%c0_138, %c2_139, %c0_140] : memref<2x18x18xf32, #tpu.memory_space<vmem>>, vector<1x16x16xf32>
    %165 = vector.shape_cast %164 : vector<1x16x16xf32> to vector<16x16xf32>
    %166 = vector.broadcast %163 : f32 to vector<16x16xf32>
    %167 = arith.mulf %165, %166 : vector<16x16xf32>
    %168 = arith.addf %162, %167 : vector<16x16xf32>
    %c7 = arith.constant 7 : index
    %169 = memref.load %arg10[%c7] : memref<18xf32, #tpu.memory_space<smem>>
    %c0_141 = arith.constant 0 : index
    %c2_142 = arith.constant 2 : index
    %c1_143 = arith.constant 1 : index
    %170 = vector.load %arg14[%c0_141, %c2_142, %c1_143] : memref<2x18x18xf32, #tpu.memory_space<vmem>>, vector<1x16x16xf32>
    %171 = vector.shape_cast %170 : vector<1x16x16xf32> to vector<16x16xf32>
    %172 = vector.broadcast %169 : f32 to vector<16x16xf32>
    %173 = arith.mulf %171, %172 : vector<16x16xf32>
    %174 = arith.addf %168, %173 : vector<16x16xf32>
    %c8 = arith.constant 8 : index
    %175 = memref.load %arg10[%c8] : memref<18xf32, #tpu.memory_space<smem>>
    %c0_144 = arith.constant 0 : index
    %c2_145 = arith.constant 2 : index
    %c2_146 = arith.constant 2 : index
    %176 = vector.load %arg14[%c0_144, %c2_145, %c2_146] : memref<2x18x18xf32, #tpu.memory_space<vmem>>, vector<1x16x16xf32>
    %177 = vector.shape_cast %176 : vector<1x16x16xf32> to vector<16x16xf32>
    %178 = vector.broadcast %175 : f32 to vector<16x16xf32>
    %179 = arith.mulf %177, %178 : vector<16x16xf32>
    %180 = arith.addf %174, %179 : vector<16x16xf32>
    %c9 = arith.constant 9 : index
    %181 = memref.load %arg10[%c9] : memref<18xf32, #tpu.memory_space<smem>>
    %c1_147 = arith.constant 1 : index
    %c0_148 = arith.constant 0 : index
    %c0_149 = arith.constant 0 : index
    %182 = vector.load %arg14[%c1_147, %c0_148, %c0_149] : memref<2x18x18xf32, #tpu.memory_space<vmem>>, vector<1x16x16xf32>
    %183 = vector.shape_cast %182 : vector<1x16x16xf32> to vector<16x16xf32>
    %184 = vector.broadcast %181 : f32 to vector<16x16xf32>
    %185 = arith.mulf %183, %184 : vector<16x16xf32>
    %186 = arith.addf %180, %185 : vector<16x16xf32>
    %c10 = arith.constant 10 : index
    %187 = memref.load %arg10[%c10] : memref<18xf32, #tpu.memory_space<smem>>
    %c1_150 = arith.constant 1 : index
    %c0_151 = arith.constant 0 : index
    %c1_152 = arith.constant 1 : index
    %188 = vector.load %arg14[%c1_150, %c0_151, %c1_152] : memref<2x18x18xf32, #tpu.memory_space<vmem>>, vector<1x16x16xf32>
    %189 = vector.shape_cast %188 : vector<1x16x16xf32> to vector<16x16xf32>
    %190 = vector.broadcast %187 : f32 to vector<16x16xf32>
    %191 = arith.mulf %189, %190 : vector<16x16xf32>
    %192 = arith.addf %186, %191 : vector<16x16xf32>
    %c11 = arith.constant 11 : index
    %193 = memref.load %arg10[%c11] : memref<18xf32, #tpu.memory_space<smem>>
    %c1_153 = arith.constant 1 : index
    %c0_154 = arith.constant 0 : index
    %c2_155 = arith.constant 2 : index
    %194 = vector.load %arg14[%c1_153, %c0_154, %c2_155] : memref<2x18x18xf32, #tpu.memory_space<vmem>>, vector<1x16x16xf32>
    %195 = vector.shape_cast %194 : vector<1x16x16xf32> to vector<16x16xf32>
    %196 = vector.broadcast %193 : f32 to vector<16x16xf32>
    %197 = arith.mulf %195, %196 : vector<16x16xf32>
    %198 = arith.addf %192, %197 : vector<16x16xf32>
    %c12 = arith.constant 12 : index
    %199 = memref.load %arg10[%c12] : memref<18xf32, #tpu.memory_space<smem>>
    %c1_156 = arith.constant 1 : index
    %c1_157 = arith.constant 1 : index
    %c0_158 = arith.constant 0 : index
    %200 = vector.load %arg14[%c1_156, %c1_157, %c0_158] : memref<2x18x18xf32, #tpu.memory_space<vmem>>, vector<1x16x16xf32>
    %201 = vector.shape_cast %200 : vector<1x16x16xf32> to vector<16x16xf32>
    %202 = vector.broadcast %199 : f32 to vector<16x16xf32>
    %203 = arith.mulf %201, %202 : vector<16x16xf32>
    %204 = arith.addf %198, %203 : vector<16x16xf32>
    %c13 = arith.constant 13 : index
    %205 = memref.load %arg10[%c13] : memref<18xf32, #tpu.memory_space<smem>>
    %c1_159 = arith.constant 1 : index
    %c1_160 = arith.constant 1 : index
    %c1_161 = arith.constant 1 : index
    %206 = vector.load %arg14[%c1_159, %c1_160, %c1_161] : memref<2x18x18xf32, #tpu.memory_space<vmem>>, vector<1x16x16xf32>
    %207 = vector.shape_cast %206 : vector<1x16x16xf32> to vector<16x16xf32>
    %208 = vector.broadcast %205 : f32 to vector<16x16xf32>
    %209 = arith.mulf %207, %208 : vector<16x16xf32>
    %210 = arith.addf %204, %209 : vector<16x16xf32>
    %c14 = arith.constant 14 : index
    %211 = memref.load %arg10[%c14] : memref<18xf32, #tpu.memory_space<smem>>
    %c1_162 = arith.constant 1 : index
    %c1_163 = arith.constant 1 : index
    %c2_164 = arith.constant 2 : index
    %212 = vector.load %arg14[%c1_162, %c1_163, %c2_164] : memref<2x18x18xf32, #tpu.memory_space<vmem>>, vector<1x16x16xf32>
    %213 = vector.shape_cast %212 : vector<1x16x16xf32> to vector<16x16xf32>
    %214 = vector.broadcast %211 : f32 to vector<16x16xf32>
    %215 = arith.mulf %213, %214 : vector<16x16xf32>
    %216 = arith.addf %210, %215 : vector<16x16xf32>
    %c15 = arith.constant 15 : index
    %217 = memref.load %arg10[%c15] : memref<18xf32, #tpu.memory_space<smem>>
    %c1_165 = arith.constant 1 : index
    %c2_166 = arith.constant 2 : index
    %c0_167 = arith.constant 0 : index
    %218 = vector.load %arg14[%c1_165, %c2_166, %c0_167] : memref<2x18x18xf32, #tpu.memory_space<vmem>>, vector<1x16x16xf32>
    %219 = vector.shape_cast %218 : vector<1x16x16xf32> to vector<16x16xf32>
    %220 = vector.broadcast %217 : f32 to vector<16x16xf32>
    %221 = arith.mulf %219, %220 : vector<16x16xf32>
    %222 = arith.addf %216, %221 : vector<16x16xf32>
    %c16 = arith.constant 16 : index
    %223 = memref.load %arg10[%c16] : memref<18xf32, #tpu.memory_space<smem>>
    %c1_168 = arith.constant 1 : index
    %c2_169 = arith.constant 2 : index
    %c1_170 = arith.constant 1 : index
    %224 = vector.load %arg14[%c1_168, %c2_169, %c1_170] : memref<2x18x18xf32, #tpu.memory_space<vmem>>, vector<1x16x16xf32>
    %225 = vector.shape_cast %224 : vector<1x16x16xf32> to vector<16x16xf32>
    %226 = vector.broadcast %223 : f32 to vector<16x16xf32>
    %227 = arith.mulf %225, %226 : vector<16x16xf32>
    %228 = arith.addf %222, %227 : vector<16x16xf32>
    %c17_171 = arith.constant 17 : index
    %229 = memref.load %arg10[%c17_171] : memref<18xf32, #tpu.memory_space<smem>>
    %c1_172 = arith.constant 1 : index
    %c2_173 = arith.constant 2 : index
    %c2_174 = arith.constant 2 : index
    %230 = vector.load %arg14[%c1_172, %c2_173, %c2_174] : memref<2x18x18xf32, #tpu.memory_space<vmem>>, vector<1x16x16xf32>
    %231 = vector.shape_cast %230 : vector<1x16x16xf32> to vector<16x16xf32>
    %232 = vector.broadcast %229 : f32 to vector<16x16xf32>
    %233 = arith.mulf %231, %232 : vector<16x16xf32>
    %234 = arith.addf %228, %233 : vector<16x16xf32>
    %235 = arith.negf %234 : vector<16x16xf32>
    %236 = math.exp %235 : vector<16x16xf32>
    %cst_175 = arith.constant 1.000000e+00 : f32
    %237 = vector.broadcast %cst_175 : f32 to vector<16x16xf32>
    %238 = arith.addf %237, %236 : vector<16x16xf32>
    %239 = arith.divf %237, %238 : vector<16x16xf32>
    %240 = vector.shape_cast %239 : vector<16x16xf32> to vector<16x16x1xf32>
    %241 = vector.broadcast %240 : vector<16x16x1xf32> to vector<16x16x128xf32>
    %242 = arith.mulf %104, %241 : vector<16x16x128xf32>
    %c0_176 = arith.constant 0 : index
    %c0_177 = arith.constant 0 : index
    %c0_178 = arith.constant 0 : index
    %c0_179 = arith.constant 0 : index
    %243 = vector.load %arg1[%c0_176, %c0_177, %c0_178, %c0_179] : memref<1x16x16x128xbf16, #tpu.memory_space<vmem>>, vector<1x16x16x128xbf16>
    %244 = vector.shape_cast %243 : vector<1x16x16x128xbf16> to vector<16x16x128xbf16>
    %245 = arith.extf %244 : vector<16x16x128xbf16> to vector<16x16x128xf32>
    %246 = arith.addf %242, %245 : vector<16x16x128xf32>
    %c0_180 = arith.constant 0 : index
    %c0_181 = arith.constant 0 : index
    %c0_182 = arith.constant 0 : index
    %c0_183 = arith.constant 0 : index
    %247 = vector.load %arg11[%c0_180, %c0_181, %c0_182, %c0_183] : memref<1x16x16x128xf32, #tpu.memory_space<vmem>>, vector<1x16x16x128xf32>
    %248 = vector.shape_cast %247 : vector<1x16x16x128xf32> to vector<16x16x128xf32>
    %249 = vector.shape_cast %246 : vector<16x16x128xf32> to vector<1x16x16x128xf32>
    tpu.vector_store %arg11[%c0_180, %c0_181, %c0_182, %c0_183], %249 {strides = array<i32>} : memref<1x16x16x128xf32, #tpu.memory_space<vmem>>, vector<1x16x16x128xf32>,
    return
  }
  func.func @transform_0(%arg0: i32) -> (i32, i32, i32, i32) {
    %c0_i32 = arith.constant 0 : i32
    %c0_i32_0 = arith.constant 0 : i32
    %c0_i32_1 = arith.constant 0 : i32
    %c0_i32_2 = arith.constant 0 : i32
    return %arg0, %c0_i32, %c0_i32_0, %c0_i32_1 : i32, i32, i32, i32
  }
  func.func @transform_1(%arg0: i32) -> (i32, i32) {
    %c0_i32 = arith.constant 0 : i32
    %c0_i32_0 = arith.constant 0 : i32
    %c0_i32_1 = arith.constant 0 : i32
    return %c0_i32, %c0_i32_0 : i32, i32
  }
  func.func @transform_2(%arg0: i32) -> (i32, i32) {
    %c0_i32 = arith.constant 0 : i32
    %c0_i32_0 = arith.constant 0 : i32
    %c0_i32_1 = arith.constant 0 : i32
    return %c0_i32, %c0_i32_0 : i32, i32
  }
  func.func @transform_3(%arg0: i32) -> (i32, i32) {
    %c0_i32 = arith.constant 0 : i32
    %c0_i32_0 = arith.constant 0 : i32
    %c0_i32_1 = arith.constant 0 : i32
    return %c0_i32, %c0_i32_0 : i32, i32
  }
  func.func @transform_4(%arg0: i32) -> (i32, i32) {
    %c0_i32 = arith.constant 0 : i32
    %c0_i32_0 = arith.constant 0 : i32
    %c0_i32_1 = arith.constant 0 : i32
    return %c0_i32, %c0_i32_0 : i32, i32
  }
  func.func @transform_5(%arg0: i32) -> (i32, i32) {
    %c0_i32 = arith.constant 0 : i32
    %c0_i32_0 = arith.constant 0 : i32
    %c0_i32_1 = arith.constant 0 : i32
    return %c0_i32, %c0_i32_0 : i32, i32
  }
  func.func @transform_6(%arg0: i32) -> (i32, i32) {
    %c0_i32 = arith.constant 0 : i32
    %c0_i32_0 = arith.constant 0 : i32
    %c0_i32_1 = arith.constant 0 : i32
    return %c0_i32, %c0_i32_0 : i32, i32
  }
  func.func @transform_7(%arg0: i32) -> (i32, i32) {
    %c0_i32 = arith.constant 0 : i32
    %c0_i32_0 = arith.constant 0 : i32
    %c0_i32_1 = arith.constant 0 : i32
    return %c0_i32, %c0_i32_0 : i32, i32
  }
  func.func @transform_8(%arg0: i32) -> (i32, i32) {
    %c0_i32 = arith.constant 0 : i32
    %c0_i32_0 = arith.constant 0 : i32
    %c0_i32_1 = arith.constant 0 : i32
    return %c0_i32, %c0_i32_0 : i32, i32
  }
  func.func @transform_9(%arg0: i32) -> i32 {
    %c0_i32 = arith.constant 0 : i32
    %c0_i32_0 = arith.constant 0 : i32
    return %c0_i32 : i32
  }
  func.func @transform_10(%arg0: i32) -> (i32, i32, i32, i32) {
    %c0_i32 = arith.constant 0 : i32
    %c0_i32_0 = arith.constant 0 : i32
    %c0_i32_1 = arith.constant 0 : i32
    %c0_i32_2 = arith.constant 0 : i32
    return %arg0, %c0_i32, %c0_i32_0, %c0_i32_1 : i32, i32, i32, i32
  }
}

</mosaic_0001>

<llo_original>
// kernel: tpu_custom_call.1
$region0: #{tpu_custom_call.1}
  #allocation0 [shape = 'u32[]', space=smem, size = 0x4, offset = 0x4, fixed_abs, tag = 'smem constant byte address 0x4 - core index']
  #allocation1 [shape = 'u32[144,128]{1,0:T(1,128)}', space=vmem, size = 0x12000, scoped, tag = 'internal scratch']
  #allocation2 [shape = 'f32[18,18,128]{2,1,0:T(8,128)}', space=vmem, size = 0x36000, scoped, tag = 'scratch operand']
  #allocation3 [shape = 'bf16[256,1152]{1,0:T(16,128)(2,1)}', space=vmem, size = 0x90000, scoped, tag = 'scratch operand']
  #allocation4 [shape = 'f32[2,18,18]{2,1,0:T(8,128)}', space=vmem, size = 0x6000, scoped, tag = 'scratch operand']
  %s0 = inlined_call_operand.hbm [shape: bf16[2,16,16,128], index: 0, kind: input, shape index: {}]
  %s1 = inlined_call_operand.hbm [shape: bf16[128,128], index: 1, kind: input, shape index: {}]
  %s2 = inlined_call_operand.vmem [shape: f32[1,128], index: 2, kind: input, shape index: {}]
  %s3 = inlined_call_operand.vmem [shape: f32[1,128], index: 3, kind: input, shape index: {}]
  %s4 = inlined_call_operand.hbm [shape: bf16[1152,128], index: 4, kind: input, shape index: {}]
  %s5 = inlined_call_operand.vmem [shape: f32[1,128], index: 5, kind: input, shape index: {}]
  %s6 = inlined_call_operand.vmem [shape: f32[1,128], index: 6, kind: input, shape index: {}]
  %s7 = inlined_call_operand.hbm [shape: f32[128,128], index: 7, kind: input, shape index: {}]
  %s8 = inlined_call_operand.hbm [shape: f32[128,128], index: 8, kind: input, shape index: {}]
  %s9 = inlined_call_operand.vmem [shape: f32[18], index: 9, kind: input, shape index: {}]
  %s10 = inlined_call_operand.hbm [shape: f32[2,16,16,128], index: 10, kind: output, shape index: {}]
  %s11 = sld [smem:[#allocation0]]
  $region97: #{tpu_custom_call.1} parent=0
    _
  %s13 = ssub.s32 1, %s11
  %s14 = scalar_select 0, %s13, %s11
  $region1: #{tpu_custom_call.1} parent=0
    #allocation5 [shape = 'u8[131072]{0}', space=vmem, size = 0x20000, scoped, tag = 'input window, operand 0']
    #allocation6 [shape = 's32[2]{0}', space=sflag, size = 0x8, scoped, tag = 'scoped memory for tpu_custom_call.1']
    #allocation7 [shape = 's32[2]{0}', space=sflag, size = 0x8, scoped, tag = 'scoped memory for tpu_custom_call.1']
    #allocation8 [shape = 's32[2]{0}', space=sflag, size = 0x8, scoped, tag = 'scoped memory for tpu_custom_call.1']
    #allocation9 [shape = 'u8[32768]{0}', space=vmem, size = 0x8000, scoped, tag = 'input window, operand 1, single buffered']
    #allocation10 [shape = 's32[1]{0}', space=sflag, size = 0x4, scoped, tag = 'scoped memory for tpu_custom_call.1']
    #allocation11 [shape = 'u8[294912]{0}', space=vmem, size = 0x48000, scoped, tag = 'input window, operand 4, single buffered']
    #allocation12 [shape = 'u8[65536]{0}', space=vmem, size = 0x10000, scoped, tag = 'input window, operand 7, single buffered']
    #allocation13 [shape = 's32[1]{0}', space=sflag, size = 0x4, scoped, tag = 'scoped memory for tpu_custom_call.1']
    #allocation14 [shape = 'u8[65536]{0}', space=vmem, size = 0x10000, scoped, tag = 'input window, operand 8, single buffered']
    #allocation15 [shape = 'u8[512]{0}', space=smem, size = 0x200, scoped, tag = 'input window, operand 9, single buffered']
    #allocation16 [shape = 'u8[262144]{0}', space=vmem, size = 0x40000, scoped, tag = 'output window, operand 0']
    %15 = vsyncpa [#allocation6], 0
    %s16 = scalar_lea.sflag [#allocation6], 1
    %17 = vsyncpa %s16, 0
    %18 = vsyncpa [#allocation10], 0
    %19 = vsyncpa [#allocation13], 0
    %20 = vsyncpa [#allocation8], 0
    %21 = vsyncpa [#allocation7], 0
    %s22 = scalar_lea.sflag [#allocation7], 1
    %23 = vsyncpa %s22, 0
    loop: start=0, step=1, limit=4
    $region2: #{tpu_custom_call.1} parent=1 // loop_pre_header
      _
    $region3: #{tpu_custom_call.1} parent=1 // loop_header
      %s25 = sphi 0, %s29
      %p26 = scmp.ge.s32.totalorder %s25, 4
      %s35 = sphi 0, %s37
      %s38 = sphi 0, %s35
      %s39 = sphi 0, %s38
      %s55 = sphi 0, %s39
      %s59 = sphi 0, %s59
      %s61 = sphi 0, %s59
      %s62 = sphi 0, %s61
      %s76 = sphi 0, %s62
      %s80 = sphi 0, %s80
      %s82 = sphi 0, %s80
      %s83 = sphi 0, %s82
      %s97 = sphi 0, %s83
      %s101 = sphi 0, %s101
      %s103 = sphi 0, %s101
      %s104 = sphi 0, %s103
      %s118 = sphi 0, %s104
      %s122 = sphi 0, %s122
      %s124 = sphi 0, %s122
      %s125 = sphi 0, %s124
      %s139 = sphi 0, %s125
      %s143 = sphi 0, %s143
      %s145 = sphi 0, %s143
      %s146 = sphi 0, %s145
      %s160 = sphi 0, %s146
      %s164 = sphi 0, %s164
      %s166 = sphi 0, %s164
      %s167 = sphi 0, %s166
      %s181 = sphi 0, %s167
      %s185 = sphi 0, %s185
      %s187 = sphi 0, %s185
      %s188 = sphi 0, %s187
      %s202 = sphi 0, %s188
      %s206 = sphi 0, %s206
      %s208 = sphi 0, %s206
      %s209 = sphi 0, %s208
      %s223 = sphi 0, %s209
      %s227 = sphi 0, %s227
      %s229 = sphi 0, %s227
      %s230 = sphi 0, %s229
      %s244 = sphi 0, %s230
      %s250 = sphi 0, %s252
      %s253 = sphi 0, %s250
      %s254 = sphi 0, %s253
      %s270 = sphi 0, %s254
    $region4: #{tpu_custom_call.1} parent=1 // loop_header_branch
      %28 = sbr.rel (%p26) target = $region8
    $region5: #{tpu_custom_call.1} parent=1 // loop_body
      %s30 = ssub.s32 %s25, 1
      %s31 = ssub.s32 %s25, 2
      %s32 = sadd.s32 %s25, 1
      %s33 = ssub.s32 %s25, %s32
      %p34 = scmp.eq.s32.totalorder %s33, 0
      %s36 = sadd.s32 %s35, 1
      %s37 = scalar_select %p34, %s35, %s36
      %p40 = pneg %p34
      %p41 = scmp.eq.s32.totalorder %s25, 1
      %p42 = por %p40, %p41
      %p43 = scmp.ne.s32.totalorder %s35, %s38
      %p44 = scmp.eq.s32.totalorder %s25, 0
      %p45 = por %p43, %p44
      %p46 = scmp.ne.s32.totalorder %s35, %s38
      %p47 = scmp.eq.s32.totalorder %s30, 1
      %p48 = por %p46, %p47
      %p49 = scmp.ne.s32.totalorder %s38, %s39
      %p50 = scmp.eq.s32.totalorder %s30, 0
      %p51 = por %p49, %p50
      %p52 = scmp.ne.s32.totalorder %s38, %s39
      %p53 = scmp.eq.s32.totalorder %s31, 1
      %p54 = por %p52, %p53
      %p56 = scmp.ne.s32.totalorder %s39, %s55
      %p57 = scmp.eq.s32.totalorder %s31, 0
      %p58 = por %p56, %p57
      %s60 = sadd.s32 %s59, 1
      %p63 = scmp.eq.s32.totalorder %s25, 1
      %p64 = scmp.ne.s32.totalorder %s59, %s61
      %p65 = scmp.eq.s32.totalorder %s25, 0
      %p66 = por %p64, %p65
      %p67 = scmp.ne.s32.totalorder %s59, %s61
      %p68 = scmp.eq.s32.totalorder %s30, 1
      %p69 = por %p67, %p68
      %p70 = scmp.ne.s32.totalorder %s61, %s62
      %p71 = scmp.eq.s32.totalorder %s30, 0
      %p72 = por %p70, %p71
      %p73 = scmp.ne.s32.totalorder %s61, %s62
      %p74 = scmp.eq.s32.totalorder %s31, 1
      %p75 = por %p73, %p74
      %p77 = scmp.ne.s32.totalorder %s62, %s76
      %p78 = scmp.eq.s32.totalorder %s31, 0
      %p79 = por %p77, %p78
      %s81 = sadd.s32 %s80, 1
      %p84 = scmp.eq.s32.totalorder %s25, 1
      %p85 = scmp.ne.s32.totalorder %s80, %s82
      %p86 = scmp.eq.s32.totalorder %s25, 0
      %p87 = por %p85, %p86
      %p88 = scmp.ne.s32.totalorder %s80, %s82
      %p89 = scmp.eq.s32.totalorder %s30, 1
      %p90 = por %p88, %p89
      %p91 = scmp.ne.s32.totalorder %s82, %s83
      %p92 = scmp.eq.s32.totalorder %s30, 0
      %p93 = por %p91, %p92
      %p94 = scmp.ne.s32.totalorder %s82, %s83
      %p95 = scmp.eq.s32.totalorder %s31, 1
      %p96 = por %p94, %p95
      %p98 = scmp.ne.s32.totalorder %s83, %s97
      %p99 = scmp.eq.s32.totalorder %s31, 0
      %p100 = por %p98, %p99
      %s102 = sadd.s32 %s101, 1
      %p105 = scmp.eq.s32.totalorder %s25, 1
      %p106 = scmp.ne.s32.totalorder %s101, %s103
      %p107 = scmp.eq.s32.totalorder %s25, 0
      %p108 = por %p106, %p107
      %p109 = scmp.ne.s32.totalorder %s101, %s103
      %p110 = scmp.eq.s32.totalorder %s30, 1
      %p111 = por %p109, %p110
      %p112 = scmp.ne.s32.totalorder %s103, %s104
      %p113 = scmp.eq.s32.totalorder %s30, 0
      %p114 = por %p112, %p113
      %p115 = scmp.ne.s32.totalorder %s103, %s104
      %p116 = scmp.eq.s32.totalorder %s31, 1
      %p117 = por %p115, %p116
      %p119 = scmp.ne.s32.totalorder %s104, %s118
      %p120 = scmp.eq.s32.totalorder %s31, 0
      %p121 = por %p119, %p120
      %s123 = sadd.s32 %s122, 1
      %p126 = scmp.eq.s32.totalorder %s25, 1
      %p127 = scmp.ne.s32.totalorder %s122, %s124
      %p128 = scmp.eq.s32.totalorder %s25, 0
      %p129 = por %p127, %p128
      %p130 = scmp.ne.s32.totalorder %s122, %s124
      %p131 = scmp.eq.s32.totalorder %s30, 1
      %p132 = por %p130, %p131
      %p133 = scmp.ne.s32.totalorder %s124, %s125
      %p134 = scmp.eq.s32.totalorder %s30, 0
      %p135 = por %p133, %p134
      %p136 = scmp.ne.s32.totalorder %s124, %s125
      %p137 = scmp.eq.s32.totalorder %s31, 1
      %p138 = por %p136, %p137
      %p140 = scmp.ne.s32.totalorder %s125, %s139
      %p141 = scmp.eq.s32.totalorder %s31, 0
      %p142 = por %p140, %p141
      %s144 = sadd.s32 %s143, 1
      %p147 = scmp.eq.s32.totalorder %s25, 1
      %p148 = scmp.ne.s32.totalorder %s143, %s145
      %p149 = scmp.eq.s32.totalorder %s25, 0
      %p150 = por %p148, %p149
      %p151 = scmp.ne.s32.totalorder %s143, %s145
      %p152 = scmp.eq.s32.totalorder %s30, 1
      %p153 = por %p151, %p152
      %p154 = scmp.ne.s32.totalorder %s145, %s146
      %p155 = scmp.eq.s32.totalorder %s30, 0
      %p156 = por %p154, %p155
      %p157 = scmp.ne.s32.totalorder %s145, %s146
      %p158 = scmp.eq.s32.totalorder %s31, 1
      %p159 = por %p157, %p158
      %p161 = scmp.ne.s32.totalorder %s146, %s160
      %p162 = scmp.eq.s32.totalorder %s31, 0
      %p163 = por %p161, %p162
      %s165 = sadd.s32 %s164, 1
      %p168 = scmp.eq.s32.totalorder %s25, 1
      %p169 = scmp.ne.s32.totalorder %s164, %s166
      %p170 = scmp.eq.s32.totalorder %s25, 0
      %p171 = por %p169, %p170
      %p172 = scmp.ne.s32.totalorder %s164, %s166
      %p173 = scmp.eq.s32.totalorder %s30, 1
      %p174 = por %p172, %p173
      %p175 = scmp.ne.s32.totalorder %s166, %s167
      %p176 = scmp.eq.s32.totalorder %s30, 0
      %p177 = por %p175, %p176
      %p178 = scmp.ne.s32.totalorder %s166, %s167
      %p179 = scmp.eq.s32.totalorder %s31, 1
      %p180 = por %p178, %p179
      %p182 = scmp.ne.s32.totalorder %s167, %s181
      %p183 = scmp.eq.s32.totalorder %s31, 0
      %p184 = por %p182, %p183
      %s186 = sadd.s32 %s185, 1
      %p189 = scmp.eq.s32.totalorder %s25, 1
      %p190 = scmp.ne.s32.totalorder %s185, %s187
      %p191 = scmp.eq.s32.totalorder %s25, 0
      %p192 = por %p190, %p191
      %p193 = scmp.ne.s32.totalorder %s185, %s187
      %p194 = scmp.eq.s32.totalorder %s30, 1
      %p195 = por %p193, %p194
      %p196 = scmp.ne.s32.totalorder %s187, %s188
      %p197 = scmp.eq.s32.totalorder %s30, 0
      %p198 = por %p196, %p197
      %p199 = scmp.ne.s32.totalorder %s187, %s188
      %p200 = scmp.eq.s32.totalorder %s31, 1
      %p201 = por %p199, %p200
      %p203 = scmp.ne.s32.totalorder %s188, %s202
      %p204 = scmp.eq.s32.totalorder %s31, 0
      %p205 = por %p203, %p204
      %s207 = sadd.s32 %s206, 1
      %p210 = scmp.eq.s32.totalorder %s25, 1
      %p211 = scmp.ne.s32.totalorder %s206, %s208
      %p212 = scmp.eq.s32.totalorder %s25, 0
      %p213 = por %p211, %p212
      %p214 = scmp.ne.s32.totalorder %s206, %s208
      %p215 = scmp.eq.s32.totalorder %s30, 1
      %p216 = por %p214, %p215
      %p217 = scmp.ne.s32.totalorder %s208, %s209
      %p218 = scmp.eq.s32.totalorder %s30, 0
      %p219 = por %p217, %p218
      %p220 = scmp.ne.s32.totalorder %s208, %s209
      %p221 = scmp.eq.s32.totalorder %s31, 1
      %p222 = por %p220, %p221
      %p224 = scmp.ne.s32.totalorder %s209, %s223
      %p225 = scmp.eq.s32.totalorder %s31, 0
      %p226 = por %p224, %p225
      %s228 = sadd.s32 %s227, 1
      %p231 = scmp.eq.s32.totalorder %s25, 1
      %p232 = scmp.ne.s32.totalorder %s227, %s229
      %p233 = scmp.eq.s32.totalorder %s25, 0
      %p234 = por %p232, %p233
      %p235 = scmp.ne.s32.totalorder %s227, %s229
      %p236 = scmp.eq.s32.totalorder %s30, 1
      %p237 = por %p235, %p236
      %p238 = scmp.ne.s32.totalorder %s229, %s230
      %p239 = scmp.eq.s32.totalorder %s30, 0
      %p240 = por %p238, %p239
      %p241 = scmp.ne.s32.totalorder %s229, %s230
      %p242 = scmp.eq.s32.totalorder %s31, 1
      %p243 = por %p241, %p242
      %p245 = scmp.ne.s32.totalorder %s230, %s244
      %p246 = scmp.eq.s32.totalorder %s31, 0
      %p247 = por %p245, %p246
      %s248 = ssub.s32 %s25, %s32
      %p249 = scmp.eq.s32.totalorder %s248, 0
      %s251 = sadd.s32 %s250, 1
      %s252 = scalar_select %p249, %s250, %s251
      %p255 = pneg %p249
      %p256 = scmp.eq.s32.totalorder %s25, 1
      %p257 = por %p255, %p256
      %p258 = scmp.ne.s32.totalorder %s250, %s253
      %p259 = scmp.eq.s32.totalorder %s25, 0
      %p260 = por %p258, %p259
      %p261 = scmp.ne.s32.totalorder %s250, %s253
      %p262 = scmp.eq.s32.totalorder %s30, 1
      %p263 = por %p261, %p262
      %p264 = scmp.ne.s32.totalorder %s253, %s254
      %p265 = scmp.eq.s32.totalorder %s30, 0
      %p266 = por %p264, %p265
      %p267 = scmp.ne.s32.totalorder %s253, %s254
      %p268 = scmp.eq.s32.totalorder %s31, 1
      %p269 = por %p267, %p268
      %p271 = scmp.ne.s32.totalorder %s254, %s270
      %p272 = scmp.eq.s32.totalorder %s31, 0
      %p273 = por %p271, %p272
      %p274 = scmp.le.s32.totalorder 1, %s25
      %p275 = scmp.lt.s32.totalorder %s25, 3
      %p276 = pnand %p274, %p275
      %p277 = pneg %p276
      // Predicated region
      $region9: #{tpu_custom_call.1} parent=5 // pred_check
        _
      $region10: #{tpu_custom_call.1} parent=5 // pred_check_branch
        %279 = sbr.rel (%p276) target = $region12
      $region11: #{tpu_custom_call.1} parent=5 // pred_region
        %s280 = ssub.s32 %s25, 1
        // Predicated region
        $region13: #{tpu_custom_call.1} parent=11 // pred_check
          %p281 = pneg %p72
        $region14: #{tpu_custom_call.1} parent=11 // pred_check_branch
          %283 = sbr.rel (%p281) target = $region16
        $region15: #{tpu_custom_call.1} parent=11 // pred_region
          %s285 = ssub.s32 1024, 1024
          %286 = vsyncadd [#allocation10], %s285
          %s287 = sshll.u32 [#allocation9], 4
          %s288 = int_to_ptr.vmem [resolvable:$true] %s287
          %293 = dma.hbm_to_vmem [thread:$0]  %s1, 1024, %s288, [#allocation10], 64, 64, 4
        $region16: #{tpu_custom_call.1} parent=11 // pred_fallthru
          _
        // Predicated region
        $region17: #{tpu_custom_call.1} parent=11 // pred_check
          %p294 = pneg %p93
        $region18: #{tpu_custom_call.1} parent=11 // pred_check_branch
          %296 = sbr.rel (%p294) target = $region20
        $region19: #{tpu_custom_call.1} parent=11 // pred_region
          _
        $region20: #{tpu_custom_call.1} parent=11 // pred_fallthru
          _
        // Predicated region
        $region21: #{tpu_custom_call.1} parent=11 // pred_check
          %p297 = pneg %p114
        $region22: #{tpu_custom_call.1} parent=11 // pred_check_branch
          %299 = sbr.rel (%p297) target = $region24
        $region23: #{tpu_custom_call.1} parent=11 // pred_region
          _
        $region24: #{tpu_custom_call.1} parent=11 // pred_fallthru
          _
        // Predicated region
        $region25: #{tpu_custom_call.1} parent=11 // pred_check
          %p300 = pneg %p135
        $region26: #{tpu_custom_call.1} parent=11 // pred_check_branch
          %302 = sbr.rel (%p300) target = $region28
        $region27: #{tpu_custom_call.1} parent=11 // pred_region
          %s304 = ssub.s32 9216, 9216
          %305 = vsyncadd [#allocation10], %s304
          %s306 = sshll.u32 [#allocation11], 4
          %s307 = int_to_ptr.vmem [resolvable:$true] %s306
          %312 = dma.hbm_to_vmem [thread:$0]  %s4, 9216, %s307, [#allocation10], 64, 64, 4
        $region28: #{tpu_custom_call.1} parent=11 // pred_fallthru
          _
        // Predicated region
        $region29: #{tpu_custom_call.1} parent=11 // pred_check
          %p313 = pneg %p156
        $region30: #{tpu_custom_call.1} parent=11 // pred_check_branch
          %315 = sbr.rel (%p313) target = $region32
        $region31: #{tpu_custom_call.1} parent=11 // pred_region
          _
        $region32: #{tpu_custom_call.1} parent=11 // pred_fallthru
          _
        // Predicated region
        $region33: #{tpu_custom_call.1} parent=11 // pred_check
          %p316 = pneg %p177
        $region34: #{tpu_custom_call.1} parent=11 // pred_check_branch
          %318 = sbr.rel (%p316) target = $region36
        $region35: #{tpu_custom_call.1} parent=11 // pred_region
          _
        $region36: #{tpu_custom_call.1} parent=11 // pred_fallthru
          _
        // Predicated region
        $region37: #{tpu_custom_call.1} parent=11 // pred_check
          %p319 = pneg %p198
        $region38: #{tpu_custom_call.1} parent=11 // pred_check_branch
          %321 = sbr.rel (%p319) target = $region40
        $region39: #{tpu_custom_call.1} parent=11 // pred_region
          %s323 = ssub.s32 2048, 2048
          %324 = vsyncadd [#allocation13], %s323
          %s325 = sshll.u32 [#allocation12], 4
          %s326 = int_to_ptr.vmem [resolvable:$true] %s325
          %331 = dma.hbm_to_vmem [thread:$0]  %s7, 2048, %s326, [#allocation13], 128, 128, 8
        $region40: #{tpu_custom_call.1} parent=11 // pred_fallthru
          _
        // Predicated region
        $region41: #{tpu_custom_call.1} parent=11 // pred_check
          %p332 = pneg %p219
        $region42: #{tpu_custom_call.1} parent=11 // pred_check_branch
          %334 = sbr.rel (%p332) target = $region44
        $region43: #{tpu_custom_call.1} parent=11 // pred_region
          %s336 = ssub.s32 2048, 2048
          %337 = vsyncadd [#allocation13], %s336
          %s338 = sshll.u32 [#allocation14], 4
          %s339 = int_to_ptr.vmem [resolvable:$true] %s338
          %344 = dma.hbm_to_vmem [thread:$0]  %s8, 2048, %s339, [#allocation13], 128, 128, 8
        $region44: #{tpu_custom_call.1} parent=11 // pred_fallthru
          _
        // Predicated region
        $region45: #{tpu_custom_call.1} parent=11 // pred_check
          %p345 = pneg %p240
        $region46: #{tpu_custom_call.1} parent=11 // pred_check_branch
          %347 = sbr.rel (%p345) target = $region48
        $region47: #{tpu_custom_call.1} parent=11 // pred_region
          %s349 = ssub.s32 16, 16
          %350 = vsyncadd [#allocation8], %s349
          %s352 = sshll.u32 %s9, 4
          %s353 = int_to_ptr.vmem [resolvable:$true] %s352
          %355 = dma.vmem_to_smem %s353, 16, [#allocation15], [#allocation8]
        $region48: #{tpu_custom_call.1} parent=11 // pred_fallthru
          _
      $region12: #{tpu_custom_call.1} parent=5 // pred_fallthru
        _
      %p356 = scmp.lt.s32.totalorder %s25, 2
      // Predicated region
      $region49: #{tpu_custom_call.1} parent=5 // pred_check
        %p357 = pneg %p356
      $region50: #{tpu_custom_call.1} parent=5 // pred_check_branch
        %359 = sbr.rel (%p357) target = $region52
      $region51: #{tpu_custom_call.1} parent=5 // pred_region
        // Predicated region
        $region53: #{tpu_custom_call.1} parent=51 // pred_check
          %p360 = pneg %p45
        $region54: #{tpu_custom_call.1} parent=51 // pred_check_branch
          %362 = sbr.rel (%p360) target = $region56
        $region55: #{tpu_custom_call.1} parent=51 // pred_region
          %s363 = sand.u32 %s35, 1
          %s364 = scalar_lea.sflag [#allocation6], %s363
          %s365 = sand.u32 %s35, 1
          %s366 = smul.addr %s365, 128
          %s367 = scalar_lea.vmem [#allocation5], %s366
          %s369 = ssub.s32 2048, 2048
          %370 = vsyncadd %s364, %s369
          %s371 = smul.addr %s25, 32
          %s372 = smul.addr %s371, 64
          %s373 = scalar_lea.hbm %s0, %s372
          %s374 = sshll.u32 %s367, 4
          %s375 = int_to_ptr.vmem [resolvable:$true] %s374
          %380 = dma.hbm_to_vmem [thread:$0]  %s373, 2048, %s375, %s364, 64, 64, 4
        $region56: #{tpu_custom_call.1} parent=51 // pred_fallthru
          _
      $region52: #{tpu_custom_call.1} parent=5 // pred_fallthru
        _
      %p381 = scmp.le.s32.totalorder 1, %s25
      %p382 = scmp.lt.s32.totalorder %s25, 3
      %p383 = pnand %p381, %p382
      %p384 = pneg %p383
      // Predicated region
      $region57: #{tpu_custom_call.1} parent=5 // pred_check
        _
      $region58: #{tpu_custom_call.1} parent=5 // pred_check_branch
        %386 = sbr.rel (%p383) target = $region60
      $region59: #{tpu_custom_call.1} parent=5 // pred_region
        %s387 = ssub.s32 %s25, 1
        %s388 = sand.u32 %s38, 1
        %s389 = scalar_lea.sflag [#allocation6], %s388
        %s390 = sand.u32 %s38, 1
        %s391 = smul.addr %s390, 128
        %s392 = scalar_lea.vmem [#allocation5], %s391
        // Predicated region
        $region61: #{tpu_custom_call.1} parent=59 // pred_check
          %p393 = pneg %p51
        $region62: #{tpu_custom_call.1} parent=59 // pred_check_branch
          %395 = sbr.rel (%p393) target = $region64
        $region63: #{tpu_custom_call.1} parent=59 // pred_region
          %396 = dma.done %s389, 2048
        $region64: #{tpu_custom_call.1} parent=59 // pred_fallthru
          _
        // Predicated region
        $region65: #{tpu_custom_call.1} parent=59 // pred_check
          %p397 = pneg %p72
        $region66: #{tpu_custom_call.1} parent=59 // pred_check_branch
          %399 = sbr.rel (%p397) target = $region68
        $region67: #{tpu_custom_call.1} parent=59 // pred_region
          %400 = dma.done [#allocation10], 1024
        $region68: #{tpu_custom_call.1} parent=59 // pred_fallthru
          _
        // Predicated region
        $region69: #{tpu_custom_call.1} parent=59 // pred_check
          %p401 = pneg %p135
        $region70: #{tpu_custom_call.1} parent=59 // pred_check_branch
          %403 = sbr.rel (%p401) target = $region72
        $region71: #{tpu_custom_call.1} parent=59 // pred_region
          %404 = dma.done [#allocation10], 9216
        $region72: #{tpu_custom_call.1} parent=59 // pred_fallthru
          _
        // Predicated region
        $region73: #{tpu_custom_call.1} parent=59 // pred_check
          %p405 = pneg %p198
        $region74: #{tpu_custom_call.1} parent=59 // pred_check_branch
          %407 = sbr.rel (%p405) target = $region76
        $region75: #{tpu_custom_call.1} parent=59 // pred_region
          %408 = dma.done [#allocation13], 2048
        $region76: #{tpu_custom_call.1} parent=59 // pred_fallthru
          _
        // Predicated region
        $region77: #{tpu_custom_call.1} parent=59 // pred_check
          %p409 = pneg %p219
        $region78: #{tpu_custom_call.1} parent=59 // pred_check_branch
          %411 = sbr.rel (%p409) target = $region80
        $region79: #{tpu_custom_call.1} parent=59 // pred_region
          %412 = dma.done [#allocation13], 2048
        $region80: #{tpu_custom_call.1} parent=59 // pred_fallthru
          _
        // Predicated region
        $region81: #{tpu_custom_call.1} parent=59 // pred_check
          %p413 = pneg %p240
        $region82: #{tpu_custom_call.1} parent=59 // pred_check_branch
          %415 = sbr.rel (%p413) target = $region84
        $region83: #{tpu_custom_call.1} parent=59 // pred_region
          %416 = dma.done [#allocation8], 16
        $region84: #{tpu_custom_call.1} parent=59 // pred_fallthru
          _
        %417 = sfence
        %s418 = sand.u32 %s38, 1
        %s419 = scalar_lea.sflag [#allocation6], %s418
        %s420 = sand.u32 %s38, 1
        %s421 = smul.addr %s420, 128
        %s422 = scalar_lea.vmem [#allocation5], %s421
        %p423 = pneg %p51
        %p424 = pneg %p48
        %p425 = pneg %p72
        %p426 = pneg %p69
        %p427 = pneg %p93
        %p428 = pneg %p90
        %p429 = pneg %p114
        %p430 = pneg %p111
        %p431 = pneg %p135
        %p432 = pneg %p132
        %p433 = pneg %p156
        %p434 = pneg %p153
        %p435 = pneg %p177
        %p436 = pneg %p174
        %p437 = pneg %p198
        %p438 = pneg %p195
        %p439 = pneg %p219
        %p440 = pneg %p216
        %p441 = pneg %p240
        %p442 = pneg %p237
        %p443 = pneg %p266
        %p444 = pneg %p263
        %s445 = sand.u32 %s253, 1
        %s446 = scalar_lea.sflag [#allocation7], %s445
        %s447 = sand.u32 %s253, 1
        %s448 = smul.addr %s447, 256
        %s449 = scalar_lea.vmem [#allocation16], %s448
        %v451 = vld [vmem:[%s392] sm:$0xf]
        %v452 = vld [vmem:[%s392 + $0x4] sm:$0xf]
        %v453 = vld [vmem:[%s392 + $0x8] sm:$0xf]
        %v454 = vld [vmem:[%s392 + $0xc] sm:$0xf]
        %v455 = vld [vmem:[%s392 + $0x10] sm:$0xf]
        %v456 = vld [vmem:[%s392 + $0x14] sm:$0xf]
        %v457 = vld [vmem:[%s392 + $0x18] sm:$0xf]
        %v458 = vld [vmem:[%s392 + $0x1c] sm:$0xf]
        %v459 = vld [vmem:[%s392 + $0x20] sm:$0xf]
        %v460 = vld [vmem:[%s392 + $0x24] sm:$0xf]
        %v461 = vld [vmem:[%s392 + $0x28] sm:$0xf]
        %v462 = vld [vmem:[%s392 + $0x2c] sm:$0xf]
        %v463 = vld [vmem:[%s392 + $0x30] sm:$0xf]
        %v464 = vld [vmem:[%s392 + $0x34] sm:$0xf]
        %v465 = vld [vmem:[%s392 + $0x38] sm:$0xf]
        %v466 = vld [vmem:[%s392 + $0x3c] sm:$0xf]
        %v467 = vld [vmem:[%s392 + $0x40] sm:$0xf]
        %v468 = vld [vmem:[%s392 + $0x44] sm:$0xf]
        %v469 = vld [vmem:[%s392 + $0x48] sm:$0xf]
        %v470 = vld [vmem:[%s392 + $0x4c] sm:$0xf]
        %v471 = vld [vmem:[%s392 + $0x50] sm:$0xf]
        %v472 = vld [vmem:[%s392 + $0x54] sm:$0xf]
        %v473 = vld [vmem:[%s392 + $0x58] sm:$0xf]
        %v474 = vld [vmem:[%s392 + $0x5c] sm:$0xf]
        %v475 = vld [vmem:[%s392 + $0x60] sm:$0xf]
        %v476 = vld [vmem:[%s392 + $0x64] sm:$0xf]
        %v477 = vld [vmem:[%s392 + $0x68] sm:$0xf]
        %v478 = vld [vmem:[%s392 + $0x6c] sm:$0xf]
        %v479 = vld [vmem:[%s392 + $0x70] sm:$0xf]
        %v480 = vld [vmem:[%s392 + $0x74] sm:$0xf]
        %v481 = vld [vmem:[%s392 + $0x78] sm:$0xf]
        %v482 = vld [vmem:[%s392 + $0x7c] sm:$0xf]
        %v483 = vld [vmem:[#allocation9] sm:$0xf]
        %v484 = vld [vmem:[#allocation9 + $0x4] sm:$0xf]
        %v485 = vld [vmem:[#allocation9 + $0x8] sm:$0xf]
        %v486 = vld [vmem:[#allocation9 + $0xc] sm:$0xf]
        %v487 = vld [vmem:[#allocation9 + $0x10] sm:$0xf]
        %v488 = vld [vmem:[#allocation9 + $0x14] sm:$0xf]
        %v489 = vld [vmem:[#allocation9 + $0x18] sm:$0xf]
        %v490 = vld [vmem:[#allocation9 + $0x1c] sm:$0xf]
        %v491 = vld [vmem:[#allocation9 + $0x20] sm:$0xf]
        %v492 = vld [vmem:[#allocation9 + $0x24] sm:$0xf]
        %v493 = vld [vmem:[#allocation9 + $0x28] sm:$0xf]
        %v494 = vld [vmem:[#allocation9 + $0x2c] sm:$0xf]
        %v495 = vld [vmem:[#allocation9 + $0x30] sm:$0xf]
        %v496 = vld [vmem:[#allocation9 + $0x34] sm:$0xf]
        %v497 = vld [vmem:[#allocation9 + $0x38] sm:$0xf]
        %v498 = vld [vmem:[#allocation9 + $0x3c] sm:$0xf]
        %v531 = vunpack.c.l.b16 %v451
        %v532 = vunpack.c.l.b16 %v452
        %v533 = vunpack.c.l.b16 %v453
        %v534 = vunpack.c.l.b16 %v454
        %v535 = vunpack.c.l.b16 %v455
        %v536 = vunpack.c.l.b16 %v456
        %v537 = vunpack.c.l.b16 %v457
        %v538 = vunpack.c.l.b16 %v458
        %v539 = vunpack.c.l.b16 %v459
        %v540 = vunpack.c.l.b16 %v460
        %v541 = vunpack.c.l.b16 %v461
        %v542 = vunpack.c.l.b16 %v462
        %v543 = vunpack.c.l.b16 %v463
        %v544 = vunpack.c.l.b16 %v464
        %v545 = vunpack.c.l.b16 %v465
        %v546 = vunpack.c.l.b16 %v466
        %v547 = vunpack.c.l.b16 %v467
        %v548 = vunpack.c.l.b16 %v468
        %v549 = vunpack.c.l.b16 %v469
        %v550 = vunpack.c.l.b16 %v470
        %v551 = vunpack.c.l.b16 %v471
        %v552 = vunpack.c.l.b16 %v472
        %v553 = vunpack.c.l.b16 %v473
        %v554 = vunpack.c.l.b16 %v474
        %v555 = vunpack.c.l.b16 %v475
        %v556 = vunpack.c.l.b16 %v476
        %v557 = vunpack.c.l.b16 %v477
        %v558 = vunpack.c.l.b16 %v478
        %v559 = vunpack.c.l.b16 %v479
        %v560 = vunpack.c.l.b16 %v480
        %v561 = vunpack.c.l.b16 %v481
        %v562 = vunpack.c.l.b16 %v482
        %v563 = vpack.c.b16 %v532, %v531
        %v564 = vpack.c.b16 %v534, %v533
        %v565 = vpack.c.b16 %v536, %v535
        %v566 = vpack.c.b16 %v538, %v537
        %v567 = vpack.c.b16 %v540, %v539
        %v568 = vpack.c.b16 %v542, %v541
        %v569 = vpack.c.b16 %v544, %v543
        %v570 = vpack.c.b16 %v546, %v545
        %v571 = vpack.c.b16 %v548, %v547
        %v572 = vpack.c.b16 %v550, %v549
        %v573 = vpack.c.b16 %v552, %v551
        %v574 = vpack.c.b16 %v554, %v553
        %v575 = vpack.c.b16 %v556, %v555
        %v576 = vpack.c.b16 %v558, %v557
        %v577 = vpack.c.b16 %v560, %v559
        %v578 = vpack.c.b16 %v562, %v561
        %v611 = vunpack.c.l.b16 %v483
        %v612 = vunpack.c.l.b16 %v484
        %v613 = vunpack.c.l.b16 %v485
        %v614 = vunpack.c.l.b16 %v486
        %v615 = vunpack.c.l.b16 %v487
        %v616 = vunpack.c.l.b16 %v488
        %v617 = vunpack.c.l.b16 %v489
        %v618 = vunpack.c.l.b16 %v490
        %v619 = vunpack.c.l.b16 %v491
        %v620 = vunpack.c.l.b16 %v492
        %v621 = vunpack.c.l.b16 %v493
        %v622 = vunpack.c.l.b16 %v494
        %v623 = vunpack.c.l.b16 %v495
        %v624 = vunpack.c.l.b16 %v496
        %v625 = vunpack.c.l.b16 %v497
        %v626 = vunpack.c.l.b16 %v498
        %v627 = vpack.c.b16 %v612, %v611
        %v628 = vpack.c.b16 %v614, %v613
        %v629 = vpack.c.b16 %v616, %v615
        %v630 = vpack.c.b16 %v618, %v617
        %v631 = vpack.c.b16 %v620, %v619
        %v632 = vpack.c.b16 %v622, %v621
        %v633 = vpack.c.b16 %v624, %v623
        %v634 = vpack.c.b16 %v626, %v625
        %643 = vmatprep.subr.bf16.mxu0 0
        %644 = vmatpush1.bf16.msra.mxu0 %v627
        %645 = vmatprep.subr.bf16.mxu0 0
        %646 = vmatpush1.bf16.msra.mxu0 %v628
        %647 = vmatprep.subr.bf16.mxu0 0
        %648 = vmatpush1.bf16.msra.mxu0 %v629
        %649 = vmatprep.subr.bf16.mxu0 0
        %650 = vmatpush1.bf16.msra.mxu0 %v630
        %651 = vmatprep.subr.bf16.mxu0 0
        %652 = vmatpush1.bf16.msra.mxu0 %v631
        %653 = vmatprep.subr.bf16.mxu0 0
        %654 = vmatpush1.bf16.msra.mxu0 %v632
        %655 = vmatprep.subr.bf16.mxu0 0
        %656 = vmatpush1.bf16.msra.mxu0 %v633
        %657 = vmatprep.subr.bf16.mxu0 0
        %658 = vmatpush1.bf16.msra.mxu0 %v634
        %659 = vmatprep.subr.bf16.mxu0 0
        %660 = vmatpush1.bf16.msra.mxu0 0
        %661 = vmatprep.subr.bf16.mxu0 0
        %662 = vmatpush1.bf16.msra.mxu0 0
        %663 = vmatprep.subr.bf16.mxu0 0
        %664 = vmatpush1.bf16.msra.mxu0 0
        %665 = vmatprep.subr.bf16.mxu0 0
        %666 = vmatpush1.bf16.msra.mxu0 0
        %667 = vmatprep.subr.bf16.mxu0 0
        %668 = vmatpush1.bf16.msra.mxu0 0
        %669 = vmatprep.subr.bf16.mxu0 0
        %670 = vmatpush1.bf16.msra.mxu0 0
        %671 = vmatprep.subr.bf16.mxu0 0
        %672 = vmatpush1.bf16.msra.mxu0 0
        %673 = vmatprep.subr.bf16.mxu0 0
        %674 = vmatpush1.bf16.msra.mxu0 0
        %675 = vmatprep.mubr.bf16.mxu0 0
        %676 = vmatmul.mubr.bf16.gmra.mrb[0].mxu0 %v563
        %v677 = vpop.f32.mrb[0].mxu0
        %v678 = vadd.f32 0.0, %v677
        %v679 = vpop.f32.mrb[0].mxu0
        %v680 = vpop.f32.mrb[0].mxu0
        %v681 = vadd.f32 0.0, %v680
        %v682 = vpop.f32.mrb[0].mxu0
        %683 = vmatprep.mubr.bf16.mxu0 0
        %684 = vmatmul.mubr.bf16.gmra.mrb[0].mxu0 %v564
        %v685 = vpop.f32.mrb[0].mxu0
        %v686 = vadd.f32 0.0, %v685
        %v687 = vpop.f32.mrb[0].mxu0
        %v688 = vpop.f32.mrb[0].mxu0
        %v689 = vadd.f32 0.0, %v688
        %v690 = vpop.f32.mrb[0].mxu0
        %691 = vmatprep.mubr.bf16.mxu0 0
        %692 = vmatmul.mubr.bf16.gmra.mrb[0].mxu0 %v565
        %v693 = vpop.f32.mrb[0].mxu0
        %v694 = vadd.f32 0.0, %v693
        %v695 = vpop.f32.mrb[0].mxu0
        %v696 = vpop.f32.mrb[0].mxu0
        %v697 = vadd.f32 0.0, %v696
        %v698 = vpop.f32.mrb[0].mxu0
        %699 = vmatprep.mubr.bf16.mxu0 0
        %700 = vmatmul.mubr.bf16.gmra.mrb[0].mxu0 %v566
        %v701 = vpop.f32.mrb[0].mxu0
        %v702 = vadd.f32 0.0, %v701
        %v703 = vpop.f32.mrb[0].mxu0
        %v704 = vpop.f32.mrb[0].mxu0
        %v705 = vadd.f32 0.0, %v704
        %v706 = vpop.f32.mrb[0].mxu0
        %707 = vmatprep.mubr.bf16.mxu0 0
        %708 = vmatmul.mubr.bf16.gmra.mrb[0].mxu0 %v567
        %v709 = vpop.f32.mrb[0].mxu0
        %v710 = vadd.f32 0.0, %v709
        %v711 = vpop.f32.mrb[0].mxu0
        %v712 = vpop.f32.mrb[0].mxu0
        %v713 = vadd.f32 0.0, %v712
        %v714 = vpop.f32.mrb[0].mxu0
        %715 = vmatprep.mubr.bf16.mxu0 0
        %716 = vmatmul.mubr.bf16.gmra.mrb[0].mxu0 %v568
        %v717 = vpop.f32.mrb[0].mxu0
        %v718 = vadd.f32 0.0, %v717
        %v719 = vpop.f32.mrb[0].mxu0
        %v720 = vpop.f32.mrb[0].mxu0
        %v721 = vadd.f32 0.0, %v720
        %v722 = vpop.f32.mrb[0].mxu0
        %723 = vmatprep.mubr.bf16.mxu0 0
        %724 = vmatmul.mubr.bf16.gmra.mrb[0].mxu0 %v569
        %v725 = vpop.f32.mrb[0].mxu0
        %v726 = vadd.f32 0.0, %v725
        %v727 = vpop.f32.mrb[0].mxu0
        %v728 = vpop.f32.mrb[0].mxu0
        %v729 = vadd.f32 0.0, %v728
        %v730 = vpop.f32.mrb[0].mxu0
        %731 = vmatprep.mubr.bf16.mxu0 0
        %732 = vmatmul.mubr.bf16.gmra.mrb[0].mxu0 %v570
        %v733 = vpop.f32.mrb[0].mxu0
        %v734 = vadd.f32 0.0, %v733
        %v735 = vpop.f32.mrb[0].mxu0
        %v736 = vpop.f32.mrb[0].mxu0
        %v737 = vadd.f32 0.0, %v736
        %v738 = vpop.f32.mrb[0].mxu0
        %739 = vmatprep.mubr.bf16.mxu0 0
        %740 = vmatmul.mubr.bf16.gmra.mrb[0].mxu0 %v571
        %v741 = vpop.f32.mrb[0].mxu0
        %v742 = vadd.f32 0.0, %v741
        %v743 = vpop.f32.mrb[0].mxu0
        %v744 = vpop.f32.mrb[0].mxu0
        %v745 = vadd.f32 0.0, %v744
        %v746 = vpop.f32.mrb[0].mxu0
        %747 = vmatprep.mubr.bf16.mxu0 0
        %748 = vmatmul.mubr.bf16.gmra.mrb[0].mxu0 %v572
        %v749 = vpop.f32.mrb[0].mxu0
        %v750 = vadd.f32 0.0, %v749
        %v751 = vpop.f32.mrb[0].mxu0
        %v752 = vpop.f32.mrb[0].mxu0
        %v753 = vadd.f32 0.0, %v752
        %v754 = vpop.f32.mrb[0].mxu0
        %755 = vmatprep.mubr.bf16.mxu0 0
        %756 = vmatmul.mubr.bf16.gmra.mrb[0].mxu0 %v573
        %v757 = vpop.f32.mrb[0].mxu0
        %v758 = vadd.f32 0.0, %v757
        %v759 = vpop.f32.mrb[0].mxu0
        %v760 = vpop.f32.mrb[0].mxu0
        %v761 = vadd.f32 0.0, %v760
        %v762 = vpop.f32.mrb[0].mxu0
        %763 = vmatprep.mubr.bf16.mxu0 0
        %764 = vmatmul.mubr.bf16.gmra.mrb[0].mxu0 %v574
        %v765 = vpop.f32.mrb[0].mxu0
        %v766 = vadd.f32 0.0, %v765
        %v767 = vpop.f32.mrb[0].mxu0
        %v768 = vpop.f32.mrb[0].mxu0
        %v769 = vadd.f32 0.0, %v768
        %v770 = vpop.f32.mrb[0].mxu0
        %771 = vmatprep.mubr.bf16.mxu0 0
        %772 = vmatmul.mubr.bf16.gmra.mrb[0].mxu0 %v575
        %v773 = vpop.f32.mrb[0].mxu0
        %v774 = vadd.f32 0.0, %v773
        %v775 = vpop.f32.mrb[0].mxu0
        %v776 = vpop.f32.mrb[0].mxu0
        %v777 = vadd.f32 0.0, %v776
        %v778 = vpop.f32.mrb[0].mxu0
        %779 = vmatprep.mubr.bf16.mxu0 0
        %780 = vmatmul.mubr.bf16.gmra.mrb[0].mxu0 %v576
        %v781 = vpop.f32.mrb[0].mxu0
        %v782 = vadd.f32 0.0, %v781
        %v783 = vpop.f32.mrb[0].mxu0
        %v784 = vpop.f32.mrb[0].mxu0
        %v785 = vadd.f32 0.0, %v784
        %v786 = vpop.f32.mrb[0].mxu0
        %787 = vmatprep.mubr.bf16.mxu0 0
        %788 = vmatmul.mubr.bf16.gmra.mrb[0].mxu0 %v577
        %v789 = vpop.f32.mrb[0].mxu0
        %v790 = vadd.f32 0.0, %v789
        %v791 = vpop.f32.mrb[0].mxu0
        %v792 = vpop.f32.mrb[0].mxu0
        %v793 = vadd.f32 0.0, %v792
        %v794 = vpop.f32.mrb[0].mxu0
        %795 = vmatprep.mubr.bf16.mxu0 0
        %796 = vmatmul.mubr.bf16.gmra.mrb[0].mxu0 %v578
        %v797 = vpop.f32.mrb[0].mxu0
        %v798 = vadd.f32 0.0, %v797
        %v799 = vpop.f32.mrb[0].mxu0
        %v800 = vpop.f32.mrb[0].mxu0
        %v801 = vadd.f32 0.0, %v800
        %v802 = vpop.f32.mrb[0].mxu0
        %803 = vdwg.mxu0
        %v804 = vld [vmem:[%s2] sm:$0x1]
        %v806 = vlaneseq
        %v807 = vshrl.u32 %v806, 7
        %v808 = vsub.s32 0, %v807
        %v809 = vrot.slane %v804, %v808
        %v811 = vmul.f32 %v678, %v809
        %v812 = vmul.f32 %v681, %v809
        %v813 = vmul.f32 %v686, %v809
        %v814 = vmul.f32 %v689, %v809
        %v815 = vmul.f32 %v694, %v809
        %v816 = vmul.f32 %v697, %v809
        %v817 = vmul.f32 %v702, %v809
        %v818 = vmul.f32 %v705, %v809
        %v819 = vmul.f32 %v710, %v809
        %v820 = vmul.f32 %v713, %v809
        %v821 = vmul.f32 %v718, %v809
        %v822 = vmul.f32 %v721, %v809
        %v823 = vmul.f32 %v726, %v809
        %v824 = vmul.f32 %v729, %v809
        %v825 = vmul.f32 %v734, %v809
        %v826 = vmul.f32 %v737, %v809
        %v827 = vmul.f32 %v742, %v809
        %v828 = vmul.f32 %v745, %v809
        %v829 = vmul.f32 %v750, %v809
        %v830 = vmul.f32 %v753, %v809
        %v831 = vmul.f32 %v758, %v809
        %v832 = vmul.f32 %v761, %v809
        %v833 = vmul.f32 %v766, %v809
        %v834 = vmul.f32 %v769, %v809
        %v835 = vmul.f32 %v774, %v809
        %v836 = vmul.f32 %v777, %v809
        %v837 = vmul.f32 %v782, %v809
        %v838 = vmul.f32 %v785, %v809
        %v839 = vmul.f32 %v790, %v809
        %v840 = vmul.f32 %v793, %v809
        %v841 = vmul.f32 %v798, %v809
        %v842 = vmul.f32 %v801, %v809
        %v843 = vld [vmem:[%s3] sm:$0x1]
        %v845 = vlaneseq
        %v846 = vshrl.u32 %v845, 7
        %v847 = vsub.s32 0, %v846
        %v848 = vrot.slane %v843, %v847
        %v850 = vadd.f32 %v811, %v848
        %v851 = vadd.f32 %v812, %v848
        %v852 = vadd.f32 %v813, %v848
        %v853 = vadd.f32 %v814, %v848
        %v854 = vadd.f32 %v815, %v848
        %v855 = vadd.f32 %v816, %v848
        %v856 = vadd.f32 %v817, %v848
        %v857 = vadd.f32 %v818, %v848
        %v858 = vadd.f32 %v819, %v848
        %v859 = vadd.f32 %v820, %v848
        %v860 = vadd.f32 %v821, %v848
        %v861 = vadd.f32 %v822, %v848
        %v862 = vadd.f32 %v823, %v848
        %v863 = vadd.f32 %v824, %v848
        %v864 = vadd.f32 %v825, %v848
        %v865 = vadd.f32 %v826, %v848
        %v866 = vadd.f32 %v827, %v848
        %v867 = vadd.f32 %v828, %v848
        %v868 = vadd.f32 %v829, %v848
        %v869 = vadd.f32 %v830, %v848
        %v870 = vadd.f32 %v831, %v848
        %v871 = vadd.f32 %v832, %v848
        %v872 = vadd.f32 %v833, %v848
        %v873 = vadd.f32 %v834, %v848
        %v874 = vadd.f32 %v835, %v848
        %v875 = vadd.f32 %v836, %v848
        %v876 = vadd.f32 %v837, %v848
        %v877 = vadd.f32 %v838, %v848
        %v878 = vadd.f32 %v839, %v848
        %v879 = vadd.f32 %v840, %v848
        %v880 = vadd.f32 %v841, %v848
        %v881 = vadd.f32 %v842, %v848
        %v882 = vxor.u32 %v850, 2147483648
        %v883 = vxor.u32 %v851, 2147483648
        %v884 = vxor.u32 %v852, 2147483648
        %v885 = vxor.u32 %v853, 2147483648
        %v886 = vxor.u32 %v854, 2147483648
        %v887 = vxor.u32 %v855, 2147483648
        %v888 = vxor.u32 %v856, 2147483648
        %v889 = vxor.u32 %v857, 2147483648
        %v890 = vxor.u32 %v858, 2147483648
        %v891 = vxor.u32 %v859, 2147483648
        %v892 = vxor.u32 %v860, 2147483648
        %v893 = vxor.u32 %v861, 2147483648
        %v894 = vxor.u32 %v862, 2147483648
        %v895 = vxor.u32 %v863, 2147483648
        %v896 = vxor.u32 %v864, 2147483648
        %v897 = vxor.u32 %v865, 2147483648
        %v898 = vxor.u32 %v866, 2147483648
        %v899 = vxor.u32 %v867, 2147483648
        %v900 = vxor.u32 %v868, 2147483648
        %v901 = vxor.u32 %v869, 2147483648
        %v902 = vxor.u32 %v870, 2147483648
        %v903 = vxor.u32 %v871, 2147483648
        %v904 = vxor.u32 %v872, 2147483648
        %v905 = vxor.u32 %v873, 2147483648
        %v906 = vxor.u32 %v874, 2147483648
        %v907 = vxor.u32 %v875, 2147483648
        %v908 = vxor.u32 %v876, 2147483648
        %v909 = vxor.u32 %v877, 2147483648
        %v910 = vxor.u32 %v878, 2147483648
        %v911 = vxor.u32 %v879, 2147483648
        %v912 = vxor.u32 %v880, 2147483648
        %v913 = vxor.u32 %v881, 2147483648
        %v914 = vmul.f32 %v882, 1.442695
        %v915 = vpow.pop %v914
        %v916 = vmul.f32 %v883, 1.442695
        %v917 = vpow.pop %v916
        %v918 = vmul.f32 %v884, 1.442695
        %v919 = vpow.pop %v918
        %v920 = vmul.f32 %v885, 1.442695
        %v921 = vpow.pop %v920
        %v922 = vmul.f32 %v886, 1.442695
        %v923 = vpow.pop %v922
        %v924 = vmul.f32 %v887, 1.442695
        %v925 = vpow.pop %v924
        %v926 = vmul.f32 %v888, 1.442695
        %v927 = vpow.pop %v926
        %v928 = vmul.f32 %v889, 1.442695
        %v929 = vpow.pop %v928
        %v930 = vmul.f32 %v890, 1.442695
        %v931 = vpow.pop %v930
        %v932 = vmul.f32 %v891, 1.442695
        %v933 = vpow.pop %v932
        %v934 = vmul.f32 %v892, 1.442695
        %v935 = vpow.pop %v934
        %v936 = vmul.f32 %v893, 1.442695
        %v937 = vpow.pop %v936
        %v938 = vmul.f32 %v894, 1.442695
        %v939 = vpow.pop %v938
        %v940 = vmul.f32 %v895, 1.442695
        %v941 = vpow.pop %v940
        %v942 = vmul.f32 %v896, 1.442695
        %v943 = vpow.pop %v942
        %v944 = vmul.f32 %v897, 1.442695
        %v945 = vpow.pop %v944
        %v946 = vmul.f32 %v898, 1.442695
        %v947 = vpow.pop %v946
        %v948 = vmul.f32 %v899, 1.442695
        %v949 = vpow.pop %v948
        %v950 = vmul.f32 %v900, 1.442695
        %v951 = vpow.pop %v950
        %v952 = vmul.f32 %v901, 1.442695
        %v953 = vpow.pop %v952
        %v954 = vmul.f32 %v902, 1.442695
        %v955 = vpow.pop %v954
        %v956 = vmul.f32 %v903, 1.442695
        %v957 = vpow.pop %v956
        %v958 = vmul.f32 %v904, 1.442695
        %v959 = vpow.pop %v958
        %v960 = vmul.f32 %v905, 1.442695
        %v961 = vpow.pop %v960
        %v962 = vmul.f32 %v906, 1.442695
        %v963 = vpow.pop %v962
        %v964 = vmul.f32 %v907, 1.442695
        %v965 = vpow.pop %v964
        %v966 = vmul.f32 %v908, 1.442695
        %v967 = vpow.pop %v966
        %v968 = vmul.f32 %v909, 1.442695
        %v969 = vpow.pop %v968
        %v970 = vmul.f32 %v910, 1.442695
        %v971 = vpow.pop %v970
        %v972 = vmul.f32 %v911, 1.442695
        %v973 = vpow.pop %v972
        %v974 = vmul.f32 %v912, 1.442695
        %v975 = vpow.pop %v974
        %v976 = vmul.f32 %v913, 1.442695
        %v977 = vpow.pop %v976
        %v978 = vadd.f32 %v915, 1.0
        %v979 = vadd.f32 %v917, 1.0
        %v980 = vadd.f32 %v919, 1.0
        %v981 = vadd.f32 %v921, 1.0
        %v982 = vadd.f32 %v923, 1.0
        %v983 = vadd.f32 %v925, 1.0
        %v984 = vadd.f32 %v927, 1.0
        %v985 = vadd.f32 %v929, 1.0
        %v986 = vadd.f32 %v931, 1.0
        %v987 = vadd.f32 %v933, 1.0
        %v988 = vadd.f32 %v935, 1.0
        %v989 = vadd.f32 %v937, 1.0
        %v990 = vadd.f32 %v939, 1.0
        %v991 = vadd.f32 %v941, 1.0
        %v992 = vadd.f32 %v943, 1.0
        %v993 = vadd.f32 %v945, 1.0
        %v994 = vadd.f32 %v947, 1.0
        %v995 = vadd.f32 %v949, 1.0
        %v996 = vadd.f32 %v951, 1.0
        %v997 = vadd.f32 %v953, 1.0
        %v998 = vadd.f32 %v955, 1.0
        %v999 = vadd.f32 %v957, 1.0
        %v1000 = vadd.f32 %v959, 1.0
        %v1001 = vadd.f32 %v961, 1.0
        %v1002 = vadd.f32 %v963, 1.0
        %v1003 = vadd.f32 %v965, 1.0
        %v1004 = vadd.f32 %v967, 1.0
        %v1005 = vadd.f32 %v969, 1.0
        %v1006 = vadd.f32 %v971, 1.0
        %v1007 = vadd.f32 %v973, 1.0
        %v1008 = vadd.f32 %v975, 1.0
        %v1009 = vadd.f32 %v977, 1.0
        %v1010 = vrcp.pop %v978
        %v1011 = vmul.f32 1.0, %v1010
        %v1012 = vrcp.pop %v979
        %v1013 = vmul.f32 1.0, %v1012
        %v1014 = vrcp.pop %v980
        %v1015 = vmul.f32 1.0, %v1014
        %v1016 = vrcp.pop %v981
        %v1017 = vmul.f32 1.0, %v1016
        %v1018 = vrcp.pop %v982
        %v1019 = vmul.f32 1.0, %v1018
        %v1020 = vrcp.pop %v983
        %v1021 = vmul.f32 1.0, %v1020
        %v1022 = vrcp.pop %v984
        %v1023 = vmul.f32 1.0, %v1022
        %v1024 = vrcp.pop %v985
        %v1025 = vmul.f32 1.0, %v1024
        %v1026 = vrcp.pop %v986
        %v1027 = vmul.f32 1.0, %v1026
        %v1028 = vrcp.pop %v987
        %v1029 = vmul.f32 1.0, %v1028
        %v1030 = vrcp.pop %v988
        %v1031 = vmul.f32 1.0, %v1030
        %v1032 = vrcp.pop %v989
        %v1033 = vmul.f32 1.0, %v1032
        %v1034 = vrcp.pop %v990
        %v1035 = vmul.f32 1.0, %v1034
        %v1036 = vrcp.pop %v991
        %v1037 = vmul.f32 1.0, %v1036
        %v1038 = vrcp.pop %v992
        %v1039 = vmul.f32 1.0, %v1038
        %v1040 = vrcp.pop %v993
        %v1041 = vmul.f32 1.0, %v1040
        %v1042 = vrcp.pop %v994
        %v1043 = vmul.f32 1.0, %v1042
        %v1044 = vrcp.pop %v995
        %v1045 = vmul.f32 1.0, %v1044
        %v1046 = vrcp.pop %v996
        %v1047 = vmul.f32 1.0, %v1046
        %v1048 = vrcp.pop %v997
        %v1049 = vmul.f32 1.0, %v1048
        %v1050 = vrcp.pop %v998
        %v1051 = vmul.f32 1.0, %v1050
        %v1052 = vrcp.pop %v999
        %v1053 = vmul.f32 1.0, %v1052
        %v1054 = vrcp.pop %v1000
        %v1055 = vmul.f32 1.0, %v1054
        %v1056 = vrcp.pop %v1001
        %v1057 = vmul.f32 1.0, %v1056
        %v1058 = vrcp.pop %v1002
        %v1059 = vmul.f32 1.0, %v1058
        %v1060 = vrcp.pop %v1003
        %v1061 = vmul.f32 1.0, %v1060
        %v1062 = vrcp.pop %v1004
        %v1063 = vmul.f32 1.0, %v1062
        %v1064 = vrcp.pop %v1005
        %v1065 = vmul.f32 1.0, %v1064
        %v1066 = vrcp.pop %v1006
        %v1067 = vmul.f32 1.0, %v1066
        %v1068 = vrcp.pop %v1007
        %v1069 = vmul.f32 1.0, %v1068
        %v1070 = vrcp.pop %v1008
        %v1071 = vmul.f32 1.0, %v1070
        %v1072 = vrcp.pop %v1009
        %v1073 = vmul.f32 1.0, %v1072
        %v1074 = vmul.f32 %v850, %v1011
        %v1075 = vmul.f32 %v851, %v1013
        %v1076 = vmul.f32 %v852, %v1015
        %v1077 = vmul.f32 %v853, %v1017
        %v1078 = vmul.f32 %v854, %v1019
        %v1079 = vmul.f32 %v855, %v1021
        %v1080 = vmul.f32 %v856, %v1023
        %v1081 = vmul.f32 %v857, %v1025
        %v1082 = vmul.f32 %v858, %v1027
        %v1083 = vmul.f32 %v859, %v1029
        %v1084 = vmul.f32 %v860, %v1031
        %v1085 = vmul.f32 %v861, %v1033
        %v1086 = vmul.f32 %v862, %v1035
        %v1087 = vmul.f32 %v863, %v1037
        %v1088 = vmul.f32 %v864, %v1039
        %v1089 = vmul.f32 %v865, %v1041
        %v1090 = vmul.f32 %v866, %v1043
        %v1091 = vmul.f32 %v867, %v1045
        %v1092 = vmul.f32 %v868, %v1047
        %v1093 = vmul.f32 %v869, %v1049
        %v1094 = vmul.f32 %v870, %v1051
        %v1095 = vmul.f32 %v871, %v1053
        %v1096 = vmul.f32 %v872, %v1055
        %v1097 = vmul.f32 %v873, %v1057
        %v1098 = vmul.f32 %v874, %v1059
        %v1099 = vmul.f32 %v875, %v1061
        %v1100 = vmul.f32 %v876, %v1063
        %v1101 = vmul.f32 %v877, %v1065
        %v1102 = vmul.f32 %v878, %v1067
        %v1103 = vmul.f32 %v879, %v1069
        %v1104 = vmul.f32 %v880, %v1071
        %v1105 = vmul.f32 %v881, %v1073
        %1106 = vst [vmem:[#allocation2] sm:$0xff] 0.0
        %1107 = vst [vmem:[#allocation2 + $0x8] sm:$0xff] 0.0
        %1108 = vst [vmem:[#allocation2 + $0x10] sm:$0x3] 0.0
        %s1109 = scalar_lea.vmem [#allocation2], 408
        %1110 = vst [vmem:[%s1109] sm:$0xff] 0.0
        %1111 = vst [vmem:[%s1109 + $0x8] sm:$0xff] 0.0
        %1112 = vst [vmem:[%s1109 + $0x10] sm:$0x3] 0.0
        %1113 = vst [vmem:[#allocation2] sm:$0x1] 0.0
        %1114 = vst [vmem:[#allocation2 + $0x18] sm:$0x1] 0.0
        %1115 = vst [vmem:[#allocation2 + $0x30] sm:$0x1] 0.0
        %1116 = vst [vmem:[#allocation2 + $0x48] sm:$0x1] 0.0
        %1117 = vst [vmem:[#allocation2 + $0x60] sm:$0x1] 0.0
        %1118 = vst [vmem:[#allocation2 + $0x78] sm:$0x1] 0.0
        %1119 = vst [vmem:[#allocation2 + $0x90] sm:$0x1] 0.0
        %1120 = vst [vmem:[#allocation2 + $0xa8] sm:$0x1] 0.0
        %1121 = vst [vmem:[#allocation2 + $0xc0] sm:$0x1] 0.0
        %1122 = vst [vmem:[#allocation2 + $0xd8] sm:$0x1] 0.0
        %1123 = vst [vmem:[#allocation2 + $0xf0] sm:$0x1] 0.0
        %1124 = vst [vmem:[#allocation2 + $0x108] sm:$0x1] 0.0
        %1125 = vst [vmem:[#allocation2 + $0x120] sm:$0x1] 0.0
        %1126 = vst [vmem:[#allocation2 + $0x138] sm:$0x1] 0.0
        %1127 = vst [vmem:[#allocation2 + $0x150] sm:$0x1] 0.0
        %1128 = vst [vmem:[#allocation2 + $0x168] sm:$0x1] 0.0
        %1129 = vst [vmem:[#allocation2 + $0x180] sm:$0x1] 0.0
        %1130 = vst [vmem:[#allocation2 + $0x198] sm:$0x1] 0.0
        %1131 = vst [vmem:[#allocation2 + $0x11] sm:$0x1] 0.0
        %1132 = vst [vmem:[#allocation2 + $0x29] sm:$0x1] 0.0
        %1133 = vst [vmem:[#allocation2 + $0x41] sm:$0x1] 0.0
        %1134 = vst [vmem:[#allocation2 + $0x59] sm:$0x1] 0.0
        %1135 = vst [vmem:[#allocation2 + $0x71] sm:$0x1] 0.0
        %1136 = vst [vmem:[#allocation2 + $0x89] sm:$0x1] 0.0
        %1137 = vst [vmem:[#allocation2 + $0xa1] sm:$0x1] 0.0
        %1138 = vst [vmem:[#allocation2 + $0xb9] sm:$0x1] 0.0
        %1139 = vst [vmem:[#allocation2 + $0xd1] sm:$0x1] 0.0
        %1140 = vst [vmem:[#allocation2 + $0xe9] sm:$0x1] 0.0
        %1141 = vst [vmem:[#allocation2 + $0x101] sm:$0x1] 0.0
        %1142 = vst [vmem:[#allocation2 + $0x119] sm:$0x1] 0.0
        %1143 = vst [vmem:[#allocation2 + $0x131] sm:$0x1] 0.0
        %1144 = vst [vmem:[#allocation2 + $0x149] sm:$0x1] 0.0
        %1145 = vst [vmem:[#allocation2 + $0x161] sm:$0x1] 0.0
        %1146 = vst [vmem:[#allocation2 + $0x179] sm:$0x1] 0.0
        %1147 = vst [vmem:[#allocation2 + $0x191] sm:$0x1] 0.0
        %1148 = vst [vmem:[#allocation2 + $0x1a9] sm:$0x1] 0.0
        %s1149 = scalar_lea.vmem [#allocation2], 24
        %1150 = vst [vmem:[%s1149 + $0x1] sm:$0xff] %v1074
        %1151 = vst [vmem:[%s1149 + $0x9] sm:$0xff] %v1075
        %1152 = vst [vmem:[%s1149 + $0x19] sm:$0xff] %v1076
        %1153 = vst [vmem:[%s1149 + $0x21] sm:$0xff] %v1077
        %1154 = vst [vmem:[%s1149 + $0x31] sm:$0xff] %v1078
        %1155 = vst [vmem:[%s1149 + $0x39] sm:$0xff] %v1079
        %1156 = vst [vmem:[%s1149 + $0x49] sm:$0xff] %v1080
        %1157 = vst [vmem:[%s1149 + $0x51] sm:$0xff] %v1081
        %1158 = vst [vmem:[%s1149 + $0x61] sm:$0xff] %v1082
        %1159 = vst [vmem:[%s1149 + $0x69] sm:$0xff] %v1083
        %1160 = vst [vmem:[%s1149 + $0x79] sm:$0xff] %v1084
        %1161 = vst [vmem:[%s1149 + $0x81] sm:$0xff] %v1085
        %1162 = vst [vmem:[%s1149 + $0x91] sm:$0xff] %v1086
        %1163 = vst [vmem:[%s1149 + $0x99] sm:$0xff] %v1087
        %1164 = vst [vmem:[%s1149 + $0xa9] sm:$0xff] %v1088
        %1165 = vst [vmem:[%s1149 + $0xb1] sm:$0xff] %v1089
        %1166 = vst [vmem:[%s1149 + $0xc1] sm:$0xff] %v1090
        %1167 = vst [vmem:[%s1149 + $0xc9] sm:$0xff] %v1091
        %1168 = vst [vmem:[%s1149 + $0xd9] sm:$0xff] %v1092
        %1169 = vst [vmem:[%s1149 + $0xe1] sm:$0xff] %v1093
        %1170 = vst [vmem:[%s1149 + $0xf1] sm:$0xff] %v1094
        %1171 = vst [vmem:[%s1149 + $0xf9] sm:$0xff] %v1095
        %1172 = vst [vmem:[%s1149 + $0x109] sm:$0xff] %v1096
        %1173 = vst [vmem:[%s1149 + $0x111] sm:$0xff] %v1097
        %1174 = vst [vmem:[%s1149 + $0x121] sm:$0xff] %v1098
        %1175 = vst [vmem:[%s1149 + $0x129] sm:$0xff] %v1099
        %1176 = vst [vmem:[%s1149 + $0x139] sm:$0xff] %v1100
        %1177 = vst [vmem:[%s1149 + $0x141] sm:$0xff] %v1101
        %1178 = vst [vmem:[%s1149 + $0x151] sm:$0xff] %v1102
        %1179 = vst [vmem:[%s1149 + $0x159] sm:$0xff] %v1103
        %1180 = vst [vmem:[%s1149 + $0x169] sm:$0xff] %v1104
        %1181 = vst [vmem:[%s1149 + $0x171] sm:$0xff] %v1105
        %v1182 = vld [vmem:[#allocation2] sm:$0xff]
        %v1183 = vld [vmem:[#allocation2 + $0x8] sm:$0xff]
        %v1184 = vld [vmem:[#allocation2 + $0x18] sm:$0xff]
        %v1185 = vld [vmem:[#allocation2 + $0x20] sm:$0xff]
        %v1186 = vld [vmem:[#allocation2 + $0x30] sm:$0xff]
        %v1187 = vld [vmem:[#allocation2 + $0x38] sm:$0xff]
        %v1188 = vld [vmem:[#allocation2 + $0x48] sm:$0xff]
        %v1189 = vld [vmem:[#allocation2 + $0x50] sm:$0xff]
        %v1190 = vld [vmem:[#allocation2 + $0x60] sm:$0xff]
        %v1191 = vld [vmem:[#allocation2 + $0x68] sm:$0xff]
        %v1192 = vld [vmem:[#allocation2 + $0x78] sm:$0xff]
        %v1193 = vld [vmem:[#allocation2 + $0x80] sm:$0xff]
        %v1194 = vld [vmem:[#allocation2 + $0x90] sm:$0xff]
        %v1195 = vld [vmem:[#allocation2 + $0x98] sm:$0xff]
        %v1196 = vld [vmem:[#allocation2 + $0xa8] sm:$0xff]
        %v1197 = vld [vmem:[#allocation2 + $0xb0] sm:$0xff]
        %v1198 = vld [vmem:[#allocation2 + $0xc0] sm:$0xff]
        %v1199 = vld [vmem:[#allocation2 + $0xc8] sm:$0xff]
        %v1200 = vld [vmem:[#allocation2 + $0xd8] sm:$0xff]
        %v1201 = vld [vmem:[#allocation2 + $0xe0] sm:$0xff]
        %v1202 = vld [vmem:[#allocation2 + $0xf0] sm:$0xff]
        %v1203 = vld [vmem:[#allocation2 + $0xf8] sm:$0xff]
        %v1204 = vld [vmem:[#allocation2 + $0x108] sm:$0xff]
        %v1205 = vld [vmem:[#allocation2 + $0x110] sm:$0xff]
        %v1206 = vld [vmem:[#allocation2 + $0x120] sm:$0xff]
        %v1207 = vld [vmem:[#allocation2 + $0x128] sm:$0xff]
        %v1208 = vld [vmem:[#allocation2 + $0x138] sm:$0xff]
        %v1209 = vld [vmem:[#allocation2 + $0x140] sm:$0xff]
        %v1210 = vld [vmem:[#allocation2 + $0x150] sm:$0xff]
        %v1211 = vld [vmem:[#allocation2 + $0x158] sm:$0xff]
        %v1212 = vld [vmem:[#allocation2 + $0x168] sm:$0xff]
        %v1213 = vld [vmem:[#allocation2 + $0x170] sm:$0xff]
        %v1214 = vpack.c.bf16 %v1183, %v1182
        %v1215 = vpack.c.bf16 %v1185, %v1184
        %v1216 = vpack.c.bf16 %v1187, %v1186
        %v1217 = vpack.c.bf16 %v1189, %v1188
        %v1218 = vpack.c.bf16 %v1191, %v1190
        %v1219 = vpack.c.bf16 %v1193, %v1192
        %v1220 = vpack.c.bf16 %v1195, %v1194
        %v1221 = vpack.c.bf16 %v1197, %v1196
        %v1222 = vpack.c.bf16 %v1199, %v1198
        %v1223 = vpack.c.bf16 %v1201, %v1200
        %v1224 = vpack.c.bf16 %v1203, %v1202
        %v1225 = vpack.c.bf16 %v1205, %v1204
        %v1226 = vpack.c.bf16 %v1207, %v1206
        %v1227 = vpack.c.bf16 %v1209, %v1208
        %v1228 = vpack.c.bf16 %v1211, %v1210
        %v1229 = vpack.c.bf16 %v1213, %v1212
        %1230 = vst [vmem:[#allocation3] sm:$0xff] %v1214
        %1231 = vst [vmem:[#allocation3 + $0x48] sm:$0xff] %v1215
        %1232 = vst [vmem:[#allocation3 + $0x90] sm:$0xff] %v1216
        %1233 = vst [vmem:[#allocation3 + $0xd8] sm:$0xff] %v1217
        %1234 = vst [vmem:[#allocation3 + $0x120] sm:$0xff] %v1218
        %1235 = vst [vmem:[#allocation3 + $0x168] sm:$0xff] %v1219
        %1236 = vst [vmem:[#allocation3 + $0x1b0] sm:$0xff] %v1220
        %1237 = vst [vmem:[#allocation3 + $0x1f8] sm:$0xff] %v1221
        %1238 = vst [vmem:[#allocation3 + $0x240] sm:$0xff] %v1222
        %1239 = vst [vmem:[#allocation3 + $0x288] sm:$0xff] %v1223
        %1240 = vst [vmem:[#allocation3 + $0x2d0] sm:$0xff] %v1224
        %1241 = vst [vmem:[#allocation3 + $0x318] sm:$0xff] %v1225
        %1242 = vst [vmem:[#allocation3 + $0x360] sm:$0xff] %v1226
        %1243 = vst [vmem:[#allocation3 + $0x3a8] sm:$0xff] %v1227
        %1244 = vst [vmem:[#allocation3 + $0x3f0] sm:$0xff] %v1228
        %1245 = vst [vmem:[#allocation3 + $0x438] sm:$0xff] %v1229
        %v1246 = vld [vmem:[#allocation2 + $0x1] sm:$0xff]
        %v1247 = vld [vmem:[#allocation2 + $0x9] sm:$0xff]
        %v1248 = vld [vmem:[#allocation2 + $0x19] sm:$0xff]
        %v1249 = vld [vmem:[#allocation2 + $0x21] sm:$0xff]
        %v1250 = vld [vmem:[#allocation2 + $0x31] sm:$0xff]
        %v1251 = vld [vmem:[#allocation2 + $0x39] sm:$0xff]
        %v1252 = vld [vmem:[#allocation2 + $0x49] sm:$0xff]
        %v1253 = vld [vmem:[#allocation2 + $0x51] sm:$0xff]
        %v1254 = vld [vmem:[#allocation2 + $0x61] sm:$0xff]
        %v1255 = vld [vmem:[#allocation2 + $0x69] sm:$0xff]
        %v1256 = vld [vmem:[#allocation2 + $0x79] sm:$0xff]
        %v1257 = vld [vmem:[#allocation2 + $0x81] sm:$0xff]
        %v1258 = vld [vmem:[#allocation2 + $0x91] sm:$0xff]
        %v1259 = vld [vmem:[#allocation2 + $0x99] sm:$0xff]
        %v1260 = vld [vmem:[#allocation2 + $0xa9] sm:$0xff]
        %v1261 = vld [vmem:[#allocation2 + $0xb1] sm:$0xff]
        %v1262 = vld [vmem:[#allocation2 + $0xc1] sm:$0xff]
        %v1263 = vld [vmem:[#allocation2 + $0xc9] sm:$0xff]
        %v1264 = vld [vmem:[#allocation2 + $0xd9] sm:$0xff]
        %v1265 = vld [vmem:[#allocation2 + $0xe1] sm:$0xff]
        %v1266 = vld [vmem:[#allocation2 + $0xf1] sm:$0xff]
        %v1267 = vld [vmem:[#allocation2 + $0xf9] sm:$0xff]
        %v1268 = vld [vmem:[#allocation2 + $0x109] sm:$0xff]
        %v1269 = vld [vmem:[#allocation2 + $0x111] sm:$0xff]
        %v1270 = vld [vmem:[#allocation2 + $0x121] sm:$0xff]
        %v1271 = vld [vmem:[#allocation2 + $0x129] sm:$0xff]
        %v1272 = vld [vmem:[#allocation2 + $0x139] sm:$0xff]
        %v1273 = vld [vmem:[#allocation2 + $0x141] sm:$0xff]
        %v1274 = vld [vmem:[#allocation2 + $0x151] sm:$0xff]
        %v1275 = vld [vmem:[#allocation2 + $0x159] sm:$0xff]
        %v1276 = vld [vmem:[#allocation2 + $0x169] sm:$0xff]
        %v1277 = vld [vmem:[#allocation2 + $0x171] sm:$0xff]
        %v1278 = vpack.c.bf16 %v1247, %v1246
        %v1279 = vpack.c.bf16 %v1249, %v1248
        %v1280 = vpack.c.bf16 %v1251, %v1250
        %v1281 = vpack.c.bf16 %v1253, %v1252
        %v1282 = vpack.c.bf16 %v1255, %v1254
        %v1283 = vpack.c.bf16 %v1257, %v1256
        %v1284 = vpack.c.bf16 %v1259, %v1258
        %v1285 = vpack.c.bf16 %v1261, %v1260
        %v1286 = vpack.c.bf16 %v1263, %v1262
        %v1287 = vpack.c.bf16 %v1265, %v1264
        %v1288 = vpack.c.bf16 %v1267, %v1266
        %v1289 = vpack.c.bf16 %v1269, %v1268
        %v1290 = vpack.c.bf16 %v1271, %v1270
        %v1291 = vpack.c.bf16 %v1273, %v1272
        %v1292 = vpack.c.bf16 %v1275, %v1274
        %v1293 = vpack.c.bf16 %v1277, %v1276
        %1294 = vst [vmem:[#allocation3 + $0x8] sm:$0xff] %v1278
        %1295 = vst [vmem:[#allocation3 + $0x50] sm:$0xff] %v1279
        %1296 = vst [vmem:[#allocation3 + $0x98] sm:$0xff] %v1280
        %1297 = vst [vmem:[#allocation3 + $0xe0] sm:$0xff] %v1281
        %1298 = vst [vmem:[#allocation3 + $0x128] sm:$0xff] %v1282
        %1299 = vst [vmem:[#allocation3 + $0x170] sm:$0xff] %v1283
        %1300 = vst [vmem:[#allocation3 + $0x1b8] sm:$0xff] %v1284
        %1301 = vst [vmem:[#allocation3 + $0x200] sm:$0xff] %v1285
        %1302 = vst [vmem:[#allocation3 + $0x248] sm:$0xff] %v1286
        %1303 = vst [vmem:[#allocation3 + $0x290] sm:$0xff] %v1287
        %1304 = vst [vmem:[#allocation3 + $0x2d8] sm:$0xff] %v1288
        %1305 = vst [vmem:[#allocation3 + $0x320] sm:$0xff] %v1289
        %1306 = vst [vmem:[#allocation3 + $0x368] sm:$0xff] %v1290
        %1307 = vst [vmem:[#allocation3 + $0x3b0] sm:$0xff] %v1291
        %1308 = vst [vmem:[#allocation3 + $0x3f8] sm:$0xff] %v1292
        %1309 = vst [vmem:[#allocation3 + $0x440] sm:$0xff] %v1293
        %v1310 = vld [vmem:[#allocation2 + $0x2] sm:$0xff]
        %v1311 = vld [vmem:[#allocation2 + $0xa] sm:$0xff]
        %v1312 = vld [vmem:[#allocation2 + $0x1a] sm:$0xff]
        %v1313 = vld [vmem:[#allocation2 + $0x22] sm:$0xff]
        %v1314 = vld [vmem:[#allocation2 + $0x32] sm:$0xff]
        %v1315 = vld [vmem:[#allocation2 + $0x3a] sm:$0xff]
        %v1316 = vld [vmem:[#allocation2 + $0x4a] sm:$0xff]
        %v1317 = vld [vmem:[#allocation2 + $0x52] sm:$0xff]
        %v1318 = vld [vmem:[#allocation2 + $0x62] sm:$0xff]
        %v1319 = vld [vmem:[#allocation2 + $0x6a] sm:$0xff]
        %v1320 = vld [vmem:[#allocation2 + $0x7a] sm:$0xff]
        %v1321 = vld [vmem:[#allocation2 + $0x82] sm:$0xff]
        %v1322 = vld [vmem:[#allocation2 + $0x92] sm:$0xff]
        %v1323 = vld [vmem:[#allocation2 + $0x9a] sm:$0xff]
        %v1324 = vld [vmem:[#allocation2 + $0xaa] sm:$0xff]
        %v1325 = vld [vmem:[#allocation2 + $0xb2] sm:$0xff]
        %v1326 = vld [vmem:[#allocation2 + $0xc2] sm:$0xff]
        %v1327 = vld [vmem:[#allocation2 + $0xca] sm:$0xff]
        %v1328 = vld [vmem:[#allocation2 + $0xda] sm:$0xff]
        %v1329 = vld [vmem:[#allocation2 + $0xe2] sm:$0xff]
        %v1330 = vld [vmem:[#allocation2 + $0xf2] sm:$0xff]
        %v1331 = vld [vmem:[#allocation2 + $0xfa] sm:$0xff]
        %v1332 = vld [vmem:[#allocation2 + $0x10a] sm:$0xff]
        %v1333 = vld [vmem:[#allocation2 + $0x112] sm:$0xff]
        %v1334 = vld [vmem:[#allocation2 + $0x122] sm:$0xff]
        %v1335 = vld [vmem:[#allocation2 + $0x12a] sm:$0xff]
        %v1336 = vld [vmem:[#allocation2 + $0x13a] sm:$0xff]
        %v1337 = vld [vmem:[#allocation2 + $0x142] sm:$0xff]
        %v1338 = vld [vmem:[#allocation2 + $0x152] sm:$0xff]
        %v1339 = vld [vmem:[#allocation2 + $0x15a] sm:$0xff]
        %v1340 = vld [vmem:[#allocation2 + $0x16a] sm:$0xff]
        %v1341 = vld [vmem:[#allocation2 + $0x172] sm:$0xff]
        %v1342 = vpack.c.bf16 %v1311, %v1310
        %v1343 = vpack.c.bf16 %v1313, %v1312
        %v1344 = vpack.c.bf16 %v1315, %v1314
        %v1345 = vpack.c.bf16 %v1317, %v1316
        %v1346 = vpack.c.bf16 %v1319, %v1318
        %v1347 = vpack.c.bf16 %v1321, %v1320
        %v1348 = vpack.c.bf16 %v1323, %v1322
        %v1349 = vpack.c.bf16 %v1325, %v1324
        %v1350 = vpack.c.bf16 %v1327, %v1326
        %v1351 = vpack.c.bf16 %v1329, %v1328
        %v1352 = vpack.c.bf16 %v1331, %v1330
        %v1353 = vpack.c.bf16 %v1333, %v1332
        %v1354 = vpack.c.bf16 %v1335, %v1334
        %v1355 = vpack.c.bf16 %v1337, %v1336
        %v1356 = vpack.c.bf16 %v1339, %v1338
        %v1357 = vpack.c.bf16 %v1341, %v1340
        %1358 = vst [vmem:[#allocation3 + $0x10] sm:$0xff] %v1342
        %1359 = vst [vmem:[#allocation3 + $0x58] sm:$0xff] %v1343
        %1360 = vst [vmem:[#allocation3 + $0xa0] sm:$0xff] %v1344
        %1361 = vst [vmem:[#allocation3 + $0xe8] sm:$0xff] %v1345
        %1362 = vst [vmem:[#allocation3 + $0x130] sm:$0xff] %v1346
        %1363 = vst [vmem:[#allocation3 + $0x178] sm:$0xff] %v1347
        %1364 = vst [vmem:[#allocation3 + $0x1c0] sm:$0xff] %v1348
        %1365 = vst [vmem:[#allocation3 + $0x208] sm:$0xff] %v1349
        %1366 = vst [vmem:[#allocation3 + $0x250] sm:$0xff] %v1350
        %1367 = vst [vmem:[#allocation3 + $0x298] sm:$0xff] %v1351
        %1368 = vst [vmem:[#allocation3 + $0x2e0] sm:$0xff] %v1352
        %1369 = vst [vmem:[#allocation3 + $0x328] sm:$0xff] %v1353
        %1370 = vst [vmem:[#allocation3 + $0x370] sm:$0xff] %v1354
        %1371 = vst [vmem:[#allocation3 + $0x3b8] sm:$0xff] %v1355
        %1372 = vst [vmem:[#allocation3 + $0x400] sm:$0xff] %v1356
        %1373 = vst [vmem:[#allocation3 + $0x448] sm:$0xff] %v1357
        %v1374 = vld [vmem:[%s1149] sm:$0xff]
        %v1375 = vld [vmem:[%s1149 + $0x8] sm:$0xff]
        %v1376 = vld [vmem:[%s1149 + $0x18] sm:$0xff]
        %v1377 = vld [vmem:[%s1149 + $0x20] sm:$0xff]
        %v1378 = vld [vmem:[%s1149 + $0x30] sm:$0xff]
        %v1379 = vld [vmem:[%s1149 + $0x38] sm:$0xff]
        %v1380 = vld [vmem:[%s1149 + $0x48] sm:$0xff]
        %v1381 = vld [vmem:[%s1149 + $0x50] sm:$0xff]
        %v1382 = vld [vmem:[%s1149 + $0x60] sm:$0xff]
        %v1383 = vld [vmem:[%s1149 + $0x68] sm:$0xff]
        %v1384 = vld [vmem:[%s1149 + $0x78] sm:$0xff]
        %v1385 = vld [vmem:[%s1149 + $0x80] sm:$0xff]
        %v1386 = vld [vmem:[%s1149 + $0x90] sm:$0xff]
        %v1387 = vld [vmem:[%s1149 + $0x98] sm:$0xff]
        %v1388 = vld [vmem:[%s1149 + $0xa8] sm:$0xff]
        %v1389 = vld [vmem:[%s1149 + $0xb0] sm:$0xff]
        %v1390 = vld [vmem:[%s1149 + $0xc0] sm:$0xff]
        %v1391 = vld [vmem:[%s1149 + $0xc8] sm:$0xff]
        %v1392 = vld [vmem:[%s1149 + $0xd8] sm:$0xff]
        %v1393 = vld [vmem:[%s1149 + $0xe0] sm:$0xff]
        %v1394 = vld [vmem:[%s1149 + $0xf0] sm:$0xff]
        %v1395 = vld [vmem:[%s1149 + $0xf8] sm:$0xff]
        %v1396 = vld [vmem:[%s1149 + $0x108] sm:$0xff]
        %v1397 = vld [vmem:[%s1149 + $0x110] sm:$0xff]
        %v1398 = vld [vmem:[%s1149 + $0x120] sm:$0xff]
        %v1399 = vld [vmem:[%s1149 + $0x128] sm:$0xff]
        %v1400 = vld [vmem:[%s1149 + $0x138] sm:$0xff]
        %v1401 = vld [vmem:[%s1149 + $0x140] sm:$0xff]
        %v1402 = vld [vmem:[%s1149 + $0x150] sm:$0xff]
        %v1403 = vld [vmem:[%s1149 + $0x158] sm:$0xff]
        %v1404 = vld [vmem:[%s1149 + $0x168] sm:$0xff]
        %v1405 = vld [vmem:[%s1149 + $0x170] sm:$0xff]
        %v1406 = vpack.c.bf16 %v1375, %v1374
        %v1407 = vpack.c.bf16 %v1377, %v1376
        %v1408 = vpack.c.bf16 %v1379, %v1378
        %v1409 = vpack.c.bf16 %v1381, %v1380
        %v1410 = vpack.c.bf16 %v1383, %v1382
        %v1411 = vpack.c.bf16 %v1385, %v1384
        %v1412 = vpack.c.bf16 %v1387, %v1386
        %v1413 = vpack.c.bf16 %v1389, %v1388
        %v1414 = vpack.c.bf16 %v1391, %v1390
        %v1415 = vpack.c.bf16 %v1393, %v1392
        %v1416 = vpack.c.bf16 %v1395, %v1394
        %v1417 = vpack.c.bf16 %v1397, %v1396
        %v1418 = vpack.c.bf16 %v1399, %v1398
        %v1419 = vpack.c.bf16 %v1401, %v1400
        %v1420 = vpack.c.bf16 %v1403, %v1402
        %v1421 = vpack.c.bf16 %v1405, %v1404
        %1422 = vst [vmem:[#allocation3 + $0x18] sm:$0xff] %v1406
        %1423 = vst [vmem:[#allocation3 + $0x60] sm:$0xff] %v1407
        %1424 = vst [vmem:[#allocation3 + $0xa8] sm:$0xff] %v1408
        %1425 = vst [vmem:[#allocation3 + $0xf0] sm:$0xff] %v1409
        %1426 = vst [vmem:[#allocation3 + $0x138] sm:$0xff] %v1410
        %1427 = vst [vmem:[#allocation3 + $0x180] sm:$0xff] %v1411
        %1428 = vst [vmem:[#allocation3 + $0x1c8] sm:$0xff] %v1412
        %1429 = vst [vmem:[#allocation3 + $0x210] sm:$0xff] %v1413
        %1430 = vst [vmem:[#allocation3 + $0x258] sm:$0xff] %v1414
        %1431 = vst [vmem:[#allocation3 + $0x2a0] sm:$0xff] %v1415
        %1432 = vst [vmem:[#allocation3 + $0x2e8] sm:$0xff] %v1416
        %1433 = vst [vmem:[#allocation3 + $0x330] sm:$0xff] %v1417
        %1434 = vst [vmem:[#allocation3 + $0x378] sm:$0xff] %v1418
        %1435 = vst [vmem:[#allocation3 + $0x3c0] sm:$0xff] %v1419
        %1436 = vst [vmem:[#allocation3 + $0x408] sm:$0xff] %v1420
        %1437 = vst [vmem:[#allocation3 + $0x450] sm:$0xff] %v1421
        %v1438 = vld [vmem:[%s1149 + $0x1] sm:$0xff]
        %v1439 = vld [vmem:[%s1149 + $0x9] sm:$0xff]
        %v1440 = vld [vmem:[%s1149 + $0x19] sm:$0xff]
        %v1441 = vld [vmem:[%s1149 + $0x21] sm:$0xff]
        %v1442 = vld [vmem:[%s1149 + $0x31] sm:$0xff]
        %v1443 = vld [vmem:[%s1149 + $0x39] sm:$0xff]
        %v1444 = vld [vmem:[%s1149 + $0x49] sm:$0xff]
        %v1445 = vld [vmem:[%s1149 + $0x51] sm:$0xff]
        %v1446 = vld [vmem:[%s1149 + $0x61] sm:$0xff]
        %v1447 = vld [vmem:[%s1149 + $0x69] sm:$0xff]
        %v1448 = vld [vmem:[%s1149 + $0x79] sm:$0xff]
        %v1449 = vld [vmem:[%s1149 + $0x81] sm:$0xff]
        %v1450 = vld [vmem:[%s1149 + $0x91] sm:$0xff]
        %v1451 = vld [vmem:[%s1149 + $0x99] sm:$0xff]
        %v1452 = vld [vmem:[%s1149 + $0xa9] sm:$0xff]
        %v1453 = vld [vmem:[%s1149 + $0xb1] sm:$0xff]
        %v1454 = vld [vmem:[%s1149 + $0xc1] sm:$0xff]
        %v1455 = vld [vmem:[%s1149 + $0xc9] sm:$0xff]
        %v1456 = vld [vmem:[%s1149 + $0xd9] sm:$0xff]
        %v1457 = vld [vmem:[%s1149 + $0xe1] sm:$0xff]
        %v1458 = vld [vmem:[%s1149 + $0xf1] sm:$0xff]
        %v1459 = vld [vmem:[%s1149 + $0xf9] sm:$0xff]
        %v1460 = vld [vmem:[%s1149 + $0x109] sm:$0xff]
        %v1461 = vld [vmem:[%s1149 + $0x111] sm:$0xff]
        %v1462 = vld [vmem:[%s1149 + $0x121] sm:$0xff]
        %v1463 = vld [vmem:[%s1149 + $0x129] sm:$0xff]
        %v1464 = vld [vmem:[%s1149 + $0x139] sm:$0xff]
        %v1465 = vld [vmem:[%s1149 + $0x141] sm:$0xff]
        %v1466 = vld [vmem:[%s1149 + $0x151] sm:$0xff]
        %v1467 = vld [vmem:[%s1149 + $0x159] sm:$0xff]
        %v1468 = vld [vmem:[%s1149 + $0x169] sm:$0xff]
        %v1469 = vld [vmem:[%s1149 + $0x171] sm:$0xff]
        %v1470 = vpack.c.bf16 %v1439, %v1438
        %v1471 = vpack.c.bf16 %v1441, %v1440
        %v1472 = vpack.c.bf16 %v1443, %v1442
        %v1473 = vpack.c.bf16 %v1445, %v1444
        %v1474 = vpack.c.bf16 %v1447, %v1446
        %v1475 = vpack.c.bf16 %v1449, %v1448
        %v1476 = vpack.c.bf16 %v1451, %v1450
        %v1477 = vpack.c.bf16 %v1453, %v1452
        %v1478 = vpack.c.bf16 %v1455, %v1454
        %v1479 = vpack.c.bf16 %v1457, %v1456
        %v1480 = vpack.c.bf16 %v1459, %v1458
        %v1481 = vpack.c.bf16 %v1461, %v1460
        %v1482 = vpack.c.bf16 %v1463, %v1462
        %v1483 = vpack.c.bf16 %v1465, %v1464
        %v1484 = vpack.c.bf16 %v1467, %v1466
        %v1485 = vpack.c.bf16 %v1469, %v1468
        %1486 = vst [vmem:[#allocation3 + $0x20] sm:$0xff] %v1470
        %1487 = vst [vmem:[#allocation3 + $0x68] sm:$0xff] %v1471
        %1488 = vst [vmem:[#allocation3 + $0xb0] sm:$0xff] %v1472
        %1489 = vst [vmem:[#allocation3 + $0xf8] sm:$0xff] %v1473
        %1490 = vst [vmem:[#allocation3 + $0x140] sm:$0xff] %v1474
        %1491 = vst [vmem:[#allocation3 + $0x188] sm:$0xff] %v1475
        %1492 = vst [vmem:[#allocation3 + $0x1d0] sm:$0xff] %v1476
        %1493 = vst [vmem:[#allocation3 + $0x218] sm:$0xff] %v1477
        %1494 = vst [vmem:[#allocation3 + $0x260] sm:$0xff] %v1478
        %1495 = vst [vmem:[#allocation3 + $0x2a8] sm:$0xff] %v1479
        %1496 = vst [vmem:[#allocation3 + $0x2f0] sm:$0xff] %v1480
        %1497 = vst [vmem:[#allocation3 + $0x338] sm:$0xff] %v1481
        %1498 = vst [vmem:[#allocation3 + $0x380] sm:$0xff] %v1482
        %1499 = vst [vmem:[#allocation3 + $0x3c8] sm:$0xff] %v1483
        %1500 = vst [vmem:[#allocation3 + $0x410] sm:$0xff] %v1484
        %1501 = vst [vmem:[#allocation3 + $0x458] sm:$0xff] %v1485
        %v1502 = vld [vmem:[%s1149 + $0x2] sm:$0xff]
        %v1503 = vld [vmem:[%s1149 + $0xa] sm:$0xff]
        %v1504 = vld [vmem:[%s1149 + $0x1a] sm:$0xff]
        %v1505 = vld [vmem:[%s1149 + $0x22] sm:$0xff]
        %v1506 = vld [vmem:[%s1149 + $0x32] sm:$0xff]
        %v1507 = vld [vmem:[%s1149 + $0x3a] sm:$0xff]
        %v1508 = vld [vmem:[%s1149 + $0x4a] sm:$0xff]
        %v1509 = vld [vmem:[%s1149 + $0x52] sm:$0xff]
        %v1510 = vld [vmem:[%s1149 + $0x62] sm:$0xff]
        %v1511 = vld [vmem:[%s1149 + $0x6a] sm:$0xff]
        %v1512 = vld [vmem:[%s1149 + $0x7a] sm:$0xff]
        %v1513 = vld [vmem:[%s1149 + $0x82] sm:$0xff]
        %v1514 = vld [vmem:[%s1149 + $0x92] sm:$0xff]
        %v1515 = vld [vmem:[%s1149 + $0x9a] sm:$0xff]
        %v1516 = vld [vmem:[%s1149 + $0xaa] sm:$0xff]
        %v1517 = vld [vmem:[%s1149 + $0xb2] sm:$0xff]
        %v1518 = vld [vmem:[%s1149 + $0xc2] sm:$0xff]
        %v1519 = vld [vmem:[%s1149 + $0xca] sm:$0xff]
        %v1520 = vld [vmem:[%s1149 + $0xda] sm:$0xff]
        %v1521 = vld [vmem:[%s1149 + $0xe2] sm:$0xff]
        %v1522 = vld [vmem:[%s1149 + $0xf2] sm:$0xff]
        %v1523 = vld [vmem:[%s1149 + $0xfa] sm:$0xff]
        %v1524 = vld [vmem:[%s1149 + $0x10a] sm:$0xff]
        %v1525 = vld [vmem:[%s1149 + $0x112] sm:$0xff]
        %v1526 = vld [vmem:[%s1149 + $0x122] sm:$0xff]
        %v1527 = vld [vmem:[%s1149 + $0x12a] sm:$0xff]
        %v1528 = vld [vmem:[%s1149 + $0x13a] sm:$0xff]
        %v1529 = vld [vmem:[%s1149 + $0x142] sm:$0xff]
        %v1530 = vld [vmem:[%s1149 + $0x152] sm:$0xff]
        %v1531 = vld [vmem:[%s1149 + $0x15a] sm:$0xff]
        %v1532 = vld [vmem:[%s1149 + $0x16a] sm:$0xff]
        %v1533 = vld [vmem:[%s1149 + $0x172] sm:$0xff]
        %v1534 = vpack.c.bf16 %v1503, %v1502
        %v1535 = vpack.c.bf16 %v1505, %v1504
        %v1536 = vpack.c.bf16 %v1507, %v1506
        %v1537 = vpack.c.bf16 %v1509, %v1508
        %v1538 = vpack.c.bf16 %v1511, %v1510
        %v1539 = vpack.c.bf16 %v1513, %v1512
        %v1540 = vpack.c.bf16 %v1515, %v1514
        %v1541 = vpack.c.bf16 %v1517, %v1516
        %v1542 = vpack.c.bf16 %v1519, %v1518
        %v1543 = vpack.c.bf16 %v1521, %v1520
        %v1544 = vpack.c.bf16 %v1523, %v1522
        %v1545 = vpack.c.bf16 %v1525, %v1524
        %v1546 = vpack.c.bf16 %v1527, %v1526
        %v1547 = vpack.c.bf16 %v1529, %v1528
        %v1548 = vpack.c.bf16 %v1531, %v1530
        %v1549 = vpack.c.bf16 %v1533, %v1532
        %1550 = vst [vmem:[#allocation3 + $0x28] sm:$0xff] %v1534
        %1551 = vst [vmem:[#allocation3 + $0x70] sm:$0xff] %v1535
        %1552 = vst [vmem:[#allocation3 + $0xb8] sm:$0xff] %v1536
        %1553 = vst [vmem:[#allocation3 + $0x100] sm:$0xff] %v1537
        %1554 = vst [vmem:[#allocation3 + $0x148] sm:$0xff] %v1538
        %1555 = vst [vmem:[#allocation3 + $0x190] sm:$0xff] %v1539
        %1556 = vst [vmem:[#allocation3 + $0x1d8] sm:$0xff] %v1540
        %1557 = vst [vmem:[#allocation3 + $0x220] sm:$0xff] %v1541
        %1558 = vst [vmem:[#allocation3 + $0x268] sm:$0xff] %v1542
        %1559 = vst [vmem:[#allocation3 + $0x2b0] sm:$0xff] %v1543
        %1560 = vst [vmem:[#allocation3 + $0x2f8] sm:$0xff] %v1544
        %1561 = vst [vmem:[#allocation3 + $0x340] sm:$0xff] %v1545
        %1562 = vst [vmem:[#allocation3 + $0x388] sm:$0xff] %v1546
        %1563 = vst [vmem:[#allocation3 + $0x3d0] sm:$0xff] %v1547
        %1564 = vst [vmem:[#allocation3 + $0x418] sm:$0xff] %v1548
        %1565 = vst [vmem:[#allocation3 + $0x460] sm:$0xff] %v1549
        %s1566 = scalar_lea.vmem [#allocation2], 48
        %v1567 = vld [vmem:[%s1566] sm:$0xff]
        %v1568 = vld [vmem:[%s1566 + $0x8] sm:$0xff]
        %v1569 = vld [vmem:[%s1566 + $0x18] sm:$0xff]
        %v1570 = vld [vmem:[%s1566 + $0x20] sm:$0xff]
        %v1571 = vld [vmem:[%s1566 + $0x30] sm:$0xff]
        %v1572 = vld [vmem:[%s1566 + $0x38] sm:$0xff]
        %v1573 = vld [vmem:[%s1566 + $0x48] sm:$0xff]
        %v1574 = vld [vmem:[%s1566 + $0x50] sm:$0xff]
        %v1575 = vld [vmem:[%s1566 + $0x60] sm:$0xff]
        %v1576 = vld [vmem:[%s1566 + $0x68] sm:$0xff]
        %v1577 = vld [vmem:[%s1566 + $0x78] sm:$0xff]
        %v1578 = vld [vmem:[%s1566 + $0x80] sm:$0xff]
        %v1579 = vld [vmem:[%s1566 + $0x90] sm:$0xff]
        %v1580 = vld [vmem:[%s1566 + $0x98] sm:$0xff]
        %v1581 = vld [vmem:[%s1566 + $0xa8] sm:$0xff]
        %v1582 = vld [vmem:[%s1566 + $0xb0] sm:$0xff]
        %v1583 = vld [vmem:[%s1566 + $0xc0] sm:$0xff]
        %v1584 = vld [vmem:[%s1566 + $0xc8] sm:$0xff]
        %v1585 = vld [vmem:[%s1566 + $0xd8] sm:$0xff]
        %v1586 = vld [vmem:[%s1566 + $0xe0] sm:$0xff]
        %v1587 = vld [vmem:[%s1566 + $0xf0] sm:$0xff]
        %v1588 = vld [vmem:[%s1566 + $0xf8] sm:$0xff]
        %v1589 = vld [vmem:[%s1566 + $0x108] sm:$0xff]
        %v1590 = vld [vmem:[%s1566 + $0x110] sm:$0xff]
        %v1591 = vld [vmem:[%s1566 + $0x120] sm:$0xff]
        %v1592 = vld [vmem:[%s1566 + $0x128] sm:$0xff]
        %v1593 = vld [vmem:[%s1566 + $0x138] sm:$0xff]
        %v1594 = vld [vmem:[%s1566 + $0x140] sm:$0xff]
        %v1595 = vld [vmem:[%s1566 + $0x150] sm:$0xff]
        %v1596 = vld [vmem:[%s1566 + $0x158] sm:$0xff]
        %v1597 = vld [vmem:[%s1566 + $0x168] sm:$0xff]
        %v1598 = vld [vmem:[%s1566 + $0x170] sm:$0xff]
        %v1599 = vpack.c.bf16 %v1568, %v1567
        %v1600 = vpack.c.bf16 %v1570, %v1569
        %v1601 = vpack.c.bf16 %v1572, %v1571
        %v1602 = vpack.c.bf16 %v1574, %v1573
        %v1603 = vpack.c.bf16 %v1576, %v1575
        %v1604 = vpack.c.bf16 %v1578, %v1577
        %v1605 = vpack.c.bf16 %v1580, %v1579
        %v1606 = vpack.c.bf16 %v1582, %v1581
        %v1607 = vpack.c.bf16 %v1584, %v1583
        %v1608 = vpack.c.bf16 %v1586, %v1585
        %v1609 = vpack.c.bf16 %v1588, %v1587
        %v1610 = vpack.c.bf16 %v1590, %v1589
        %v1611 = vpack.c.bf16 %v1592, %v1591
        %v1612 = vpack.c.bf16 %v1594, %v1593
        %v1613 = vpack.c.bf16 %v1596, %v1595
        %v1614 = vpack.c.bf16 %v1598, %v1597
        %1615 = vst [vmem:[#allocation3 + $0x30] sm:$0xff] %v1599
        %1616 = vst [vmem:[#allocation3 + $0x78] sm:$0xff] %v1600
        %1617 = vst [vmem:[#allocation3 + $0xc0] sm:$0xff] %v1601
        %1618 = vst [vmem:[#allocation3 + $0x108] sm:$0xff] %v1602
        %1619 = vst [vmem:[#allocation3 + $0x150] sm:$0xff] %v1603
        %1620 = vst [vmem:[#allocation3 + $0x198] sm:$0xff] %v1604
        %1621 = vst [vmem:[#allocation3 + $0x1e0] sm:$0xff] %v1605
        %1622 = vst [vmem:[#allocation3 + $0x228] sm:$0xff] %v1606
        %1623 = vst [vmem:[#allocation3 + $0x270] sm:$0xff] %v1607
        %1624 = vst [vmem:[#allocation3 + $0x2b8] sm:$0xff] %v1608
        %1625 = vst [vmem:[#allocation3 + $0x300] sm:$0xff] %v1609
        %1626 = vst [vmem:[#allocation3 + $0x348] sm:$0xff] %v1610
        %1627 = vst [vmem:[#allocation3 + $0x390] sm:$0xff] %v1611
        %1628 = vst [vmem:[#allocation3 + $0x3d8] sm:$0xff] %v1612
        %1629 = vst [vmem:[#allocation3 + $0x420] sm:$0xff] %v1613
        %1630 = vst [vmem:[#allocation3 + $0x468] sm:$0xff] %v1614
        %v1631 = vld [vmem:[%s1566 + $0x1] sm:$0xff]
        %v1632 = vld [vmem:[%s1566 + $0x9] sm:$0xff]
        %v1633 = vld [vmem:[%s1566 + $0x19] sm:$0xff]
        %v1634 = vld [vmem:[%s1566 + $0x21] sm:$0xff]
        %v1635 = vld [vmem:[%s1566 + $0x31] sm:$0xff]
        %v1636 = vld [vmem:[%s1566 + $0x39] sm:$0xff]
        %v1637 = vld [vmem:[%s1566 + $0x49] sm:$0xff]
        %v1638 = vld [vmem:[%s1566 + $0x51] sm:$0xff]
        %v1639 = vld [vmem:[%s1566 + $0x61] sm:$0xff]
        %v1640 = vld [vmem:[%s1566 + $0x69] sm:$0xff]
        %v1641 = vld [vmem:[%s1566 + $0x79] sm:$0xff]
        %v1642 = vld [vmem:[%s1566 + $0x81] sm:$0xff]
        %v1643 = vld [vmem:[%s1566 + $0x91] sm:$0xff]
        %v1644 = vld [vmem:[%s1566 + $0x99] sm:$0xff]
        %v1645 = vld [vmem:[%s1566 + $0xa9] sm:$0xff]
        %v1646 = vld [vmem:[%s1566 + $0xb1] sm:$0xff]
        %v1647 = vld [vmem:[%s1566 + $0xc1] sm:$0xff]
        %v1648 = vld [vmem:[%s1566 + $0xc9] sm:$0xff]
        %v1649 = vld [vmem:[%s1566 + $0xd9] sm:$0xff]
        %v1650 = vld [vmem:[%s1566 + $0xe1] sm:$0xff]
        %v1651 = vld [vmem:[%s1566 + $0xf1] sm:$0xff]
        %v1652 = vld [vmem:[%s1566 + $0xf9] sm:$0xff]
        %v1653 = vld [vmem:[%s1566 + $0x109] sm:$0xff]
        %v1654 = vld [vmem:[%s1566 + $0x111] sm:$0xff]
        %v1655 = vld [vmem:[%s1566 + $0x121] sm:$0xff]
        %v1656 = vld [vmem:[%s1566 + $0x129] sm:$0xff]
        %v1657 = vld [vmem:[%s1566 + $0x139] sm:$0xff]
        %v1658 = vld [vmem:[%s1566 + $0x141] sm:$0xff]
        %v1659 = vld [vmem:[%s1566 + $0x151] sm:$0xff]
        %v1660 = vld [vmem:[%s1566 + $0x159] sm:$0xff]
        %v1661 = vld [vmem:[%s1566 + $0x169] sm:$0xff]
        %v1662 = vld [vmem:[%s1566 + $0x171] sm:$0xff]
        %v1663 = vpack.c.bf16 %v1632, %v1631
        %v1664 = vpack.c.bf16 %v1634, %v1633
        %v1665 = vpack.c.bf16 %v1636, %v1635
        %v1666 = vpack.c.bf16 %v1638, %v1637
        %v1667 = vpack.c.bf16 %v1640, %v1639
        %v1668 = vpack.c.bf16 %v1642, %v1641
        %v1669 = vpack.c.bf16 %v1644, %v1643
        %v1670 = vpack.c.bf16 %v1646, %v1645
        %v1671 = vpack.c.bf16 %v1648, %v1647
        %v1672 = vpack.c.bf16 %v1650, %v1649
        %v1673 = vpack.c.bf16 %v1652, %v1651
        %v1674 = vpack.c.bf16 %v1654, %v1653
        %v1675 = vpack.c.bf16 %v1656, %v1655
        %v1676 = vpack.c.bf16 %v1658, %v1657
        %v1677 = vpack.c.bf16 %v1660, %v1659
        %v1678 = vpack.c.bf16 %v1662, %v1661
        %1679 = vst [vmem:[#allocation3 + $0x38] sm:$0xff] %v1663
        %1680 = vst [vmem:[#allocation3 + $0x80] sm:$0xff] %v1664
        %1681 = vst [vmem:[#allocation3 + $0xc8] sm:$0xff] %v1665
        %1682 = vst [vmem:[#allocation3 + $0x110] sm:$0xff] %v1666
        %1683 = vst [vmem:[#allocation3 + $0x158] sm:$0xff] %v1667
        %1684 = vst [vmem:[#allocation3 + $0x1a0] sm:$0xff] %v1668
        %1685 = vst [vmem:[#allocation3 + $0x1e8] sm:$0xff] %v1669
        %1686 = vst [vmem:[#allocation3 + $0x230] sm:$0xff] %v1670
        %1687 = vst [vmem:[#allocation3 + $0x278] sm:$0xff] %v1671
        %1688 = vst [vmem:[#allocation3 + $0x2c0] sm:$0xff] %v1672
        %1689 = vst [vmem:[#allocation3 + $0x308] sm:$0xff] %v1673
        %1690 = vst [vmem:[#allocation3 + $0x350] sm:$0xff] %v1674
        %1691 = vst [vmem:[#allocation3 + $0x398] sm:$0xff] %v1675
        %1692 = vst [vmem:[#allocation3 + $0x3e0] sm:$0xff] %v1676
        %1693 = vst [vmem:[#allocation3 + $0x428] sm:$0xff] %v1677
        %1694 = vst [vmem:[#allocation3 + $0x470] sm:$0xff] %v1678
        %v1695 = vld [vmem:[%s1566 + $0x2] sm:$0xff]
        %v1696 = vld [vmem:[%s1566 + $0xa] sm:$0xff]
        %v1697 = vld [vmem:[%s1566 + $0x1a] sm:$0xff]
        %v1698 = vld [vmem:[%s1566 + $0x22] sm:$0xff]
        %v1699 = vld [vmem:[%s1566 + $0x32] sm:$0xff]
        %v1700 = vld [vmem:[%s1566 + $0x3a] sm:$0xff]
        %v1701 = vld [vmem:[%s1566 + $0x4a] sm:$0xff]
        %v1702 = vld [vmem:[%s1566 + $0x52] sm:$0xff]
        %v1703 = vld [vmem:[%s1566 + $0x62] sm:$0xff]
        %v1704 = vld [vmem:[%s1566 + $0x6a] sm:$0xff]
        %v1705 = vld [vmem:[%s1566 + $0x7a] sm:$0xff]
        %v1706 = vld [vmem:[%s1566 + $0x82] sm:$0xff]
        %v1707 = vld [vmem:[%s1566 + $0x92] sm:$0xff]
        %v1708 = vld [vmem:[%s1566 + $0x9a] sm:$0xff]
        %v1709 = vld [vmem:[%s1566 + $0xaa] sm:$0xff]
        %v1710 = vld [vmem:[%s1566 + $0xb2] sm:$0xff]
        %v1711 = vld [vmem:[%s1566 + $0xc2] sm:$0xff]
        %v1712 = vld [vmem:[%s1566 + $0xca] sm:$0xff]
        %v1713 = vld [vmem:[%s1566 + $0xda] sm:$0xff]
        %v1714 = vld [vmem:[%s1566 + $0xe2] sm:$0xff]
        %v1715 = vld [vmem:[%s1566 + $0xf2] sm:$0xff]
        %v1716 = vld [vmem:[%s1566 + $0xfa] sm:$0xff]
        %v1717 = vld [vmem:[%s1566 + $0x10a] sm:$0xff]
        %v1718 = vld [vmem:[%s1566 + $0x112] sm:$0xff]
        %v1719 = vld [vmem:[%s1566 + $0x122] sm:$0xff]
        %v1720 = vld [vmem:[%s1566 + $0x12a] sm:$0xff]
        %v1721 = vld [vmem:[%s1566 + $0x13a] sm:$0xff]
        %v1722 = vld [vmem:[%s1566 + $0x142] sm:$0xff]
        %v1723 = vld [vmem:[%s1566 + $0x152] sm:$0xff]
        %v1724 = vld [vmem:[%s1566 + $0x15a] sm:$0xff]
        %v1725 = vld [vmem:[%s1566 + $0x16a] sm:$0xff]
        %v1726 = vld [vmem:[%s1566 + $0x172] sm:$0xff]
        %v1727 = vpack.c.bf16 %v1696, %v1695
        %v1728 = vpack.c.bf16 %v1698, %v1697
        %v1729 = vpack.c.bf16 %v1700, %v1699
        %v1730 = vpack.c.bf16 %v1702, %v1701
        %v1731 = vpack.c.bf16 %v1704, %v1703
        %v1732 = vpack.c.bf16 %v1706, %v1705
        %v1733 = vpack.c.bf16 %v1708, %v1707
        %v1734 = vpack.c.bf16 %v1710, %v1709
        %v1735 = vpack.c.bf16 %v1712, %v1711
        %v1736 = vpack.c.bf16 %v1714, %v1713
        %v1737 = vpack.c.bf16 %v1716, %v1715
        %v1738 = vpack.c.bf16 %v1718, %v1717
        %v1739 = vpack.c.bf16 %v1720, %v1719
        %v1740 = vpack.c.bf16 %v1722, %v1721
        %v1741 = vpack.c.bf16 %v1724, %v1723
        %v1742 = vpack.c.bf16 %v1726, %v1725
        %1743 = vst [vmem:[#allocation3 + $0x40] sm:$0xff] %v1727
        %1744 = vst [vmem:[#allocation3 + $0x88] sm:$0xff] %v1728
        %1745 = vst [vmem:[#allocation3 + $0xd0] sm:$0xff] %v1729
        %1746 = vst [vmem:[#allocation3 + $0x118] sm:$0xff] %v1730
        %1747 = vst [vmem:[#allocation3 + $0x160] sm:$0xff] %v1731
        %1748 = vst [vmem:[#allocation3 + $0x1a8] sm:$0xff] %v1732
        %1749 = vst [vmem:[#allocation3 + $0x1f0] sm:$0xff] %v1733
        %1750 = vst [vmem:[#allocation3 + $0x238] sm:$0xff] %v1734
        %1751 = vst [vmem:[#allocation3 + $0x280] sm:$0xff] %v1735
        %1752 = vst [vmem:[#allocation3 + $0x2c8] sm:$0xff] %v1736
        %1753 = vst [vmem:[#allocation3 + $0x310] sm:$0xff] %v1737
        %1754 = vst [vmem:[#allocation3 + $0x358] sm:$0xff] %v1738
        %1755 = vst [vmem:[#allocation3 + $0x3a0] sm:$0xff] %v1739
        %1756 = vst [vmem:[#allocation3 + $0x3e8] sm:$0xff] %v1740
        %1757 = vst [vmem:[#allocation3 + $0x430] sm:$0xff] %v1741
        %1758 = vst [vmem:[#allocation3 + $0x478] sm:$0xff] %v1742
        %v1759 = vld [vmem:[#allocation3] sm:$0xff]
        %v1760 = vld [vmem:[#allocation3 + $0x8] sm:$0xff]
        %v1761 = vld [vmem:[#allocation3 + $0x10] sm:$0xff]
        %v1762 = vld [vmem:[#allocation3 + $0x18] sm:$0xff]
        %v1763 = vld [vmem:[#allocation3 + $0x20] sm:$0xff]
        %v1764 = vld [vmem:[#allocation3 + $0x28] sm:$0xff]
        %v1765 = vld [vmem:[#allocation3 + $0x30] sm:$0xff]
        %v1766 = vld [vmem:[#allocation3 + $0x38] sm:$0xff]
        %v1767 = vld [vmem:[#allocation3 + $0x40] sm:$0xff]
        %v1768 = vld [vmem:[#allocation3 + $0x48] sm:$0xff]
        %v1769 = vld [vmem:[#allocation3 + $0x50] sm:$0xff]
        %v1770 = vld [vmem:[#allocation3 + $0x58] sm:$0xff]
        %v1771 = vld [vmem:[#allocation3 + $0x60] sm:$0xff]
        %v1772 = vld [vmem:[#allocation3 + $0x68] sm:$0xff]
        %v1773 = vld [vmem:[#allocation3 + $0x70] sm:$0xff]
        %v1774 = vld [vmem:[#allocation3 + $0x78] sm:$0xff]
        %v1775 = vld [vmem:[#allocation3 + $0x80] sm:$0xff]
        %v1776 = vld [vmem:[#allocation3 + $0x88] sm:$0xff]
        %v1777 = vld [vmem:[#allocation3 + $0x90] sm:$0xff]
        %v1778 = vld [vmem:[#allocation3 + $0x98] sm:$0xff]
        %v1779 = vld [vmem:[#allocation3 + $0xa0] sm:$0xff]
        %v1780 = vld [vmem:[#allocation3 + $0xa8] sm:$0xff]
        %v1781 = vld [vmem:[#allocation3 + $0xb0] sm:$0xff]
        %v1782 = vld [vmem:[#allocation3 + $0xb8] sm:$0xff]
        %v1783 = vld [vmem:[#allocation3 + $0xc0] sm:$0xff]
        %v1784 = vld [vmem:[#allocation3 + $0xc8] sm:$0xff]
        %v1785 = vld [vmem:[#allocation3 + $0xd0] sm:$0xff]
        %v1786 = vld [vmem:[#allocation3 + $0xd8] sm:$0xff]
        %v1787 = vld [vmem:[#allocation3 + $0xe0] sm:$0xff]
        %v1788 = vld [vmem:[#allocation3 + $0xe8] sm:$0xff]
        %v1789 = vld [vmem:[#allocation3 + $0xf0] sm:$0xff]
        %v1790 = vld [vmem:[#allocation3 + $0xf8] sm:$0xff]
        %v1791 = vld [vmem:[#allocation3 + $0x100] sm:$0xff]
        %v1792 = vld [vmem:[#allocation3 + $0x108] sm:$0xff]
        %v1793 = vld [vmem:[#allocation3 + $0x110] sm:$0xff]
        %v1794 = vld [vmem:[#allocation3 + $0x118] sm:$0xff]
        %v1795 = vld [vmem:[#allocation3 + $0x120] sm:$0xff]
        %v1796 = vld [vmem:[#allocation3 + $0x128] sm:$0xff]
        %v1797 = vld [vmem:[#allocation3 + $0x130] sm:$0xff]
        %v1798 = vld [vmem:[#allocation3 + $0x138] sm:$0xff]
        %v1799 = vld [vmem:[#allocation3 + $0x140] sm:$0xff]
        %v1800 = vld [vmem:[#allocation3 + $0x148] sm:$0xff]
        %v1801 = vld [vmem:[#allocation3 + $0x150] sm:$0xff]
        %v1802 = vld [vmem:[#allocation3 + $0x158] sm:$0xff]
        %v1803 = vld [vmem:[#allocation3 + $0x160] sm:$0xff]
        %v1804 = vld [vmem:[#allocation3 + $0x168] sm:$0xff]
        %v1805 = vld [vmem:[#allocation3 + $0x170] sm:$0xff]
        %v1806 = vld [vmem:[#allocation3 + $0x178] sm:$0xff]
        %v1807 = vld [vmem:[#allocation3 + $0x180] sm:$0xff]
        %v1808 = vld [vmem:[#allocation3 + $0x188] sm:$0xff]
        %v1809 = vld [vmem:[#allocation3 + $0x190] sm:$0xff]
        %v1810 = vld [vmem:[#allocation3 + $0x198] sm:$0xff]
        %v1811 = vld [vmem:[#allocation3 + $0x1a0] sm:$0xff]
        %v1812 = vld [vmem:[#allocation3 + $0x1a8] sm:$0xff]
        %v1813 = vld [vmem:[#allocation3 + $0x1b0] sm:$0xff]
        %v1814 = vld [vmem:[#allocation3 + $0x1b8] sm:$0xff]
        %v1815 = vld [vmem:[#allocation3 + $0x1c0] sm:$0xff]
        %v1816 = vld [vmem:[#allocation3 + $0x1c8] sm:$0xff]
        %v1817 = vld [vmem:[#allocation3 + $0x1d0] sm:$0xff]
        %v1818 = vld [vmem:[#allocation3 + $0x1d8] sm:$0xff]
        %v1819 = vld [vmem:[#allocation3 + $0x1e0] sm:$0xff]
        %v1820 = vld [vmem:[#allocation3 + $0x1e8] sm:$0xff]
        %v1821 = vld [vmem:[#allocation3 + $0x1f0] sm:$0xff]
        %v1822 = vld [vmem:[#allocation3 + $0x1f8] sm:$0xff]
        %v1823 = vld [vmem:[#allocation3 + $0x200] sm:$0xff]
        %v1824 = vld [vmem:[#allocation3 + $0x208] sm:$0xff]
        %v1825 = vld [vmem:[#allocation3 + $0x210] sm:$0xff]
        %v1826 = vld [vmem:[#allocation3 + $0x218] sm:$0xff]
        %v1827 = vld [vmem:[#allocation3 + $0x220] sm:$0xff]
        %v1828 = vld [vmem:[#allocation3 + $0x228] sm:$0xff]
        %v1829 = vld [vmem:[#allocation3 + $0x230] sm:$0xff]
        %v1830 = vld [vmem:[#allocation3 + $0x238] sm:$0xff]
        %v1831 = vld [vmem:[#allocation3 + $0x240] sm:$0xff]
        %v1832 = vld [vmem:[#allocation3 + $0x248] sm:$0xff]
        %v1833 = vld [vmem:[#allocation3 + $0x250] sm:$0xff]
        %v1834 = vld [vmem:[#allocation3 + $0x258] sm:$0xff]
        %v1835 = vld [vmem:[#allocation3 + $0x260] sm:$0xff]
        %v1836 = vld [vmem:[#allocation3 + $0x268] sm:$0xff]
        %v1837 = vld [vmem:[#allocation3 + $0x270] sm:$0xff]
        %v1838 = vld [vmem:[#allocation3 + $0x278] sm:$0xff]
        %v1839 = vld [vmem:[#allocation3 + $0x280] sm:$0xff]
        %v1840 = vld [vmem:[#allocation3 + $0x288] sm:$0xff]
        %v1841 = vld [vmem:[#allocation3 + $0x290] sm:$0xff]
        %v1842 = vld [vmem:[#allocation3 + $0x298] sm:$0xff]
        %v1843 = vld [vmem:[#allocation3 + $0x2a0] sm:$0xff]
        %v1844 = vld [vmem:[#allocation3 + $0x2a8] sm:$0xff]
        %v1845 = vld [vmem:[#allocation3 + $0x2b0] sm:$0xff]
        %v1846 = vld [vmem:[#allocation3 + $0x2b8] sm:$0xff]
        %v1847 = vld [vmem:[#allocation3 + $0x2c0] sm:$0xff]
        %v1848 = vld [vmem:[#allocation3 + $0x2c8] sm:$0xff]
        %v1849 = vld [vmem:[#allocation3 + $0x2d0] sm:$0xff]
        %v1850 = vld [vmem:[#allocation3 + $0x2d8] sm:$0xff]
        %v1851 = vld [vmem:[#allocation3 + $0x2e0] sm:$0xff]
        %v1852 = vld [vmem:[#allocation3 + $0x2e8] sm:$0xff]
        %v1853 = vld [vmem:[#allocation3 + $0x2f0] sm:$0xff]
        %v1854 = vld [vmem:[#allocation3 + $0x2f8] sm:$0xff]
        %v1855 = vld [vmem:[#allocation3 + $0x300] sm:$0xff]
        %v1856 = vld [vmem:[#allocation3 + $0x308] sm:$0xff]
        %v1857 = vld [vmem:[#allocation3 + $0x310] sm:$0xff]
        %v1858 = vld [vmem:[#allocation3 + $0x318] sm:$0xff]
        %v1859 = vld [vmem:[#allocation3 + $0x320] sm:$0xff]
        %v1860 = vld [vmem:[#allocation3 + $0x328] sm:$0xff]
        %v1861 = vld [vmem:[#allocation3 + $0x330] sm:$0xff]
        %v1862 = vld [vmem:[#allocation3 + $0x338] sm:$0xff]
        %v1863 = vld [vmem:[#allocation3 + $0x340] sm:$0xff]
        %v1864 = vld [vmem:[#allocation3 + $0x348] sm:$0xff]
        %v1865 = vld [vmem:[#allocation3 + $0x350] sm:$0xff]
        %v1866 = vld [vmem:[#allocation3 + $0x358] sm:$0xff]
        %v1867 = vld [vmem:[#allocation3 + $0x360] sm:$0xff]
        %v1868 = vld [vmem:[#allocation3 + $0x368] sm:$0xff]
        %v1869 = vld [vmem:[#allocation3 + $0x370] sm:$0xff]
        %v1870 = vld [vmem:[#allocation3 + $0x378] sm:$0xff]
        %v1871 = vld [vmem:[#allocation3 + $0x380] sm:$0xff]
        %v1872 = vld [vmem:[#allocation3 + $0x388] sm:$0xff]
        %v1873 = vld [vmem:[#allocation3 + $0x390] sm:$0xff]
        %v1874 = vld [vmem:[#allocation3 + $0x398] sm:$0xff]
        %v1875 = vld [vmem:[#allocation3 + $0x3a0] sm:$0xff]
        %v1876 = vld [vmem:[#allocation3 + $0x3a8] sm:$0xff]
        %v1877 = vld [vmem:[#allocation3 + $0x3b0] sm:$0xff]
        %v1878 = vld [vmem:[#allocation3 + $0x3b8] sm:$0xff]
        %v1879 = vld [vmem:[#allocation3 + $0x3c0] sm:$0xff]
        %v1880 = vld [vmem:[#allocation3 + $0x3c8] sm:$0xff]
        %v1881 = vld [vmem:[#allocation3 + $0x3d0] sm:$0xff]
        %v1882 = vld [vmem:[#allocation3 + $0x3d8] sm:$0xff]
        %v1883 = vld [vmem:[#allocation3 + $0x3e0] sm:$0xff]
        %v1884 = vld [vmem:[#allocation3 + $0x3e8] sm:$0xff]
        %v1885 = vld [vmem:[#allocation3 + $0x3f0] sm:$0xff]
        %v1886 = vld [vmem:[#allocation3 + $0x3f8] sm:$0xff]
        %v1887 = vld [vmem:[#allocation3 + $0x400] sm:$0xff]
        %v1888 = vld [vmem:[#allocation3 + $0x408] sm:$0xff]
        %v1889 = vld [vmem:[#allocation3 + $0x410] sm:$0xff]
        %v1890 = vld [vmem:[#allocation3 + $0x418] sm:$0xff]
        %v1891 = vld [vmem:[#allocation3 + $0x420] sm:$0xff]
        %v1892 = vld [vmem:[#allocation3 + $0x428] sm:$0xff]
        %v1893 = vld [vmem:[#allocation3 + $0x430] sm:$0xff]
        %v1894 = vld [vmem:[#allocation3 + $0x438] sm:$0xff]
        %v1895 = vld [vmem:[#allocation3 + $0x440] sm:$0xff]
        %v1896 = vld [vmem:[#allocation3 + $0x448] sm:$0xff]
        %v1897 = vld [vmem:[#allocation3 + $0x450] sm:$0xff]
        %v1898 = vld [vmem:[#allocation3 + $0x458] sm:$0xff]
        %v1899 = vld [vmem:[#allocation3 + $0x460] sm:$0xff]
        %v1900 = vld [vmem:[#allocation3 + $0x468] sm:$0xff]
        %v1901 = vld [vmem:[#allocation3 + $0x470] sm:$0xff]
        %v1902 = vld [vmem:[#allocation3 + $0x478] sm:$0xff]
        %v1903 = vld [vmem:[#allocation11] sm:$0xf]
        %v1904 = vld [vmem:[#allocation11 + $0x4] sm:$0xf]
        %v1905 = vld [vmem:[#allocation11 + $0x8] sm:$0xf]
        %v1906 = vld [vmem:[#allocation11 + $0xc] sm:$0xf]
        %v1907 = vld [vmem:[#allocation11 + $0x10] sm:$0xf]
        %v1908 = vld [vmem:[#allocation11 + $0x14] sm:$0xf]
        %v1909 = vld [vmem:[#allocation11 + $0x18] sm:$0xf]
        %v1910 = vld [vmem:[#allocation11 + $0x1c] sm:$0xf]
        %v1911 = vld [vmem:[#allocation11 + $0x20] sm:$0xf]
        %v1912 = vld [vmem:[#allocation11 + $0x24] sm:$0xf]
        %v1913 = vld [vmem:[#allocation11 + $0x28] sm:$0xf]
        %v1914 = vld [vmem:[#allocation11 + $0x2c] sm:$0xf]
        %v1915 = vld [vmem:[#allocation11 + $0x30] sm:$0xf]
        %v1916 = vld [vmem:[#allocation11 + $0x34] sm:$0xf]
        %v1917 = vld [vmem:[#allocation11 + $0x38] sm:$0xf]
        %v1918 = vld [vmem:[#allocation11 + $0x3c] sm:$0xf]
        %v1919 = vld [vmem:[#allocation11 + $0x40] sm:$0xf]
        %v1920 = vld [vmem:[#allocation11 + $0x44] sm:$0xf]
        %v1921 = vld [vmem:[#allocation11 + $0x48] sm:$0xf]
        %v1922 = vld [vmem:[#allocation11 + $0x4c] sm:$0xf]
        %v1923 = vld [vmem:[#allocation11 + $0x50] sm:$0xf]
        %v1924 = vld [vmem:[#allocation11 + $0x54] sm:$0xf]
        %v1925 = vld [vmem:[#allocation11 + $0x58] sm:$0xf]
        %v1926 = vld [vmem:[#allocation11 + $0x5c] sm:$0xf]
        %v1927 = vld [vmem:[#allocation11 + $0x60] sm:$0xf]
        %v1928 = vld [vmem:[#allocation11 + $0x64] sm:$0xf]
        %v1929 = vld [vmem:[#allocation11 + $0x68] sm:$0xf]
        %v1930 = vld [vmem:[#allocation11 + $0x6c] sm:$0xf]
        %v1931 = vld [vmem:[#allocation11 + $0x70] sm:$0xf]
        %v1932 = vld [vmem:[#allocation11 + $0x74] sm:$0xf]
        %v1933 = vld [vmem:[#allocation11 + $0x78] sm:$0xf]
        %v1934 = vld [vmem:[#allocation11 + $0x7c] sm:$0xf]
        %v1935 = vld [vmem:[#allocation11 + $0x80] sm:$0xf]
        %v1936 = vld [vmem:[#allocation11 + $0x84] sm:$0xf]
        %v1937 = vld [vmem:[#allocation11 + $0x88] sm:$0xf]
        %v1938 = vld [vmem:[#allocation11 + $0x8c] sm:$0xf]
        %v1939 = vld [vmem:[#allocation11 + $0x90] sm:$0xf]
        %v1940 = vld [vmem:[#allocation11 + $0x94] sm:$0xf]
        %v1941 = vld [vmem:[#allocation11 + $0x98] sm:$0xf]
        %v1942 = vld [vmem:[#allocation11 + $0x9c] sm:$0xf]
        %v1943 = vld [vmem:[#allocation11 + $0xa0] sm:$0xf]
        %v1944 = vld [vmem:[#allocation11 + $0xa4] sm:$0xf]
        %v1945 = vld [vmem:[#allocation11 + $0xa8] sm:$0xf]
        %v1946 = vld [vmem:[#allocation11 + $0xac] sm:$0xf]
        %v1947 = vld [vmem:[#allocation11 + $0xb0] sm:$0xf]
        %v1948 = vld [vmem:[#allocation11 + $0xb4] sm:$0xf]
        %v1949 = vld [vmem:[#allocation11 + $0xb8] sm:$0xf]
        %v1950 = vld [vmem:[#allocation11 + $0xbc] sm:$0xf]
        %v1951 = vld [vmem:[#allocation11 + $0xc0] sm:$0xf]
        %v1952 = vld [vmem:[#allocation11 + $0xc4] sm:$0xf]
        %v1953 = vld [vmem:[#allocation11 + $0xc8] sm:$0xf]
        %v1954 = vld [vmem:[#allocation11 + $0xcc] sm:$0xf]
        %v1955 = vld [vmem:[#allocation11 + $0xd0] sm:$0xf]
        %v1956 = vld [vmem:[#allocation11 + $0xd4] sm:$0xf]
        %v1957 = vld [vmem:[#allocation11 + $0xd8] sm:$0xf]
        %v1958 = vld [vmem:[#allocation11 + $0xdc] sm:$0xf]
        %v1959 = vld [vmem:[#allocation11 + $0xe0] sm:$0xf]
        %v1960 = vld [vmem:[#allocation11 + $0xe4] sm:$0xf]
        %v1961 = vld [vmem:[#allocation11 + $0xe8] sm:$0xf]
        %v1962 = vld [vmem:[#allocation11 + $0xec] sm:$0xf]
        %v1963 = vld [vmem:[#allocation11 + $0xf0] sm:$0xf]
        %v1964 = vld [vmem:[#allocation11 + $0xf4] sm:$0xf]
        %v1965 = vld [vmem:[#allocation11 + $0xf8] sm:$0xf]
        %v1966 = vld [vmem:[#allocation11 + $0xfc] sm:$0xf]
        %v1967 = vld [vmem:[#allocation11 + $0x100] sm:$0xf]
        %v1968 = vld [vmem:[#allocation11 + $0x104] sm:$0xf]
        %v1969 = vld [vmem:[#allocation11 + $0x108] sm:$0xf]
        %v1970 = vld [vmem:[#allocation11 + $0x10c] sm:$0xf]
        %v1971 = vld [vmem:[#allocation11 + $0x110] sm:$0xf]
        %v1972 = vld [vmem:[#allocation11 + $0x114] sm:$0xf]
        %v1973 = vld [vmem:[#allocation11 + $0x118] sm:$0xf]
        %v1974 = vld [vmem:[#allocation11 + $0x11c] sm:$0xf]
        %v1975 = vld [vmem:[#allocation11 + $0x120] sm:$0xf]
        %v1976 = vld [vmem:[#allocation11 + $0x124] sm:$0xf]
        %v1977 = vld [vmem:[#allocation11 + $0x128] sm:$0xf]
        %v1978 = vld [vmem:[#allocation11 + $0x12c] sm:$0xf]
        %v1979 = vld [vmem:[#allocation11 + $0x130] sm:$0xf]
        %v1980 = vld [vmem:[#allocation11 + $0x134] sm:$0xf]
        %v1981 = vld [vmem:[#allocation11 + $0x138] sm:$0xf]
        %v1982 = vld [vmem:[#allocation11 + $0x13c] sm:$0xf]
        %v1983 = vld [vmem:[#allocation11 + $0x140] sm:$0xf]
        %v1984 = vld [vmem:[#allocation11 + $0x144] sm:$0xf]
        %v1985 = vld [vmem:[#allocation11 + $0x148] sm:$0xf]
        %v1986 = vld [vmem:[#allocation11 + $0x14c] sm:$0xf]
        %v1987 = vld [vmem:[#allocation11 + $0x150] sm:$0xf]
        %v1988 = vld [vmem:[#allocation11 + $0x154] sm:$0xf]
        %v1989 = vld [vmem:[#allocation11 + $0x158] sm:$0xf]
        %v1990 = vld [vmem:[#allocation11 + $0x15c] sm:$0xf]
        %v1991 = vld [vmem:[#allocation11 + $0x160] sm:$0xf]
        %v1992 = vld [vmem:[#allocation11 + $0x164] sm:$0xf]
        %v1993 = vld [vmem:[#allocation11 + $0x168] sm:$0xf]
        %v1994 = vld [vmem:[#allocation11 + $0x16c] sm:$0xf]
        %v1995 = vld [vmem:[#allocation11 + $0x170] sm:$0xf]
        %v1996 = vld [vmem:[#allocation11 + $0x174] sm:$0xf]
        %v1997 = vld [vmem:[#allocation11 + $0x178] sm:$0xf]
        %v1998 = vld [vmem:[#allocation11 + $0x17c] sm:$0xf]
        %v1999 = vld [vmem:[#allocation11 + $0x180] sm:$0xf]
        %v2000 = vld [vmem:[#allocation11 + $0x184] sm:$0xf]
        %v2001 = vld [vmem:[#allocation11 + $0x188] sm:$0xf]
        %v2002 = vld [vmem:[#allocation11 + $0x18c] sm:$0xf]
        %v2003 = vld [vmem:[#allocation11 + $0x190] sm:$0xf]
        %v2004 = vld [vmem:[#allocation11 + $0x194] sm:$0xf]
        %v2005 = vld [vmem:[#allocation11 + $0x198] sm:$0xf]
        %v2006 = vld [vmem:[#allocation11 + $0x19c] sm:$0xf]
        %v2007 = vld [vmem:[#allocation11 + $0x1a0] sm:$0xf]
        %v2008 = vld [vmem:[#allocation11 + $0x1a4] sm:$0xf]
        %v2009 = vld [vmem:[#allocation11 + $0x1a8] sm:$0xf]
        %v2010 = vld [vmem:[#allocation11 + $0x1ac] sm:$0xf]
        %v2011 = vld [vmem:[#allocation11 + $0x1b0] sm:$0xf]
        %v2012 = vld [vmem:[#allocation11 + $0x1b4] sm:$0xf]
        %v2013 = vld [vmem:[#allocation11 + $0x1b8] sm:$0xf]
        %v2014 = vld [vmem:[#allocation11 + $0x1bc] sm:$0xf]
        %v2015 = vld [vmem:[#allocation11 + $0x1c0] sm:$0xf]
        %v2016 = vld [vmem:[#allocation11 + $0x1c4] sm:$0xf]
        %v2017 = vld [vmem:[#allocation11 + $0x1c8] sm:$0xf]
        %v2018 = vld [vmem:[#allocation11 + $0x1cc] sm:$0xf]
        %v2019 = vld [vmem:[#allocation11 + $0x1d0] sm:$0xf]
        %v2020 = vld [vmem:[#allocation11 + $0x1d4] sm:$0xf]
        %v2021 = vld [vmem:[#allocation11 + $0x1d8] sm:$0xf]
        %v2022 = vld [vmem:[#allocation11 + $0x1dc] sm:$0xf]
        %v2023 = vld [vmem:[#allocation11 + $0x1e0] sm:$0xf]
        %v2024 = vld [vmem:[#allocation11 + $0x1e4] sm:$0xf]
        %v2025 = vld [vmem:[#allocation11 + $0x1e8] sm:$0xf]
        %v2026 = vld [vmem:[#allocation11 + $0x1ec] sm:$0xf]
        %v2027 = vld [vmem:[#allocation11 + $0x1f0] sm:$0xf]
        %v2028 = vld [vmem:[#allocation11 + $0x1f4] sm:$0xf]
        %v2029 = vld [vmem:[#allocation11 + $0x1f8] sm:$0xf]
        %v2030 = vld [vmem:[#allocation11 + $0x1fc] sm:$0xf]
        %v2031 = vld [vmem:[#allocation11 + $0x200] sm:$0xf]
        %v2032 = vld [vmem:[#allocation11 + $0x204] sm:$0xf]
        %v2033 = vld [vmem:[#allocation11 + $0x208] sm:$0xf]
        %v2034 = vld [vmem:[#allocation11 + $0x20c] sm:$0xf]
        %v2035 = vld [vmem:[#allocation11 + $0x210] sm:$0xf]
        %v2036 = vld [vmem:[#allocation11 + $0x214] sm:$0xf]
        %v2037 = vld [vmem:[#allocation11 + $0x218] sm:$0xf]
        %v2038 = vld [vmem:[#allocation11 + $0x21c] sm:$0xf]
        %v2039 = vld [vmem:[#allocation11 + $0x220] sm:$0xf]
        %v2040 = vld [vmem:[#allocation11 + $0x224] sm:$0xf]
        %v2041 = vld [vmem:[#allocation11 + $0x228] sm:$0xf]
        %v2042 = vld [vmem:[#allocation11 + $0x22c] sm:$0xf]
        %v2043 = vld [vmem:[#allocation11 + $0x230] sm:$0xf]
        %v2044 = vld [vmem:[#allocation11 + $0x234] sm:$0xf]
        %v2045 = vld [vmem:[#allocation11 + $0x238] sm:$0xf]
        %v2046 = vld [vmem:[#allocation11 + $0x23c] sm:$0xf]
        %v2191 = vunpack.c.l.b16 %v1903
        %v2192 = vunpack.c.l.b16 %v1904
        %v2193 = vunpack.c.l.b16 %v1905
        %v2194 = vunpack.c.l.b16 %v1906
        %v2195 = vunpack.c.l.b16 %v1907
        %v2196 = vunpack.c.l.b16 %v1908
        %v2197 = vunpack.c.l.b16 %v1909
        %v2198 = vunpack.c.l.b16 %v1910
        %v2199 = vunpack.c.l.b16 %v1911
        %v2200 = vunpack.c.l.b16 %v1912
        %v2201 = vunpack.c.l.b16 %v1913
        %v2202 = vunpack.c.l.b16 %v1914
        %v2203 = vunpack.c.l.b16 %v1915
        %v2204 = vunpack.c.l.b16 %v1916
        %v2205 = vunpack.c.l.b16 %v1917
        %v2206 = vunpack.c.l.b16 %v1918
        %v2207 = vunpack.c.l.b16 %v1919
        %v2208 = vunpack.c.l.b16 %v1920
        %v2209 = vunpack.c.l.b16 %v1921
        %v2210 = vunpack.c.l.b16 %v1922
        %v2211 = vunpack.c.l.b16 %v1923
        %v2212 = vunpack.c.l.b16 %v1924
        %v2213 = vunpack.c.l.b16 %v1925
        %v2214 = vunpack.c.l.b16 %v1926
        %v2215 = vunpack.c.l.b16 %v1927
        %v2216 = vunpack.c.l.b16 %v1928
        %v2217 = vunpack.c.l.b16 %v1929
        %v2218 = vunpack.c.l.b16 %v1930
        %v2219 = vunpack.c.l.b16 %v1931
        %v2220 = vunpack.c.l.b16 %v1932
        %v2221 = vunpack.c.l.b16 %v1933
        %v2222 = vunpack.c.l.b16 %v1934
        %v2223 = vunpack.c.l.b16 %v1935
        %v2224 = vunpack.c.l.b16 %v1936
        %v2225 = vunpack.c.l.b16 %v1937
        %v2226 = vunpack.c.l.b16 %v1938
        %v2227 = vunpack.c.l.b16 %v1939
        %v2228 = vunpack.c.l.b16 %v1940
        %v2229 = vunpack.c.l.b16 %v1941
        %v2230 = vunpack.c.l.b16 %v1942
        %v2231 = vunpack.c.l.b16 %v1943
        %v2232 = vunpack.c.l.b16 %v1944
        %v2233 = vunpack.c.l.b16 %v1945
        %v2234 = vunpack.c.l.b16 %v1946
        %v2235 = vunpack.c.l.b16 %v1947
        %v2236 = vunpack.c.l.b16 %v1948
        %v2237 = vunpack.c.l.b16 %v1949
        %v2238 = vunpack.c.l.b16 %v1950
        %v2239 = vunpack.c.l.b16 %v1951
        %v2240 = vunpack.c.l.b16 %v1952
        %v2241 = vunpack.c.l.b16 %v1953
        %v2242 = vunpack.c.l.b16 %v1954
        %v2243 = vunpack.c.l.b16 %v1955
        %v2244 = vunpack.c.l.b16 %v1956
        %v2245 = vunpack.c.l.b16 %v1957
        %v2246 = vunpack.c.l.b16 %v1958
        %v2247 = vunpack.c.l.b16 %v1959
        %v2248 = vunpack.c.l.b16 %v1960
        %v2249 = vunpack.c.l.b16 %v1961
        %v2250 = vunpack.c.l.b16 %v1962
        %v2251 = vunpack.c.l.b16 %v1963
        %v2252 = vunpack.c.l.b16 %v1964
        %v2253 = vunpack.c.l.b16 %v1965
        %v2254 = vunpack.c.l.b16 %v1966
        %v2255 = vunpack.c.l.b16 %v1967
        %v2256 = vunpack.c.l.b16 %v1968
        %v2257 = vunpack.c.l.b16 %v1969
        %v2258 = vunpack.c.l.b16 %v1970
        %v2259 = vunpack.c.l.b16 %v1971
        %v2260 = vunpack.c.l.b16 %v1972
        %v2261 = vunpack.c.l.b16 %v1973
        %v2262 = vunpack.c.l.b16 %v1974
        %v2263 = vunpack.c.l.b16 %v1975
        %v2264 = vunpack.c.l.b16 %v1976
        %v2265 = vunpack.c.l.b16 %v1977
        %v2266 = vunpack.c.l.b16 %v1978
        %v2267 = vunpack.c.l.b16 %v1979
        %v2268 = vunpack.c.l.b16 %v1980
        %v2269 = vunpack.c.l.b16 %v1981
        %v2270 = vunpack.c.l.b16 %v1982
        %v2271 = vunpack.c.l.b16 %v1983
        %v2272 = vunpack.c.l.b16 %v1984
        %v2273 = vunpack.c.l.b16 %v1985
        %v2274 = vunpack.c.l.b16 %v1986
        %v2275 = vunpack.c.l.b16 %v1987
        %v2276 = vunpack.c.l.b16 %v1988
        %v2277 = vunpack.c.l.b16 %v1989
        %v2278 = vunpack.c.l.b16 %v1990
        %v2279 = vunpack.c.l.b16 %v1991
        %v2280 = vunpack.c.l.b16 %v1992
        %v2281 = vunpack.c.l.b16 %v1993
        %v2282 = vunpack.c.l.b16 %v1994
        %v2283 = vunpack.c.l.b16 %v1995
        %v2284 = vunpack.c.l.b16 %v1996
        %v2285 = vunpack.c.l.b16 %v1997
        %v2286 = vunpack.c.l.b16 %v1998
        %v2287 = vunpack.c.l.b16 %v1999
        %v2288 = vunpack.c.l.b16 %v2000
        %v2289 = vunpack.c.l.b16 %v2001
        %v2290 = vunpack.c.l.b16 %v2002
        %v2291 = vunpack.c.l.b16 %v2003
        %v2292 = vunpack.c.l.b16 %v2004
        %v2293 = vunpack.c.l.b16 %v2005
        %v2294 = vunpack.c.l.b16 %v2006
        %v2295 = vunpack.c.l.b16 %v2007
        %v2296 = vunpack.c.l.b16 %v2008
        %v2297 = vunpack.c.l.b16 %v2009
        %v2298 = vunpack.c.l.b16 %v2010
        %v2299 = vunpack.c.l.b16 %v2011
        %v2300 = vunpack.c.l.b16 %v2012
        %v2301 = vunpack.c.l.b16 %v2013
        %v2302 = vunpack.c.l.b16 %v2014
        %v2303 = vunpack.c.l.b16 %v2015
        %v2304 = vunpack.c.l.b16 %v2016
        %v2305 = vunpack.c.l.b16 %v2017
        %v2306 = vunpack.c.l.b16 %v2018
        %v2307 = vunpack.c.l.b16 %v2019
        %v2308 = vunpack.c.l.b16 %v2020
        %v2309 = vunpack.c.l.b16 %v2021
        %v2310 = vunpack.c.l.b16 %v2022
        %v2311 = vunpack.c.l.b16 %v2023
        %v2312 = vunpack.c.l.b16 %v2024
        %v2313 = vunpack.c.l.b16 %v2025
        %v2314 = vunpack.c.l.b16 %v2026
        %v2315 = vunpack.c.l.b16 %v2027
        %v2316 = vunpack.c.l.b16 %v2028
        %v2317 = vunpack.c.l.b16 %v2029
        %v2318 = vunpack.c.l.b16 %v2030
        %v2319 = vunpack.c.l.b16 %v2031
        %v2320 = vunpack.c.l.b16 %v2032
        %v2321 = vunpack.c.l.b16 %v2033
        %v2322 = vunpack.c.l.b16 %v2034
        %v2323 = vunpack.c.l.b16 %v2035
        %v2324 = vunpack.c.l.b16 %v2036
        %v2325 = vunpack.c.l.b16 %v2037
        %v2326 = vunpack.c.l.b16 %v2038
        %v2327 = vunpack.c.l.b16 %v2039
        %v2328 = vunpack.c.l.b16 %v2040
        %v2329 = vunpack.c.l.b16 %v2041
        %v2330 = vunpack.c.l.b16 %v2042
        %v2331 = vunpack.c.l.b16 %v2043
        %v2332 = vunpack.c.l.b16 %v2044
        %v2333 = vunpack.c.l.b16 %v2045
        %v2334 = vunpack.c.l.b16 %v2046
        %v2335 = vpack.c.b16 %v2192, %v2191
        %v2336 = vpack.c.b16 %v2194, %v2193
        %v2337 = vpack.c.b16 %v2196, %v2195
        %v2338 = vpack.c.b16 %v2198, %v2197
        %v2339 = vpack.c.b16 %v2200, %v2199
        %v2340 = vpack.c.b16 %v2202, %v2201
        %v2341 = vpack.c.b16 %v2204, %v2203
        %v2342 = vpack.c.b16 %v2206, %v2205
        %v2343 = vpack.c.b16 %v2208, %v2207
        %v2344 = vpack.c.b16 %v2210, %v2209
        %v2345 = vpack.c.b16 %v2212, %v2211
        %v2346 = vpack.c.b16 %v2214, %v2213
        %v2347 = vpack.c.b16 %v2216, %v2215
        %v2348 = vpack.c.b16 %v2218, %v2217
        %v2349 = vpack.c.b16 %v2220, %v2219
        %v2350 = vpack.c.b16 %v2222, %v2221
        %v2351 = vpack.c.b16 %v2224, %v2223
        %v2352 = vpack.c.b16 %v2226, %v2225
        %v2353 = vpack.c.b16 %v2228, %v2227
        %v2354 = vpack.c.b16 %v2230, %v2229
        %v2355 = vpack.c.b16 %v2232, %v2231
        %v2356 = vpack.c.b16 %v2234, %v2233
        %v2357 = vpack.c.b16 %v2236, %v2235
        %v2358 = vpack.c.b16 %v2238, %v2237
        %v2359 = vpack.c.b16 %v2240, %v2239
        %v2360 = vpack.c.b16 %v2242, %v2241
        %v2361 = vpack.c.b16 %v2244, %v2243
        %v2362 = vpack.c.b16 %v2246, %v2245
        %v2363 = vpack.c.b16 %v2248, %v2247
        %v2364 = vpack.c.b16 %v2250, %v2249
        %v2365 = vpack.c.b16 %v2252, %v2251
        %v2366 = vpack.c.b16 %v2254, %v2253
        %v2367 = vpack.c.b16 %v2256, %v2255
        %v2368 = vpack.c.b16 %v2258, %v2257
        %v2369 = vpack.c.b16 %v2260, %v2259
        %v2370 = vpack.c.b16 %v2262, %v2261
        %v2371 = vpack.c.b16 %v2264, %v2263
        %v2372 = vpack.c.b16 %v2266, %v2265
        %v2373 = vpack.c.b16 %v2268, %v2267
        %v2374 = vpack.c.b16 %v2270, %v2269
        %v2375 = vpack.c.b16 %v2272, %v2271
        %v2376 = vpack.c.b16 %v2274, %v2273
        %v2377 = vpack.c.b16 %v2276, %v2275
        %v2378 = vpack.c.b16 %v2278, %v2277
        %v2379 = vpack.c.b16 %v2280, %v2279
        %v2380 = vpack.c.b16 %v2282, %v2281
        %v2381 = vpack.c.b16 %v2284, %v2283
        %v2382 = vpack.c.b16 %v2286, %v2285
        %v2383 = vpack.c.b16 %v2288, %v2287
        %v2384 = vpack.c.b16 %v2290, %v2289
        %v2385 = vpack.c.b16 %v2292, %v2291
        %v2386 = vpack.c.b16 %v2294, %v2293
        %v2387 = vpack.c.b16 %v2296, %v2295
        %v2388 = vpack.c.b16 %v2298, %v2297
        %v2389 = vpack.c.b16 %v2300, %v2299
        %v2390 = vpack.c.b16 %v2302, %v2301
        %v2391 = vpack.c.b16 %v2304, %v2303
        %v2392 = vpack.c.b16 %v2306, %v2305
        %v2393 = vpack.c.b16 %v2308, %v2307
        %v2394 = vpack.c.b16 %v2310, %v2309
        %v2395 = vpack.c.b16 %v2312, %v2311
        %v2396 = vpack.c.b16 %v2314, %v2313
        %v2397 = vpack.c.b16 %v2316, %v2315
        %v2398 = vpack.c.b16 %v2318, %v2317
        %v2399 = vpack.c.b16 %v2320, %v2319
        %v2400 = vpack.c.b16 %v2322, %v2321
        %v2401 = vpack.c.b16 %v2324, %v2323
        %v2402 = vpack.c.b16 %v2326, %v2325
        %v2403 = vpack.c.b16 %v2328, %v2327
        %v2404 = vpack.c.b16 %v2330, %v2329
        %v2405 = vpack.c.b16 %v2332, %v2331
        %v2406 = vpack.c.b16 %v2334, %v2333
        %2479 = vmatprep.subr.bf16.mxu0 0
        %2480 = vmatpush1.bf16.msra.mxu0 %v2335
        %2481 = vmatprep.subr.bf16.mxu0 0
        %2482 = vmatpush1.bf16.msra.mxu0 %v2336
        %2483 = vmatprep.subr.bf16.mxu0 0
        %2484 = vmatpush1.bf16.msra.mxu0 %v2337
        %2485 = vmatprep.subr.bf16.mxu0 0
        %2486 = vmatpush1.bf16.msra.mxu0 %v2338
        %2487 = vmatprep.subr.bf16.mxu0 0
        %2488 = vmatpush1.bf16.msra.mxu0 %v2339
        %2489 = vmatprep.subr.bf16.mxu0 0
        %2490 = vmatpush1.bf16.msra.mxu0 %v2340
        %2491 = vmatprep.subr.bf16.mxu0 0
        %2492 = vmatpush1.bf16.msra.mxu0 %v2341
        %2493 = vmatprep.subr.bf16.mxu0 0
        %2494 = vmatpush1.bf16.msra.mxu0 %v2342
        %2495 = vmatprep.subr.bf16.mxu0 0
        %2496 = vmatpush1.bf16.msra.mxu0 %v2343
        %2497 = vmatprep.subr.bf16.mxu0 0
        %2498 = vmatpush1.bf16.msra.mxu0 %v2344
        %2499 = vmatprep.subr.bf16.mxu0 0
        %2500 = vmatpush1.bf16.msra.mxu0 %v2345
        %2501 = vmatprep.subr.bf16.mxu0 0
        %2502 = vmatpush1.bf16.msra.mxu0 %v2346
        %2503 = vmatprep.subr.bf16.mxu0 0
        %2504 = vmatpush1.bf16.msra.mxu0 %v2347
        %2505 = vmatprep.subr.bf16.mxu0 0
        %2506 = vmatpush1.bf16.msra.mxu0 %v2348
        %2507 = vmatprep.subr.bf16.mxu0 0
        %2508 = vmatpush1.bf16.msra.mxu0 %v2349
        %2509 = vmatprep.subr.bf16.mxu0 0
        %2510 = vmatpush1.bf16.msra.mxu0 %v2350
        %2511 = vmatprep.mubr.bf16.mxu0 %v1760
        %2512 = vmatmul.mubr.bf16.gmra.mrb[0].mxu0 %v1759
        %v2513 = vpop.f32.mrb[0].mxu0
        %v2514 = vadd.f32 0.0, %v2513
        %v2515 = vpop.f32.mrb[0].mxu0
        %v2516 = vpop.f32.mrb[0].mxu0
        %v2517 = vadd.f32 0.0, %v2516
        %v2518 = vpop.f32.mrb[0].mxu0
        %2519 = vmatprep.mubr.bf16.mxu0 %v1769
        %2520 = vmatmul.mubr.bf16.gmra.mrb[0].mxu0 %v1768
        %v2521 = vpop.f32.mrb[0].mxu0
        %v2522 = vadd.f32 0.0, %v2521
        %v2523 = vpop.f32.mrb[0].mxu0
        %v2524 = vpop.f32.mrb[0].mxu0
        %v2525 = vadd.f32 0.0, %v2524
        %v2526 = vpop.f32.mrb[0].mxu0
        %2527 = vmatprep.mubr.bf16.mxu0 %v1778
        %2528 = vmatmul.mubr.bf16.gmra.mrb[0].mxu0 %v1777
        %v2529 = vpop.f32.mrb[0].mxu0
        %v2530 = vadd.f32 0.0, %v2529
        %v2531 = vpop.f32.mrb[0].mxu0
        %v2532 = vpop.f32.mrb[0].mxu0
        %v2533 = vadd.f32 0.0, %v2532
        %v2534 = vpop.f32.mrb[0].mxu0
        %2535 = vmatprep.mubr.bf16.mxu0 %v1787
        %2536 = vmatmul.mubr.bf16.gmra.mrb[0].mxu0 %v1786
        %v2537 = vpop.f32.mrb[0].mxu0
        %v2538 = vadd.f32 0.0, %v2537
        %v2539 = vpop.f32.mrb[0].mxu0
        %v2540 = vpop.f32.mrb[0].mxu0
        %v2541 = vadd.f32 0.0, %v2540
        %v2542 = vpop.f32.mrb[0].mxu0
        %2543 = vmatprep.mubr.bf16.mxu0 %v1796
        %2544 = vmatmul.mubr.bf16.gmra.mrb[0].mxu0 %v1795
        %v2545 = vpop.f32.mrb[0].mxu0
        %v2546 = vadd.f32 0.0, %v2545
        %v2547 = vpop.f32.mrb[0].mxu0
        %v2548 = vpop.f32.mrb[0].mxu0
        %v2549 = vadd.f32 0.0, %v2548
        %v2550 = vpop.f32.mrb[0].mxu0
        %2551 = vmatprep.mubr.bf16.mxu0 %v1805
        %2552 = vmatmul.mubr.bf16.gmra.mrb[0].mxu0 %v1804
        %v2553 = vpop.f32.mrb[0].mxu0
        %v2554 = vadd.f32 0.0, %v2553
        %v2555 = vpop.f32.mrb[0].mxu0
        %v2556 = vpop.f32.mrb[0].mxu0
        %v2557 = vadd.f32 0.0, %v2556
        %v2558 = vpop.f32.mrb[0].mxu0
        %2559 = vmatprep.mubr.bf16.mxu0 %v1814
        %2560 = vmatmul.mubr.bf16.gmra.mrb[0].mxu0 %v1813
        %v2561 = vpop.f32.mrb[0].mxu0
        %v2562 = vadd.f32 0.0, %v2561
        %v2563 = vpop.f32.mrb[0].mxu0
        %v2564 = vpop.f32.mrb[0].mxu0
        %v2565 = vadd.f32 0.0, %v2564
        %v2566 = vpop.f32.mrb[0].mxu0
        %2567 = vmatprep.mubr.bf16.mxu0 %v1823
        %2568 = vmatmul.mubr.bf16.gmra.mrb[0].mxu0 %v1822
        %v2569 = vpop.f32.mrb[0].mxu0
        %v2570 = vadd.f32 0.0, %v2569
        %v2571 = vpop.f32.mrb[0].mxu0
        %v2572 = vpop.f32.mrb[0].mxu0
        %v2573 = vadd.f32 0.0, %v2572
        %v2574 = vpop.f32.mrb[0].mxu0
        %2575 = vmatprep.mubr.bf16.mxu0 %v1832
        %2576 = vmatmul.mubr.bf16.gmra.mrb[0].mxu0 %v1831
        %v2577 = vpop.f32.mrb[0].mxu0
        %v2578 = vadd.f32 0.0, %v2577
        %v2579 = vpop.f32.mrb[0].mxu0
        %v2580 = vpop.f32.mrb[0].mxu0
        %v2581 = vadd.f32 0.0, %v2580
        %v2582 = vpop.f32.mrb[0].mxu0
        %2583 = vmatprep.mubr.bf16.mxu0 %v1841
        %2584 = vmatmul.mubr.bf16.gmra.mrb[0].mxu0 %v1840
        %v2585 = vpop.f32.mrb[0].mxu0
        %v2586 = vadd.f32 0.0, %v2585
        %v2587 = vpop.f32.mrb[0].mxu0
        %v2588 = vpop.f32.mrb[0].mxu0
        %v2589 = vadd.f32 0.0, %v2588
        %v2590 = vpop.f32.mrb[0].mxu0
        %2591 = vmatprep.mubr.bf16.mxu0 %v1850
        %2592 = vmatmul.mubr.bf16.gmra.mrb[0].mxu0 %v1849
        %v2593 = vpop.f32.mrb[0].mxu0
        %v2594 = vadd.f32 0.0, %v2593
        %v2595 = vpop.f32.mrb[0].mxu0
        %v2596 = vpop.f32.mrb[0].mxu0
        %v2597 = vadd.f32 0.0, %v2596
        %v2598 = vpop.f32.mrb[0].mxu0
        %2599 = vmatprep.mubr.bf16.mxu0 %v1859
        %2600 = vmatmul.mubr.bf16.gmra.mrb[0].mxu0 %v1858
        %v2601 = vpop.f32.mrb[0].mxu0
        %v2602 = vadd.f32 0.0, %v2601
        %v2603 = vpop.f32.mrb[0].mxu0
        %v2604 = vpop.f32.mrb[0].mxu0
        %v2605 = vadd.f32 0.0, %v2604
        %v2606 = vpop.f32.mrb[0].mxu0
        %2607 = vmatprep.mubr.bf16.mxu0 %v1868
        %2608 = vmatmul.mubr.bf16.gmra.mrb[0].mxu0 %v1867
        %v2609 = vpop.f32.mrb[0].mxu0
        %v2610 = vadd.f32 0.0, %v2609
        %v2611 = vpop.f32.mrb[0].mxu0
        %v2612 = vpop.f32.mrb[0].mxu0
        %v2613 = vadd.f32 0.0, %v2612
        %v2614 = vpop.f32.mrb[0].mxu0
        %2615 = vmatprep.mubr.bf16.mxu0 %v1877
        %2616 = vmatmul.mubr.bf16.gmra.mrb[0].mxu0 %v1876
        %v2617 = vpop.f32.mrb[0].mxu0
        %v2618 = vadd.f32 0.0, %v2617
        %v2619 = vpop.f32.mrb[0].mxu0
        %v2620 = vpop.f32.mrb[0].mxu0
        %v2621 = vadd.f32 0.0, %v2620
        %v2622 = vpop.f32.mrb[0].mxu0
        %2623 = vmatprep.mubr.bf16.mxu0 %v1886
        %2624 = vmatmul.mubr.bf16.gmra.mrb[0].mxu0 %v1885
        %v2625 = vpop.f32.mrb[0].mxu0
        %v2626 = vadd.f32 0.0, %v2625
        %v2627 = vpop.f32.mrb[0].mxu0
        %v2628 = vpop.f32.mrb[0].mxu0
        %v2629 = vadd.f32 0.0, %v2628
        %v2630 = vpop.f32.mrb[0].mxu0
        %2631 = vmatprep.mubr.bf16.mxu0 %v1895
        %2632 = vmatmul.mubr.bf16.gmra.mrb[0].mxu0 %v1894
        %v2633 = vpop.f32.mrb[0].mxu0
        %v2634 = vadd.f32 0.0, %v2633
        %v2635 = vpop.f32.mrb[0].mxu0
        %v2636 = vpop.f32.mrb[0].mxu0
        %v2637 = vadd.f32 0.0, %v2636
        %v2638 = vpop.f32.mrb[0].mxu0
        %2639 = vdwg.mxu0
        %2640 = vmatprep.subr.bf16.mxu0 0
        %2641 = vmatpush1.bf16.msra.mxu0 %v2351
        %2642 = vmatprep.subr.bf16.mxu0 0
        %2643 = vmatpush1.bf16.msra.mxu0 %v2352
        %2644 = vmatprep.subr.bf16.mxu0 0
        %2645 = vmatpush1.bf16.msra.mxu0 %v2353
        %2646 = vmatprep.subr.bf16.mxu0 0
        %2647 = vmatpush1.bf16.msra.mxu0 %v2354
        %2648 = vmatprep.subr.bf16.mxu0 0
        %2649 = vmatpush1.bf16.msra.mxu0 %v2355
        %2650 = vmatprep.subr.bf16.mxu0 0
        %2651 = vmatpush1.bf16.msra.mxu0 %v2356
        %2652 = vmatprep.subr.bf16.mxu0 0
        %2653 = vmatpush1.bf16.msra.mxu0 %v2357
        %2654 = vmatprep.subr.bf16.mxu0 0
        %2655 = vmatpush1.bf16.msra.mxu0 %v2358
        %2656 = vmatprep.subr.bf16.mxu0 0
        %2657 = vmatpush1.bf16.msra.mxu0 %v2359
        %2658 = vmatprep.subr.bf16.mxu0 0
        %2659 = vmatpush1.bf16.msra.mxu0 %v2360
        %2660 = vmatprep.subr.bf16.mxu0 0
        %2661 = vmatpush1.bf16.msra.mxu0 %v2361
        %2662 = vmatprep.subr.bf16.mxu0 0
        %2663 = vmatpush1.bf16.msra.mxu0 %v2362
        %2664 = vmatprep.subr.bf16.mxu0 0
        %2665 = vmatpush1.bf16.msra.mxu0 %v2363
        %2666 = vmatprep.subr.bf16.mxu0 0
        %2667 = vmatpush1.bf16.msra.mxu0 %v2364
        %2668 = vmatprep.subr.bf16.mxu0 0
        %2669 = vmatpush1.bf16.msra.mxu0 %v2365
        %2670 = vmatprep.subr.bf16.mxu0 0
        %2671 = vmatpush1.bf16.msra.mxu0 %v2366
        %2672 = vmatprep.mubr.bf16.mxu0 %v1762
        %2673 = vmatmul.mubr.bf16.gmra.mrb[0].mxu0 %v1761
        %v2674 = vpop.f32.mrb[0].mxu0
        %v2675 = vadd.f32 %v2514, %v2674
        %v2676 = vpop.f32.mrb[0].mxu0
        %v2677 = vpop.f32.mrb[0].mxu0
        %v2678 = vadd.f32 %v2517, %v2677
        %v2679 = vpop.f32.mrb[0].mxu0
        %2680 = vmatprep.mubr.bf16.mxu0 %v1771
        %2681 = vmatmul.mubr.bf16.gmra.mrb[0].mxu0 %v1770
        %v2682 = vpop.f32.mrb[0].mxu0
        %v2683 = vadd.f32 %v2522, %v2682
        %v2684 = vpop.f32.mrb[0].mxu0
        %v2685 = vpop.f32.mrb[0].mxu0
        %v2686 = vadd.f32 %v2525, %v2685
        %v2687 = vpop.f32.mrb[0].mxu0
        %2688 = vmatprep.mubr.bf16.mxu0 %v1780
        %2689 = vmatmul.mubr.bf16.gmra.mrb[0].mxu0 %v1779
        %v2690 = vpop.f32.mrb[0].mxu0
        %v2691 = vadd.f32 %v2530, %v2690
        %v2692 = vpop.f32.mrb[0].mxu0
        %v2693 = vpop.f32.mrb[0].mxu0
        %v2694 = vadd.f32 %v2533, %v2693
        %v2695 = vpop.f32.mrb[0].mxu0
        %2696 = vmatprep.mubr.bf16.mxu0 %v1789
        %2697 = vmatmul.mubr.bf16.gmra.mrb[0].mxu0 %v1788
        %v2698 = vpop.f32.mrb[0].mxu0
        %v2699 = vadd.f32 %v2538, %v2698
        %v2700 = vpop.f32.mrb[0].mxu0
        %v2701 = vpop.f32.mrb[0].mxu0
        %v2702 = vadd.f32 %v2541, %v2701
        %v2703 = vpop.f32.mrb[0].mxu0
        %2704 = vmatprep.mubr.bf16.mxu0 %v1798
        %2705 = vmatmul.mubr.bf16.gmra.mrb[0].mxu0 %v1797
        %v2706 = vpop.f32.mrb[0].mxu0
        %v2707 = vadd.f32 %v2546, %v2706
        %v2708 = vpop.f32.mrb[0].mxu0
        %v2709 = vpop.f32.mrb[0].mxu0
        %v2710 = vadd.f32 %v2549, %v2709
        %v2711 = vpop.f32.mrb[0].mxu0
        %2712 = vmatprep.mubr.bf16.mxu0 %v1807
        %2713 = vmatmul.mubr.bf16.gmra.mrb[0].mxu0 %v1806
        %v2714 = vpop.f32.mrb[0].mxu0
        %v2715 = vadd.f32 %v2554, %v2714
        %v2716 = vpop.f32.mrb[0].mxu0
        %v2717 = vpop.f32.mrb[0].mxu0
        %v2718 = vadd.f32 %v2557, %v2717
        %v2719 = vpop.f32.mrb[0].mxu0
        %2720 = vmatprep.mubr.bf16.mxu0 %v1816
        %2721 = vmatmul.mubr.bf16.gmra.mrb[0].mxu0 %v1815
        %v2722 = vpop.f32.mrb[0].mxu0
        %v2723 = vadd.f32 %v2562, %v2722
        %v2724 = vpop.f32.mrb[0].mxu0
        %v2725 = vpop.f32.mrb[0].mxu0
        %v2726 = vadd.f32 %v2565, %v2725
        %v2727 = vpop.f32.mrb[0].mxu0
        %2728 = vmatprep.mubr.bf16.mxu0 %v1825
        %2729 = vmatmul.mubr.bf16.gmra.mrb[0].mxu0 %v1824
        %v2730 = vpop.f32.mrb[0].mxu0
        %v2731 = vadd.f32 %v2570, %v2730
        %v2732 = vpop.f32.mrb[0].mxu0
        %v2733 = vpop.f32.mrb[0].mxu0
        %v2734 = vadd.f32 %v2573, %v2733
        %v2735 = vpop.f32.mrb[0].mxu0
        %2736 = vmatprep.mubr.bf16.mxu0 %v1834
        %2737 = vmatmul.mubr.bf16.gmra.mrb[0].mxu0 %v1833
        %v2738 = vpop.f32.mrb[0].mxu0
        %v2739 = vadd.f32 %v2578, %v2738
        %v2740 = vpop.f32.mrb[0].mxu0
        %v2741 = vpop.f32.mrb[0].mxu0
        %v2742 = vadd.f32 %v2581, %v2741
        %v2743 = vpop.f32.mrb[0].mxu0
        %2744 = vmatprep.mubr.bf16.mxu0 %v1843
        %2745 = vmatmul.mubr.bf16.gmra.mrb[0].mxu0 %v1842
        %v2746 = vpop.f32.mrb[0].mxu0
        %v2747 = vadd.f32 %v2586, %v2746
        %v2748 = vpop.f32.mrb[0].mxu0
        %v2749 = vpop.f32.mrb[0].mxu0
        %v2750 = vadd.f32 %v2589, %v2749
        %v2751 = vpop.f32.mrb[0].mxu0
        %2752 = vmatprep.mubr.bf16.mxu0 %v1852
        %2753 = vmatmul.mubr.bf16.gmra.mrb[0].mxu0 %v1851
        %v2754 = vpop.f32.mrb[0].mxu0
        %v2755 = vadd.f32 %v2594, %v2754
        %v2756 = vpop.f32.mrb[0].mxu0
        %v2757 = vpop.f32.mrb[0].mxu0
        %v2758 = vadd.f32 %v2597, %v2757
        %v2759 = vpop.f32.mrb[0].mxu0
        %2760 = vmatprep.mubr.bf16.mxu0 %v1861
        %2761 = vmatmul.mubr.bf16.gmra.mrb[0].mxu0 %v1860
        %v2762 = vpop.f32.mrb[0].mxu0
        %v2763 = vadd.f32 %v2602, %v2762
        %v2764 = vpop.f32.mrb[0].mxu0
        %v2765 = vpop.f32.mrb[0].mxu0
        %v2766 = vadd.f32 %v2605, %v2765
        %v2767 = vpop.f32.mrb[0].mxu0
        %2768 = vmatprep.mubr.bf16.mxu0 %v1870
        %2769 = vmatmul.mubr.bf16.gmra.mrb[0].mxu0 %v1869
        %v2770 = vpop.f32.mrb[0].mxu0
        %v2771 = vadd.f32 %v2610, %v2770
        %v2772 = vpop.f32.mrb[0].mxu0
        %v2773 = vpop.f32.mrb[0].mxu0
        %v2774 = vadd.f32 %v2613, %v2773
        %v2775 = vpop.f32.mrb[0].mxu0
        %2776 = vmatprep.mubr.bf16.mxu0 %v1879
        %2777 = vmatmul.mubr.bf16.gmra.mrb[0].mxu0 %v1878
        %v2778 = vpop.f32.mrb[0].mxu0
        %v2779 = vadd.f32 %v2618, %v2778
        %v2780 = vpop.f32.mrb[0].mxu0
        %v2781 = vpop.f32.mrb[0].mxu0
        %v2782 = vadd.f32 %v2621, %v2781
        %v2783 = vpop.f32.mrb[0].mxu0
        %2784 = vmatprep.mubr.bf16.mxu0 %v1888
        %2785 = vmatmul.mubr.bf16.gmra.mrb[0].mxu0 %v1887
        %v2786 = vpop.f32.mrb[0].mxu0
        %v2787 = vadd.f32 %v2626, %v2786
        %v2788 = vpop.f32.mrb[0].mxu0
        %v2789 = vpop.f32.mrb[0].mxu0
        %v2790 = vadd.f32 %v2629, %v2789
        %v2791 = vpop.f32.mrb[0].mxu0
        %2792 = vmatprep.mubr.bf16.mxu0 %v1897
        %2793 = vmatmul.mubr.bf16.gmra.mrb[0].mxu0 %v1896
        %v2794 = vpop.f32.mrb[0].mxu0
        %v2795 = vadd.f32 %v2634, %v2794
        %v2796 = vpop.f32.mrb[0].mxu0
        %v2797 = vpop.f32.mrb[0].mxu0
        %v2798 = vadd.f32 %v2637, %v2797
        %v2799 = vpop.f32.mrb[0].mxu0
        %2800 = vdwg.mxu0
        %2801 = vmatprep.subr.bf16.mxu0 0
        %2802 = vmatpush1.bf16.msra.mxu0 %v2367
        %2803 = vmatprep.subr.bf16.mxu0 0
        %2804 = vmatpush1.bf16.msra.mxu0 %v2368
        %2805 = vmatprep.subr.bf16.mxu0 0
        %2806 = vmatpush1.bf16.msra.mxu0 %v2369
        %2807 = vmatprep.subr.bf16.mxu0 0
        %2808 = vmatpush1.bf16.msra.mxu0 %v2370
        %2809 = vmatprep.subr.bf16.mxu0 0
        %2810 = vmatpush1.bf16.msra.mxu0 %v2371
        %2811 = vmatprep.subr.bf16.mxu0 0
        %2812 = vmatpush1.bf16.msra.mxu0 %v2372
        %2813 = vmatprep.subr.bf16.mxu0 0
        %2814 = vmatpush1.bf16.msra.mxu0 %v2373
        %2815 = vmatprep.subr.bf16.mxu0 0
        %2816 = vmatpush1.bf16.msra.mxu0 %v2374
        %2817 = vmatprep.subr.bf16.mxu0 0
        %2818 = vmatpush1.bf16.msra.mxu0 %v2375
        %2819 = vmatprep.subr.bf16.mxu0 0
        %2820 = vmatpush1.bf16.msra.mxu0 %v2376
        %2821 = vmatprep.subr.bf16.mxu0 0
        %2822 = vmatpush1.bf16.msra.mxu0 %v2377
        %2823 = vmatprep.subr.bf16.mxu0 0
        %2824 = vmatpush1.bf16.msra.mxu0 %v2378
        %2825 = vmatprep.subr.bf16.mxu0 0
        %2826 = vmatpush1.bf16.msra.mxu0 %v2379
        %2827 = vmatprep.subr.bf16.mxu0 0
        %2828 = vmatpush1.bf16.msra.mxu0 %v2380
        %2829 = vmatprep.subr.bf16.mxu0 0
        %2830 = vmatpush1.bf16.msra.mxu0 %v2381
        %2831 = vmatprep.subr.bf16.mxu0 0
        %2832 = vmatpush1.bf16.msra.mxu0 %v2382
        %2833 = vmatprep.mubr.bf16.mxu0 %v1764
        %2834 = vmatmul.mubr.bf16.gmra.mrb[0].mxu0 %v1763
        %v2835 = vpop.f32.mrb[0].mxu0
        %v2836 = vadd.f32 %v2675, %v2835
        %v2837 = vpop.f32.mrb[0].mxu0
        %v2838 = vpop.f32.mrb[0].mxu0
        %v2839 = vadd.f32 %v2678, %v2838
        %v2840 = vpop.f32.mrb[0].mxu0
        %2841 = vmatprep.mubr.bf16.mxu0 %v1773
        %2842 = vmatmul.mubr.bf16.gmra.mrb[0].mxu0 %v1772
        %v2843 = vpop.f32.mrb[0].mxu0
        %v2844 = vadd.f32 %v2683, %v2843
        %v2845 = vpop.f32.mrb[0].mxu0
        %v2846 = vpop.f32.mrb[0].mxu0
        %v2847 = vadd.f32 %v2686, %v2846
        %v2848 = vpop.f32.mrb[0].mxu0
        %2849 = vmatprep.mubr.bf16.mxu0 %v1782
        %2850 = vmatmul.mubr.bf16.gmra.mrb[0].mxu0 %v1781
        %v2851 = vpop.f32.mrb[0].mxu0
        %v2852 = vadd.f32 %v2691, %v2851
        %v2853 = vpop.f32.mrb[0].mxu0
        %v2854 = vpop.f32.mrb[0].mxu0
        %v2855 = vadd.f32 %v2694, %v2854
        %v2856 = vpop.f32.mrb[0].mxu0
        %2857 = vmatprep.mubr.bf16.mxu0 %v1791
        %2858 = vmatmul.mubr.bf16.gmra.mrb[0].mxu0 %v1790
        %v2859 = vpop.f32.mrb[0].mxu0
        %v2860 = vadd.f32 %v2699, %v2859
        %v2861 = vpop.f32.mrb[0].mxu0
        %v2862 = vpop.f32.mrb[0].mxu0
        %v2863 = vadd.f32 %v2702, %v2862
        %v2864 = vpop.f32.mrb[0].mxu0
        %2865 = vmatprep.mubr.bf16.mxu0 %v1800
        %2866 = vmatmul.mubr.bf16.gmra.mrb[0].mxu0 %v1799
        %v2867 = vpop.f32.mrb[0].mxu0
        %v2868 = vadd.f32 %v2707, %v2867
        %v2869 = vpop.f32.mrb[0].mxu0
        %v2870 = vpop.f32.mrb[0].mxu0
        %v2871 = vadd.f32 %v2710, %v2870
        %v2872 = vpop.f32.mrb[0].mxu0
        %2873 = vmatprep.mubr.bf16.mxu0 %v1809
        %2874 = vmatmul.mubr.bf16.gmra.mrb[0].mxu0 %v1808
        %v2875 = vpop.f32.mrb[0].mxu0
        %v2876 = vadd.f32 %v2715, %v2875
        %v2877 = vpop.f32.mrb[0].mxu0
        %v2878 = vpop.f32.mrb[0].mxu0
        %v2879 = vadd.f32 %v2718, %v2878
        %v2880 = vpop.f32.mrb[0].mxu0
        %2881 = vmatprep.mubr.bf16.mxu0 %v1818
        %2882 = vmatmul.mubr.bf16.gmra.mrb[0].mxu0 %v1817
        %v2883 = vpop.f32.mrb[0].mxu0
        %v2884 = vadd.f32 %v2723, %v2883
        %v2885 = vpop.f32.mrb[0].mxu0
        %v2886 = vpop.f32.mrb[0].mxu0
        %v2887 = vadd.f32 %v2726, %v2886
        %v2888 = vpop.f32.mrb[0].mxu0
        %2889 = vmatprep.mubr.bf16.mxu0 %v1827
        %2890 = vmatmul.mubr.bf16.gmra.mrb[0].mxu0 %v1826
        %v2891 = vpop.f32.mrb[0].mxu0
        %v2892 = vadd.f32 %v2731, %v2891
        %v2893 = vpop.f32.mrb[0].mxu0
        %v2894 = vpop.f32.mrb[0].mxu0
        %v2895 = vadd.f32 %v2734, %v2894
        %v2896 = vpop.f32.mrb[0].mxu0
        %2897 = vmatprep.mubr.bf16.mxu0 %v1836
        %2898 = vmatmul.mubr.bf16.gmra.mrb[0].mxu0 %v1835
        %v2899 = vpop.f32.mrb[0].mxu0
        %v2900 = vadd.f32 %v2739, %v2899
        %v2901 = vpop.f32.mrb[0].mxu0
        %v2902 = vpop.f32.mrb[0].mxu0
        %v2903 = vadd.f32 %v2742, %v2902
        %v2904 = vpop.f32.mrb[0].mxu0
        %2905 = vmatprep.mubr.bf16.mxu0 %v1845
        %2906 = vmatmul.mubr.bf16.gmra.mrb[0].mxu0 %v1844
        %v2907 = vpop.f32.mrb[0].mxu0
        %v2908 = vadd.f32 %v2747, %v2907
        %v2909 = vpop.f32.mrb[0].mxu0
        %v2910 = vpop.f32.mrb[0].mxu0
        %v2911 = vadd.f32 %v2750, %v2910
        %v2912 = vpop.f32.mrb[0].mxu0
        %2913 = vmatprep.mubr.bf16.mxu0 %v1854
        %2914 = vmatmul.mubr.bf16.gmra.mrb[0].mxu0 %v1853
        %v2915 = vpop.f32.mrb[0].mxu0
        %v2916 = vadd.f32 %v2755, %v2915
        %v2917 = vpop.f32.mrb[0].mxu0
        %v2918 = vpop.f32.mrb[0].mxu0
        %v2919 = vadd.f32 %v2758, %v2918
        %v2920 = vpop.f32.mrb[0].mxu0
        %2921 = vmatprep.mubr.bf16.mxu0 %v1863
        %2922 = vmatmul.mubr.bf16.gmra.mrb[0].mxu0 %v1862
        %v2923 = vpop.f32.mrb[0].mxu0
        %v2924 = vadd.f32 %v2763, %v2923
        %v2925 = vpop.f32.mrb[0].mxu0
        %v2926 = vpop.f32.mrb[0].mxu0
        %v2927 = vadd.f32 %v2766, %v2926
        %v2928 = vpop.f32.mrb[0].mxu0
        %2929 = vmatprep.mubr.bf16.mxu0 %v1872
        %2930 = vmatmul.mubr.bf16.gmra.mrb[0].mxu0 %v1871
        %v2931 = vpop.f32.mrb[0].mxu0
        %v2932 = vadd.f32 %v2771, %v2931
        %v2933 = vpop.f32.mrb[0].mxu0
        %v2934 = vpop.f32.mrb[0].mxu0
        %v2935 = vadd.f32 %v2774, %v2934
        %v2936 = vpop.f32.mrb[0].mxu0
        %2937 = vmatprep.mubr.bf16.mxu0 %v1881
        %2938 = vmatmul.mubr.bf16.gmra.mrb[0].mxu0 %v1880
        %v2939 = vpop.f32.mrb[0].mxu0
        %v2940 = vadd.f32 %v2779, %v2939
        %v2941 = vpop.f32.mrb[0].mxu0
        %v2942 = vpop.f32.mrb[0].mxu0
        %v2943 = vadd.f32 %v2782, %v2942
        %v2944 = vpop.f32.mrb[0].mxu0
        %2945 = vmatprep.mubr.bf16.mxu0 %v1890
        %2946 = vmatmul.mubr.bf16.gmra.mrb[0].mxu0 %v1889
        %v2947 = vpop.f32.mrb[0].mxu0
        %v2948 = vadd.f32 %v2787, %v2947
        %v2949 = vpop.f32.mrb[0].mxu0
        %v2950 = vpop.f32.mrb[0].mxu0
        %v2951 = vadd.f32 %v2790, %v2950
        %v2952 = vpop.f32.mrb[0].mxu0
        %2953 = vmatprep.mubr.bf16.mxu0 %v1899
        %2954 = vmatmul.mubr.bf16.gmra.mrb[0].mxu0 %v1898
        %v2955 = vpop.f32.mrb[0].mxu0
        %v2956 = vadd.f32 %v2795, %v2955
        %v2957 = vpop.f32.mrb[0].mxu0
        %v2958 = vpop.f32.mrb[0].mxu0
        %v2959 = vadd.f32 %v2798, %v2958
        %v2960 = vpop.f32.mrb[0].mxu0
        %2961 = vdwg.mxu0
        %2962 = vmatprep.subr.bf16.mxu0 0
        %2963 = vmatpush1.bf16.msra.mxu0 %v2383
        %2964 = vmatprep.subr.bf16.mxu0 0
        %2965 = vmatpush1.bf16.msra.mxu0 %v2384
        %2966 = vmatprep.subr.bf16.mxu0 0
        %2967 = vmatpush1.bf16.msra.mxu0 %v2385
        %2968 = vmatprep.subr.bf16.mxu0 0
        %2969 = vmatpush1.bf16.msra.mxu0 %v2386
        %2970 = vmatprep.subr.bf16.mxu0 0
        %2971 = vmatpush1.bf16.msra.mxu0 %v2387
        %2972 = vmatprep.subr.bf16.mxu0 0
        %2973 = vmatpush1.bf16.msra.mxu0 %v2388
        %2974 = vmatprep.subr.bf16.mxu0 0
        %2975 = vmatpush1.bf16.msra.mxu0 %v2389
        %2976 = vmatprep.subr.bf16.mxu0 0
        %2977 = vmatpush1.bf16.msra.mxu0 %v2390
        %2978 = vmatprep.subr.bf16.mxu0 0
        %2979 = vmatpush1.bf16.msra.mxu0 %v2391
        %2980 = vmatprep.subr.bf16.mxu0 0
        %2981 = vmatpush1.bf16.msra.mxu0 %v2392
        %2982 = vmatprep.subr.bf16.mxu0 0
        %2983 = vmatpush1.bf16.msra.mxu0 %v2393
        %2984 = vmatprep.subr.bf16.mxu0 0
        %2985 = vmatpush1.bf16.msra.mxu0 %v2394
        %2986 = vmatprep.subr.bf16.mxu0 0
        %2987 = vmatpush1.bf16.msra.mxu0 %v2395
        %2988 = vmatprep.subr.bf16.mxu0 0
        %2989 = vmatpush1.bf16.msra.mxu0 %v2396
        %2990 = vmatprep.subr.bf16.mxu0 0
        %2991 = vmatpush1.bf16.msra.mxu0 %v2397
        %2992 = vmatprep.subr.bf16.mxu0 0
        %2993 = vmatpush1.bf16.msra.mxu0 %v2398
        %2994 = vmatprep.mubr.bf16.mxu0 %v1766
        %2995 = vmatmul.mubr.bf16.gmra.mrb[0].mxu0 %v1765
        %v2996 = vpop.f32.mrb[0].mxu0
        %v2997 = vadd.f32 %v2836, %v2996
        %v2998 = vpop.f32.mrb[0].mxu0
        %v2999 = vpop.f32.mrb[0].mxu0
        %v3000 = vadd.f32 %v2839, %v2999
        %v3001 = vpop.f32.mrb[0].mxu0
        %3002 = vmatprep.mubr.bf16.mxu0 %v1775
        %3003 = vmatmul.mubr.bf16.gmra.mrb[0].mxu0 %v1774
        %v3004 = vpop.f32.mrb[0].mxu0
        %v3005 = vadd.f32 %v2844, %v3004
        %v3006 = vpop.f32.mrb[0].mxu0
        %v3007 = vpop.f32.mrb[0].mxu0
        %v3008 = vadd.f32 %v2847, %v3007
        %v3009 = vpop.f32.mrb[0].mxu0
        %3010 = vmatprep.mubr.bf16.mxu0 %v1784
        %3011 = vmatmul.mubr.bf16.gmra.mrb[0].mxu0 %v1783
        %v3012 = vpop.f32.mrb[0].mxu0
        %v3013 = vadd.f32 %v2852, %v3012
        %v3014 = vpop.f32.mrb[0].mxu0
        %v3015 = vpop.f32.mrb[0].mxu0
        %v3016 = vadd.f32 %v2855, %v3015
        %v3017 = vpop.f32.mrb[0].mxu0
        %3018 = vmatprep.mubr.bf16.mxu0 %v1793
        %3019 = vmatmul.mubr.bf16.gmra.mrb[0].mxu0 %v1792
        %v3020 = vpop.f32.mrb[0].mxu0
        %v3021 = vadd.f32 %v2860, %v3020
        %v3022 = vpop.f32.mrb[0].mxu0
        %v3023 = vpop.f32.mrb[0].mxu0
        %v3024 = vadd.f32 %v2863, %v3023
        %v3025 = vpop.f32.mrb[0].mxu0
        %3026 = vmatprep.mubr.bf16.mxu0 %v1802
        %3027 = vmatmul.mubr.bf16.gmra.mrb[0].mxu0 %v1801
        %v3028 = vpop.f32.mrb[0].mxu0
        %v3029 = vadd.f32 %v2868, %v3028
        %v3030 = vpop.f32.mrb[0].mxu0
        %v3031 = vpop.f32.mrb[0].mxu0
        %v3032 = vadd.f32 %v2871, %v3031
        %v3033 = vpop.f32.mrb[0].mxu0
        %3034 = vmatprep.mubr.bf16.mxu0 %v1811
        %3035 = vmatmul.mubr.bf16.gmra.mrb[0].mxu0 %v1810
        %v3036 = vpop.f32.mrb[0].mxu0
        %v3037 = vadd.f32 %v2876, %v3036
        %v3038 = vpop.f32.mrb[0].mxu0
        %v3039 = vpop.f32.mrb[0].mxu0
        %v3040 = vadd.f32 %v2879, %v3039
        %v3041 = vpop.f32.mrb[0].mxu0
        %3042 = vmatprep.mubr.bf16.mxu0 %v1820
        %3043 = vmatmul.mubr.bf16.gmra.mrb[0].mxu0 %v1819
        %v3044 = vpop.f32.mrb[0].mxu0
        %v3045 = vadd.f32 %v2884, %v3044
        %v3046 = vpop.f32.mrb[0].mxu0
        %v3047 = vpop.f32.mrb[0].mxu0
        %v3048 = vadd.f32 %v2887, %v3047
        %v3049 = vpop.f32.mrb[0].mxu0
        %3050 = vmatprep.mubr.bf16.mxu0 %v1829
        %3051 = vmatmul.mubr.bf16.gmra.mrb[0].mxu0 %v1828
        %v3052 = vpop.f32.mrb[0].mxu0
        %v3053 = vadd.f32 %v2892, %v3052
        %v3054 = vpop.f32.mrb[0].mxu0
        %v3055 = vpop.f32.mrb[0].mxu0
        %v3056 = vadd.f32 %v2895, %v3055
        %v3057 = vpop.f32.mrb[0].mxu0
        %3058 = vmatprep.mubr.bf16.mxu0 %v1838
        %3059 = vmatmul.mubr.bf16.gmra.mrb[0].mxu0 %v1837
        %v3060 = vpop.f32.mrb[0].mxu0
        %v3061 = vadd.f32 %v2900, %v3060
        %v3062 = vpop.f32.mrb[0].mxu0
        %v3063 = vpop.f32.mrb[0].mxu0
        %v3064 = vadd.f32 %v2903, %v3063
        %v3065 = vpop.f32.mrb[0].mxu0
        %3066 = vmatprep.mubr.bf16.mxu0 %v1847
        %3067 = vmatmul.mubr.bf16.gmra.mrb[0].mxu0 %v1846
        %v3068 = vpop.f32.mrb[0].mxu0
        %v3069 = vadd.f32 %v2908, %v3068
        %v3070 = vpop.f32.mrb[0].mxu0
        %v3071 = vpop.f32.mrb[0].mxu0
        %v3072 = vadd.f32 %v2911, %v3071
        %v3073 = vpop.f32.mrb[0].mxu0
        %3074 = vmatprep.mubr.bf16.mxu0 %v1856
        %3075 = vmatmul.mubr.bf16.gmra.mrb[0].mxu0 %v1855
        %v3076 = vpop.f32.mrb[0].mxu0
        %v3077 = vadd.f32 %v2916, %v3076
        %v3078 = vpop.f32.mrb[0].mxu0
        %v3079 = vpop.f32.mrb[0].mxu0
        %v3080 = vadd.f32 %v2919, %v3079
        %v3081 = vpop.f32.mrb[0].mxu0
        %3082 = vmatprep.mubr.bf16.mxu0 %v1865
        %3083 = vmatmul.mubr.bf16.gmra.mrb[0].mxu0 %v1864
        %v3084 = vpop.f32.mrb[0].mxu0
        %v3085 = vadd.f32 %v2924, %v3084
        %v3086 = vpop.f32.mrb[0].mxu0
        %v3087 = vpop.f32.mrb[0].mxu0
        %v3088 = vadd.f32 %v2927, %v3087
        %v3089 = vpop.f32.mrb[0].mxu0
        %3090 = vmatprep.mubr.bf16.mxu0 %v1874
        %3091 = vmatmul.mubr.bf16.gmra.mrb[0].mxu0 %v1873
        %v3092 = vpop.f32.mrb[0].mxu0
        %v3093 = vadd.f32 %v2932, %v3092
        %v3094 = vpop.f32.mrb[0].mxu0
        %v3095 = vpop.f32.mrb[0].mxu0
        %v3096 = vadd.f32 %v2935, %v3095
        %v3097 = vpop.f32.mrb[0].mxu0
        %3098 = vmatprep.mubr.bf16.mxu0 %v1883
        %3099 = vmatmul.mubr.bf16.gmra.mrb[0].mxu0 %v1882
        %v3100 = vpop.f32.mrb[0].mxu0
        %v3101 = vadd.f32 %v2940, %v3100
        %v3102 = vpop.f32.mrb[0].mxu0
        %v3103 = vpop.f32.mrb[0].mxu0
        %v3104 = vadd.f32 %v2943, %v3103
        %v3105 = vpop.f32.mrb[0].mxu0
        %3106 = vmatprep.mubr.bf16.mxu0 %v1892
        %3107 = vmatmul.mubr.bf16.gmra.mrb[0].mxu0 %v1891
        %v3108 = vpop.f32.mrb[0].mxu0
        %v3109 = vadd.f32 %v2948, %v3108
        %v3110 = vpop.f32.mrb[0].mxu0
        %v3111 = vpop.f32.mrb[0].mxu0
        %v3112 = vadd.f32 %v2951, %v3111
        %v3113 = vpop.f32.mrb[0].mxu0
        %3114 = vmatprep.mubr.bf16.mxu0 %v1901
        %3115 = vmatmul.mubr.bf16.gmra.mrb[0].mxu0 %v1900
        %v3116 = vpop.f32.mrb[0].mxu0
        %v3117 = vadd.f32 %v2956, %v3116
        %v3118 = vpop.f32.mrb[0].mxu0
        %v3119 = vpop.f32.mrb[0].mxu0
        %v3120 = vadd.f32 %v2959, %v3119
        %v3121 = vpop.f32.mrb[0].mxu0
        %3122 = vdwg.mxu0
        %3123 = vmatprep.subr.bf16.mxu0 0
        %3124 = vmatpush1.bf16.msra.mxu0 %v2399
        %3125 = vmatprep.subr.bf16.mxu0 0
        %3126 = vmatpush1.bf16.msra.mxu0 %v2400
        %3127 = vmatprep.subr.bf16.mxu0 0
        %3128 = vmatpush1.bf16.msra.mxu0 %v2401
        %3129 = vmatprep.subr.bf16.mxu0 0
        %3130 = vmatpush1.bf16.msra.mxu0 %v2402
        %3131 = vmatprep.subr.bf16.mxu0 0
        %3132 = vmatpush1.bf16.msra.mxu0 %v2403
        %3133 = vmatprep.subr.bf16.mxu0 0
        %3134 = vmatpush1.bf16.msra.mxu0 %v2404
        %3135 = vmatprep.subr.bf16.mxu0 0
        %3136 = vmatpush1.bf16.msra.mxu0 %v2405
        %3137 = vmatprep.subr.bf16.mxu0 0
        %3138 = vmatpush1.bf16.msra.mxu0 %v2406
        %3139 = vmatprep.subr.bf16.mxu0 0
        %3140 = vmatpush1.bf16.msra.mxu0 0
        %3141 = vmatprep.subr.bf16.mxu0 0
        %3142 = vmatpush1.bf16.msra.mxu0 0
        %3143 = vmatprep.subr.bf16.mxu0 0
        %3144 = vmatpush1.bf16.msra.mxu0 0
        %3145 = vmatprep.subr.bf16.mxu0 0
        %3146 = vmatpush1.bf16.msra.mxu0 0
        %3147 = vmatprep.subr.bf16.mxu0 0
        %3148 = vmatpush1.bf16.msra.mxu0 0
        %3149 = vmatprep.subr.bf16.mxu0 0
        %3150 = vmatpush1.bf16.msra.mxu0 0
        %3151 = vmatprep.subr.bf16.mxu0 0
        %3152 = vmatpush1.bf16.msra.mxu0 0
        %3153 = vmatprep.subr.bf16.mxu0 0
        %3154 = vmatpush1.bf16.msra.mxu0 0
        %3155 = vmatprep.mubr.bf16.mxu0 0
        %3156 = vmatmul.mubr.bf16.gmra.mrb[0].mxu0 %v1767
        %v3157 = vpop.f32.mrb[0].mxu0
        %v3158 = vadd.f32 %v2997, %v3157
        %v3159 = vpop.f32.mrb[0].mxu0
        %v3160 = vpop.f32.mrb[0].mxu0
        %v3161 = vadd.f32 %v3000, %v3160
        %v3162 = vpop.f32.mrb[0].mxu0
        %3163 = vmatprep.mubr.bf16.mxu0 0
        %3164 = vmatmul.mubr.bf16.gmra.mrb[0].mxu0 %v1776
        %v3165 = vpop.f32.mrb[0].mxu0
        %v3166 = vadd.f32 %v3005, %v3165
        %v3167 = vpop.f32.mrb[0].mxu0
        %v3168 = vpop.f32.mrb[0].mxu0
        %v3169 = vadd.f32 %v3008, %v3168
        %v3170 = vpop.f32.mrb[0].mxu0
        %3171 = vmatprep.mubr.bf16.mxu0 0
        %3172 = vmatmul.mubr.bf16.gmra.mrb[0].mxu0 %v1785
        %v3173 = vpop.f32.mrb[0].mxu0
        %v3174 = vadd.f32 %v3013, %v3173
        %v3175 = vpop.f32.mrb[0].mxu0
        %v3176 = vpop.f32.mrb[0].mxu0
        %v3177 = vadd.f32 %v3016, %v3176
        %v3178 = vpop.f32.mrb[0].mxu0
        %3179 = vmatprep.mubr.bf16.mxu0 0
        %3180 = vmatmul.mubr.bf16.gmra.mrb[0].mxu0 %v1794
        %v3181 = vpop.f32.mrb[0].mxu0
        %v3182 = vadd.f32 %v3021, %v3181
        %v3183 = vpop.f32.mrb[0].mxu0
        %v3184 = vpop.f32.mrb[0].mxu0
        %v3185 = vadd.f32 %v3024, %v3184
        %v3186 = vpop.f32.mrb[0].mxu0
        %3187 = vmatprep.mubr.bf16.mxu0 0
        %3188 = vmatmul.mubr.bf16.gmra.mrb[0].mxu0 %v1803
        %v3189 = vpop.f32.mrb[0].mxu0
        %v3190 = vadd.f32 %v3029, %v3189
        %v3191 = vpop.f32.mrb[0].mxu0
        %v3192 = vpop.f32.mrb[0].mxu0
        %v3193 = vadd.f32 %v3032, %v3192
        %v3194 = vpop.f32.mrb[0].mxu0
        %3195 = vmatprep.mubr.bf16.mxu0 0
        %3196 = vmatmul.mubr.bf16.gmra.mrb[0].mxu0 %v1812
        %v3197 = vpop.f32.mrb[0].mxu0
        %v3198 = vadd.f32 %v3037, %v3197
        %v3199 = vpop.f32.mrb[0].mxu0
        %v3200 = vpop.f32.mrb[0].mxu0
        %v3201 = vadd.f32 %v3040, %v3200
        %v3202 = vpop.f32.mrb[0].mxu0
        %3203 = vmatprep.mubr.bf16.mxu0 0
        %3204 = vmatmul.mubr.bf16.gmra.mrb[0].mxu0 %v1821
        %v3205 = vpop.f32.mrb[0].mxu0
        %v3206 = vadd.f32 %v3045, %v3205
        %v3207 = vpop.f32.mrb[0].mxu0
        %v3208 = vpop.f32.mrb[0].mxu0
        %v3209 = vadd.f32 %v3048, %v3208
        %v3210 = vpop.f32.mrb[0].mxu0
        %3211 = vmatprep.mubr.bf16.mxu0 0
        %3212 = vmatmul.mubr.bf16.gmra.mrb[0].mxu0 %v1830
        %v3213 = vpop.f32.mrb[0].mxu0
        %v3214 = vadd.f32 %v3053, %v3213
        %v3215 = vpop.f32.mrb[0].mxu0
        %v3216 = vpop.f32.mrb[0].mxu0
        %v3217 = vadd.f32 %v3056, %v3216
        %v3218 = vpop.f32.mrb[0].mxu0
        %3219 = vmatprep.mubr.bf16.mxu0 0
        %3220 = vmatmul.mubr.bf16.gmra.mrb[0].mxu0 %v1839
        %v3221 = vpop.f32.mrb[0].mxu0
        %v3222 = vadd.f32 %v3061, %v3221
        %v3223 = vpop.f32.mrb[0].mxu0
        %v3224 = vpop.f32.mrb[0].mxu0
        %v3225 = vadd.f32 %v3064, %v3224
        %v3226 = vpop.f32.mrb[0].mxu0
        %3227 = vmatprep.mubr.bf16.mxu0 0
        %3228 = vmatmul.mubr.bf16.gmra.mrb[0].mxu0 %v1848
        %v3229 = vpop.f32.mrb[0].mxu0
        %v3230 = vadd.f32 %v3069, %v3229
        %v3231 = vpop.f32.mrb[0].mxu0
        %v3232 = vpop.f32.mrb[0].mxu0
        %v3233 = vadd.f32 %v3072, %v3232
        %v3234 = vpop.f32.mrb[0].mxu0
        %3235 = vmatprep.mubr.bf16.mxu0 0
        %3236 = vmatmul.mubr.bf16.gmra.mrb[0].mxu0 %v1857
        %v3237 = vpop.f32.mrb[0].mxu0
        %v3238 = vadd.f32 %v3077, %v3237
        %v3239 = vpop.f32.mrb[0].mxu0
        %v3240 = vpop.f32.mrb[0].mxu0
        %v3241 = vadd.f32 %v3080, %v3240
        %v3242 = vpop.f32.mrb[0].mxu0
        %3243 = vmatprep.mubr.bf16.mxu0 0
        %3244 = vmatmul.mubr.bf16.gmra.mrb[0].mxu0 %v1866
        %v3245 = vpop.f32.mrb[0].mxu0
        %v3246 = vadd.f32 %v3085, %v3245
        %v3247 = vpop.f32.mrb[0].mxu0
        %v3248 = vpop.f32.mrb[0].mxu0
        %v3249 = vadd.f32 %v3088, %v3248
        %v3250 = vpop.f32.mrb[0].mxu0
        %3251 = vmatprep.mubr.bf16.mxu0 0
        %3252 = vmatmul.mubr.bf16.gmra.mrb[0].mxu0 %v1875
        %v3253 = vpop.f32.mrb[0].mxu0
        %v3254 = vadd.f32 %v3093, %v3253
        %v3255 = vpop.f32.mrb[0].mxu0
        %v3256 = vpop.f32.mrb[0].mxu0
        %v3257 = vadd.f32 %v3096, %v3256
        %v3258 = vpop.f32.mrb[0].mxu0
        %3259 = vmatprep.mubr.bf16.mxu0 0
        %3260 = vmatmul.mubr.bf16.gmra.mrb[0].mxu0 %v1884
        %v3261 = vpop.f32.mrb[0].mxu0
        %v3262 = vadd.f32 %v3101, %v3261
        %v3263 = vpop.f32.mrb[0].mxu0
        %v3264 = vpop.f32.mrb[0].mxu0
        %v3265 = vadd.f32 %v3104, %v3264
        %v3266 = vpop.f32.mrb[0].mxu0
        %3267 = vmatprep.mubr.bf16.mxu0 0
        %3268 = vmatmul.mubr.bf16.gmra.mrb[0].mxu0 %v1893
        %v3269 = vpop.f32.mrb[0].mxu0
        %v3270 = vadd.f32 %v3109, %v3269
        %v3271 = vpop.f32.mrb[0].mxu0
        %v3272 = vpop.f32.mrb[0].mxu0
        %v3273 = vadd.f32 %v3112, %v3272
        %v3274 = vpop.f32.mrb[0].mxu0
        %3275 = vmatprep.mubr.bf16.mxu0 0
        %3276 = vmatmul.mubr.bf16.gmra.mrb[0].mxu0 %v1902
        %v3277 = vpop.f32.mrb[0].mxu0
        %v3278 = vadd.f32 %v3117, %v3277
        %v3279 = vpop.f32.mrb[0].mxu0
        %v3280 = vpop.f32.mrb[0].mxu0
        %v3281 = vadd.f32 %v3120, %v3280
        %v3282 = vpop.f32.mrb[0].mxu0
        %3283 = vdwg.mxu0
        %v3284 = vld [vmem:[%s5] sm:$0x1]
        %v3286 = vlaneseq
        %v3287 = vshrl.u32 %v3286, 7
        %v3288 = vsub.s32 0, %v3287
        %v3289 = vrot.slane %v3284, %v3288
        %v3291 = vmul.f32 %v3158, %v3289
        %v3292 = vmul.f32 %v3161, %v3289
        %v3293 = vmul.f32 %v3166, %v3289
        %v3294 = vmul.f32 %v3169, %v3289
        %v3295 = vmul.f32 %v3174, %v3289
        %v3296 = vmul.f32 %v3177, %v3289
        %v3297 = vmul.f32 %v3182, %v3289
        %v3298 = vmul.f32 %v3185, %v3289
        %v3299 = vmul.f32 %v3190, %v3289
        %v3300 = vmul.f32 %v3193, %v3289
        %v3301 = vmul.f32 %v3198, %v3289
        %v3302 = vmul.f32 %v3201, %v3289
        %v3303 = vmul.f32 %v3206, %v3289
        %v3304 = vmul.f32 %v3209, %v3289
        %v3305 = vmul.f32 %v3214, %v3289
        %v3306 = vmul.f32 %v3217, %v3289
        %v3307 = vmul.f32 %v3222, %v3289
        %v3308 = vmul.f32 %v3225, %v3289
        %v3309 = vmul.f32 %v3230, %v3289
        %v3310 = vmul.f32 %v3233, %v3289
        %v3311 = vmul.f32 %v3238, %v3289
        %v3312 = vmul.f32 %v3241, %v3289
        %v3313 = vmul.f32 %v3246, %v3289
        %v3314 = vmul.f32 %v3249, %v3289
        %v3315 = vmul.f32 %v3254, %v3289
        %v3316 = vmul.f32 %v3257, %v3289
        %v3317 = vmul.f32 %v3262, %v3289
        %v3318 = vmul.f32 %v3265, %v3289
        %v3319 = vmul.f32 %v3270, %v3289
        %v3320 = vmul.f32 %v3273, %v3289
        %v3321 = vmul.f32 %v3278, %v3289
        %v3322 = vmul.f32 %v3281, %v3289
        %v3323 = vld [vmem:[%s6] sm:$0x1]
        %v3325 = vlaneseq
        %v3326 = vshrl.u32 %v3325, 7
        %v3327 = vsub.s32 0, %v3326
        %v3328 = vrot.slane %v3323, %v3327
        %v3330 = vadd.f32 %v3291, %v3328
        %v3331 = vadd.f32 %v3292, %v3328
        %v3332 = vadd.f32 %v3293, %v3328
        %v3333 = vadd.f32 %v3294, %v3328
        %v3334 = vadd.f32 %v3295, %v3328
        %v3335 = vadd.f32 %v3296, %v3328
        %v3336 = vadd.f32 %v3297, %v3328
        %v3337 = vadd.f32 %v3298, %v3328
        %v3338 = vadd.f32 %v3299, %v3328
        %v3339 = vadd.f32 %v3300, %v3328
        %v3340 = vadd.f32 %v3301, %v3328
        %v3341 = vadd.f32 %v3302, %v3328
        %v3342 = vadd.f32 %v3303, %v3328
        %v3343 = vadd.f32 %v3304, %v3328
        %v3344 = vadd.f32 %v3305, %v3328
        %v3345 = vadd.f32 %v3306, %v3328
        %v3346 = vadd.f32 %v3307, %v3328
        %v3347 = vadd.f32 %v3308, %v3328
        %v3348 = vadd.f32 %v3309, %v3328
        %v3349 = vadd.f32 %v3310, %v3328
        %v3350 = vadd.f32 %v3311, %v3328
        %v3351 = vadd.f32 %v3312, %v3328
        %v3352 = vadd.f32 %v3313, %v3328
        %v3353 = vadd.f32 %v3314, %v3328
        %v3354 = vadd.f32 %v3315, %v3328
        %v3355 = vadd.f32 %v3316, %v3328
        %v3356 = vadd.f32 %v3317, %v3328
        %v3357 = vadd.f32 %v3318, %v3328
        %v3358 = vadd.f32 %v3319, %v3328
        %v3359 = vadd.f32 %v3320, %v3328
        %v3360 = vadd.f32 %v3321, %v3328
        %v3361 = vadd.f32 %v3322, %v3328
        %v3362 = vxor.u32 %v3330, 2147483648
        %v3363 = vxor.u32 %v3331, 2147483648
        %v3364 = vxor.u32 %v3332, 2147483648
        %v3365 = vxor.u32 %v3333, 2147483648
        %v3366 = vxor.u32 %v3334, 2147483648
        %v3367 = vxor.u32 %v3335, 2147483648
        %v3368 = vxor.u32 %v3336, 2147483648
        %v3369 = vxor.u32 %v3337, 2147483648
        %v3370 = vxor.u32 %v3338, 2147483648
        %v3371 = vxor.u32 %v3339, 2147483648
        %v3372 = vxor.u32 %v3340, 2147483648
        %v3373 = vxor.u32 %v3341, 2147483648
        %v3374 = vxor.u32 %v3342, 2147483648
        %v3375 = vxor.u32 %v3343, 2147483648
        %v3376 = vxor.u32 %v3344, 2147483648
        %v3377 = vxor.u32 %v3345, 2147483648
        %v3378 = vxor.u32 %v3346, 2147483648
        %v3379 = vxor.u32 %v3347, 2147483648
        %v3380 = vxor.u32 %v3348, 2147483648
        %v3381 = vxor.u32 %v3349, 2147483648
        %v3382 = vxor.u32 %v3350, 2147483648
        %v3383 = vxor.u32 %v3351, 2147483648
        %v3384 = vxor.u32 %v3352, 2147483648
        %v3385 = vxor.u32 %v3353, 2147483648
        %v3386 = vxor.u32 %v3354, 2147483648
        %v3387 = vxor.u32 %v3355, 2147483648
        %v3388 = vxor.u32 %v3356, 2147483648
        %v3389 = vxor.u32 %v3357, 2147483648
        %v3390 = vxor.u32 %v3358, 2147483648
        %v3391 = vxor.u32 %v3359, 2147483648
        %v3392 = vxor.u32 %v3360, 2147483648
        %v3393 = vxor.u32 %v3361, 2147483648
        %v3394 = vmul.f32 %v3362, 1.442695
        %v3395 = vpow.pop %v3394
        %v3396 = vmul.f32 %v3363, 1.442695
        %v3397 = vpow.pop %v3396
        %v3398 = vmul.f32 %v3364, 1.442695
        %v3399 = vpow.pop %v3398
        %v3400 = vmul.f32 %v3365, 1.442695
        %v3401 = vpow.pop %v3400
        %v3402 = vmul.f32 %v3366, 1.442695
        %v3403 = vpow.pop %v3402
        %v3404 = vmul.f32 %v3367, 1.442695
        %v3405 = vpow.pop %v3404
        %v3406 = vmul.f32 %v3368, 1.442695
        %v3407 = vpow.pop %v3406
        %v3408 = vmul.f32 %v3369, 1.442695
        %v3409 = vpow.pop %v3408
        %v3410 = vmul.f32 %v3370, 1.442695
        %v3411 = vpow.pop %v3410
        %v3412 = vmul.f32 %v3371, 1.442695
        %v3413 = vpow.pop %v3412
        %v3414 = vmul.f32 %v3372, 1.442695
        %v3415 = vpow.pop %v3414
        %v3416 = vmul.f32 %v3373, 1.442695
        %v3417 = vpow.pop %v3416
        %v3418 = vmul.f32 %v3374, 1.442695
        %v3419 = vpow.pop %v3418
        %v3420 = vmul.f32 %v3375, 1.442695
        %v3421 = vpow.pop %v3420
        %v3422 = vmul.f32 %v3376, 1.442695
        %v3423 = vpow.pop %v3422
        %v3424 = vmul.f32 %v3377, 1.442695
        %v3425 = vpow.pop %v3424
        %v3426 = vmul.f32 %v3378, 1.442695
        %v3427 = vpow.pop %v3426
        %v3428 = vmul.f32 %v3379, 1.442695
        %v3429 = vpow.pop %v3428
        %v3430 = vmul.f32 %v3380, 1.442695
        %v3431 = vpow.pop %v3430
        %v3432 = vmul.f32 %v3381, 1.442695
        %v3433 = vpow.pop %v3432
        %v3434 = vmul.f32 %v3382, 1.442695
        %v3435 = vpow.pop %v3434
        %v3436 = vmul.f32 %v3383, 1.442695
        %v3437 = vpow.pop %v3436
        %v3438 = vmul.f32 %v3384, 1.442695
        %v3439 = vpow.pop %v3438
        %v3440 = vmul.f32 %v3385, 1.442695
        %v3441 = vpow.pop %v3440
        %v3442 = vmul.f32 %v3386, 1.442695
        %v3443 = vpow.pop %v3442
        %v3444 = vmul.f32 %v3387, 1.442695
        %v3445 = vpow.pop %v3444
        %v3446 = vmul.f32 %v3388, 1.442695
        %v3447 = vpow.pop %v3446
        %v3448 = vmul.f32 %v3389, 1.442695
        %v3449 = vpow.pop %v3448
        %v3450 = vmul.f32 %v3390, 1.442695
        %v3451 = vpow.pop %v3450
        %v3452 = vmul.f32 %v3391, 1.442695
        %v3453 = vpow.pop %v3452
        %v3454 = vmul.f32 %v3392, 1.442695
        %v3455 = vpow.pop %v3454
        %v3456 = vmul.f32 %v3393, 1.442695
        %v3457 = vpow.pop %v3456
        %v3458 = vadd.f32 %v3395, 1.0
        %v3459 = vadd.f32 %v3397, 1.0
        %v3460 = vadd.f32 %v3399, 1.0
        %v3461 = vadd.f32 %v3401, 1.0
        %v3462 = vadd.f32 %v3403, 1.0
        %v3463 = vadd.f32 %v3405, 1.0
        %v3464 = vadd.f32 %v3407, 1.0
        %v3465 = vadd.f32 %v3409, 1.0
        %v3466 = vadd.f32 %v3411, 1.0
        %v3467 = vadd.f32 %v3413, 1.0
        %v3468 = vadd.f32 %v3415, 1.0
        %v3469 = vadd.f32 %v3417, 1.0
        %v3470 = vadd.f32 %v3419, 1.0
        %v3471 = vadd.f32 %v3421, 1.0
        %v3472 = vadd.f32 %v3423, 1.0
        %v3473 = vadd.f32 %v3425, 1.0
        %v3474 = vadd.f32 %v3427, 1.0
        %v3475 = vadd.f32 %v3429, 1.0
        %v3476 = vadd.f32 %v3431, 1.0
        %v3477 = vadd.f32 %v3433, 1.0
        %v3478 = vadd.f32 %v3435, 1.0
        %v3479 = vadd.f32 %v3437, 1.0
        %v3480 = vadd.f32 %v3439, 1.0
        %v3481 = vadd.f32 %v3441, 1.0
        %v3482 = vadd.f32 %v3443, 1.0
        %v3483 = vadd.f32 %v3445, 1.0
        %v3484 = vadd.f32 %v3447, 1.0
        %v3485 = vadd.f32 %v3449, 1.0
        %v3486 = vadd.f32 %v3451, 1.0
        %v3487 = vadd.f32 %v3453, 1.0
        %v3488 = vadd.f32 %v3455, 1.0
        %v3489 = vadd.f32 %v3457, 1.0
        %v3490 = vrcp.pop %v3458
        %v3491 = vmul.f32 1.0, %v3490
        %v3492 = vrcp.pop %v3459
        %v3493 = vmul.f32 1.0, %v3492
        %v3494 = vrcp.pop %v3460
        %v3495 = vmul.f32 1.0, %v3494
        %v3496 = vrcp.pop %v3461
        %v3497 = vmul.f32 1.0, %v3496
        %v3498 = vrcp.pop %v3462
        %v3499 = vmul.f32 1.0, %v3498
        %v3500 = vrcp.pop %v3463
        %v3501 = vmul.f32 1.0, %v3500
        %v3502 = vrcp.pop %v3464
        %v3503 = vmul.f32 1.0, %v3502
        %v3504 = vrcp.pop %v3465
        %v3505 = vmul.f32 1.0, %v3504
        %v3506 = vrcp.pop %v3466
        %v3507 = vmul.f32 1.0, %v3506
        %v3508 = vrcp.pop %v3467
        %v3509 = vmul.f32 1.0, %v3508
        %v3510 = vrcp.pop %v3468
        %v3511 = vmul.f32 1.0, %v3510
        %v3512 = vrcp.pop %v3469
        %v3513 = vmul.f32 1.0, %v3512
        %v3514 = vrcp.pop %v3470
        %v3515 = vmul.f32 1.0, %v3514
        %v3516 = vrcp.pop %v3471
        %v3517 = vmul.f32 1.0, %v3516
        %v3518 = vrcp.pop %v3472
        %v3519 = vmul.f32 1.0, %v3518
        %v3520 = vrcp.pop %v3473
        %v3521 = vmul.f32 1.0, %v3520
        %v3522 = vrcp.pop %v3474
        %v3523 = vmul.f32 1.0, %v3522
        %v3524 = vrcp.pop %v3475
        %v3525 = vmul.f32 1.0, %v3524
        %v3526 = vrcp.pop %v3476
        %v3527 = vmul.f32 1.0, %v3526
        %v3528 = vrcp.pop %v3477
        %v3529 = vmul.f32 1.0, %v3528
        %v3530 = vrcp.pop %v3478
        %v3531 = vmul.f32 1.0, %v3530
        %v3532 = vrcp.pop %v3479
        %v3533 = vmul.f32 1.0, %v3532
        %v3534 = vrcp.pop %v3480
        %v3535 = vmul.f32 1.0, %v3534
        %v3536 = vrcp.pop %v3481
        %v3537 = vmul.f32 1.0, %v3536
        %v3538 = vrcp.pop %v3482
        %v3539 = vmul.f32 1.0, %v3538
        %v3540 = vrcp.pop %v3483
        %v3541 = vmul.f32 1.0, %v3540
        %v3542 = vrcp.pop %v3484
        %v3543 = vmul.f32 1.0, %v3542
        %v3544 = vrcp.pop %v3485
        %v3545 = vmul.f32 1.0, %v3544
        %v3546 = vrcp.pop %v3486
        %v3547 = vmul.f32 1.0, %v3546
        %v3548 = vrcp.pop %v3487
        %v3549 = vmul.f32 1.0, %v3548
        %v3550 = vrcp.pop %v3488
        %v3551 = vmul.f32 1.0, %v3550
        %v3552 = vrcp.pop %v3489
        %v3553 = vmul.f32 1.0, %v3552
        %v3554 = vmul.f32 %v3330, %v3491
        %v3555 = vmul.f32 %v3331, %v3493
        %v3556 = vmul.f32 %v3332, %v3495
        %v3557 = vmul.f32 %v3333, %v3497
        %v3558 = vmul.f32 %v3334, %v3499
        %v3559 = vmul.f32 %v3335, %v3501
        %v3560 = vmul.f32 %v3336, %v3503
        %v3561 = vmul.f32 %v3337, %v3505
        %v3562 = vmul.f32 %v3338, %v3507
        %v3563 = vmul.f32 %v3339, %v3509
        %v3564 = vmul.f32 %v3340, %v3511
        %v3565 = vmul.f32 %v3341, %v3513
        %v3566 = vmul.f32 %v3342, %v3515
        %v3567 = vmul.f32 %v3343, %v3517
        %v3568 = vmul.f32 %v3344, %v3519
        %v3569 = vmul.f32 %v3345, %v3521
        %v3570 = vmul.f32 %v3346, %v3523
        %v3571 = vmul.f32 %v3347, %v3525
        %v3572 = vmul.f32 %v3348, %v3527
        %v3573 = vmul.f32 %v3349, %v3529
        %v3574 = vmul.f32 %v3350, %v3531
        %v3575 = vmul.f32 %v3351, %v3533
        %v3576 = vmul.f32 %v3352, %v3535
        %v3577 = vmul.f32 %v3353, %v3537
        %v3578 = vmul.f32 %v3354, %v3539
        %v3579 = vmul.f32 %v3355, %v3541
        %v3580 = vmul.f32 %v3356, %v3543
        %v3581 = vmul.f32 %v3357, %v3545
        %v3582 = vmul.f32 %v3358, %v3547
        %v3583 = vmul.f32 %v3359, %v3549
        %v3584 = vmul.f32 %v3360, %v3551
        %v3585 = vmul.f32 %v3361, %v3553
        %v3586 = vadd.f32 %v3554, %v3555
        %v3587 = vadd.f32 %v3586, %v3556
        %v3588 = vadd.f32 %v3587, %v3557
        %v3589 = vadd.f32 %v3588, %v3558
        %v3590 = vadd.f32 %v3589, %v3559
        %v3591 = vadd.f32 %v3590, %v3560
        %v3592 = vadd.f32 %v3591, %v3561
        %v3593 = vadd.f32 %v3592, %v3562
        %v3594 = vadd.f32 %v3593, %v3563
        %v3595 = vadd.f32 %v3594, %v3564
        %v3596 = vadd.f32 %v3595, %v3565
        %v3597 = vadd.f32 %v3596, %v3566
        %v3598 = vadd.f32 %v3597, %v3567
        %v3599 = vadd.f32 %v3598, %v3568
        %v3600 = vadd.f32 %v3599, %v3569
        %v3601 = vadd.f32 %v3600, %v3570
        %v3602 = vadd.f32 %v3601, %v3571
        %v3603 = vadd.f32 %v3602, %v3572
        %v3604 = vadd.f32 %v3603, %v3573
        %v3605 = vadd.f32 %v3604, %v3574
        %v3606 = vadd.f32 %v3605, %v3575
        %v3607 = vadd.f32 %v3606, %v3576
        %v3608 = vadd.f32 %v3607, %v3577
        %v3609 = vadd.f32 %v3608, %v3578
        %v3610 = vadd.f32 %v3609, %v3579
        %v3611 = vadd.f32 %v3610, %v3580
        %v3612 = vadd.f32 %v3611, %v3581
        %v3613 = vadd.f32 %v3612, %v3582
        %v3614 = vadd.f32 %v3613, %v3583
        %v3615 = vadd.f32 %v3614, %v3584
        %v3616 = vadd.f32 %v3615, %v3585
        %v3617 = vrot.slane %v3616, 4
        %v3618 = vadd.f32 %v3616, %v3617
        %v3619 = vrot.slane %v3618, 2
        %v3620 = vadd.f32 %v3618, %v3619
        %v3621 = vrot.slane %v3620, 1
        %v3622 = vadd.f32 %v3620, %v3621
        %v3623 = vrcp.pop 256.0
        %v3624 = vmul.f32 %v3622, %v3623
        %v3625 = vmax.f32 %v3554, %v3558
        %v3626 = vmax.f32 %v3555, %v3559
        %v3627 = vmax.f32 %v3556, %v3560
        %v3628 = vmax.f32 %v3557, %v3561
        %v3629 = vmax.f32 %v3625, %v3562
        %v3630 = vmax.f32 %v3626, %v3563
        %v3631 = vmax.f32 %v3627, %v3564
        %v3632 = vmax.f32 %v3628, %v3565
        %v3633 = vmax.f32 %v3629, %v3566
        %v3634 = vmax.f32 %v3630, %v3567
        %v3635 = vmax.f32 %v3631, %v3568
        %v3636 = vmax.f32 %v3632, %v3569
        %v3637 = vmax.f32 %v3633, %v3570
        %v3638 = vmax.f32 %v3634, %v3571
        %v3639 = vmax.f32 %v3635, %v3572
        %v3640 = vmax.f32 %v3636, %v3573
        %v3641 = vmax.f32 %v3637, %v3574
        %v3642 = vmax.f32 %v3638, %v3575
        %v3643 = vmax.f32 %v3639, %v3576
        %v3644 = vmax.f32 %v3640, %v3577
        %v3645 = vmax.f32 %v3641, %v3578
        %v3646 = vmax.f32 %v3642, %v3579
        %v3647 = vmax.f32 %v3643, %v3580
        %v3648 = vmax.f32 %v3644, %v3581
        %v3649 = vmax.f32 %v3645, %v3582
        %v3650 = vmax.f32 %v3646, %v3583
        %v3651 = vmax.f32 %v3647, %v3584
        %v3652 = vmax.f32 %v3648, %v3585
        %v3653 = vmax.f32 %v3649, %v3650
        %v3654 = vmax.f32 %v3651, %v3652
        %v3655 = vmax.f32 %v3653, %v3654
        %v3656 = vrot.slane %v3655, 4
        %v3657 = vmax.f32 %v3655, %v3656
        %v3658 = vrot.slane %v3657, 2
        %v3659 = vmax.f32 %v3657, %v3658
        %v3660 = vrot.slane %v3659, 1
        %v3661 = vmax.f32 %v3659, %v3660
        %v3662 = vld [vmem:[#allocation12] sm:$0xff]
        %v3663 = vld [vmem:[#allocation12 + $0x8] sm:$0xff]
        %v3664 = vld [vmem:[#allocation12 + $0x10] sm:$0xff]
        %v3665 = vld [vmem:[#allocation12 + $0x18] sm:$0xff]
        %v3666 = vld [vmem:[#allocation12 + $0x20] sm:$0xff]
        %v3667 = vld [vmem:[#allocation12 + $0x28] sm:$0xff]
        %v3668 = vld [vmem:[#allocation12 + $0x30] sm:$0xff]
        %v3669 = vld [vmem:[#allocation12 + $0x38] sm:$0xff]
        %v3670 = vld [vmem:[#allocation12 + $0x40] sm:$0xff]
        %v3671 = vld [vmem:[#allocation12 + $0x48] sm:$0xff]
        %v3672 = vld [vmem:[#allocation12 + $0x50] sm:$0xff]
        %v3673 = vld [vmem:[#allocation12 + $0x58] sm:$0xff]
        %v3674 = vld [vmem:[#allocation12 + $0x60] sm:$0xff]
        %v3675 = vld [vmem:[#allocation12 + $0x68] sm:$0xff]
        %v3676 = vld [vmem:[#allocation12 + $0x70] sm:$0xff]
        %v3677 = vld [vmem:[#allocation12 + $0x78] sm:$0xff]
        %3678 = vmatprep.subr.mxu0 0.0
        %3679 = vmatpush1.msra.mxu0 %v3662
        %3680 = vmatprep.subr.mxu0 0.0
        %3681 = vmatpush1.msra.mxu0 %v3663
        %3682 = vmatprep.subr.mxu0 0.0
        %3683 = vmatpush1.msra.mxu0 %v3664
        %3684 = vmatprep.subr.mxu0 0.0
        %3685 = vmatpush1.msra.mxu0 %v3665
        %3686 = vmatprep.subr.mxu0 0.0
        %3687 = vmatpush1.msra.mxu0 %v3666
        %3688 = vmatprep.subr.mxu0 0.0
        %3689 = vmatpush1.msra.mxu0 %v3667
        %3690 = vmatprep.subr.mxu0 0.0
        %3691 = vmatpush1.msra.mxu0 %v3668
        %3692 = vmatprep.subr.mxu0 0.0
        %3693 = vmatpush1.msra.mxu0 %v3669
        %3694 = vmatprep.subr.mxu0 0.0
        %3695 = vmatpush1.msra.mxu0 %v3670
        %3696 = vmatprep.subr.mxu0 0.0
        %3697 = vmatpush1.msra.mxu0 %v3671
        %3698 = vmatprep.subr.mxu0 0.0
        %3699 = vmatpush1.msra.mxu0 %v3672
        %3700 = vmatprep.subr.mxu0 0.0
        %3701 = vmatpush1.msra.mxu0 %v3673
        %3702 = vmatprep.subr.mxu0 0.0
        %3703 = vmatpush1.msra.mxu0 %v3674
        %3704 = vmatprep.subr.mxu0 0.0
        %3705 = vmatpush1.msra.mxu0 %v3675
        %3706 = vmatprep.subr.mxu0 0.0
        %3707 = vmatpush1.msra.mxu0 %v3676
        %3708 = vmatprep.subr.mxu0 0.0
        %3709 = vmatpush1.msra.mxu0 %v3677
        %3710 = vmatprep.subr.mxu0 0.0
        %3711 = vmatpush1.msra.mxu0 0.0
        %3712 = vmatprep.subr.mxu0 0.0
        %3713 = vmatpush1.msra.mxu0 0.0
        %3714 = vmatprep.subr.mxu0 0.0
        %3715 = vmatpush1.msra.mxu0 0.0
        %3716 = vmatprep.subr.mxu0 0.0
        %3717 = vmatpush1.msra.mxu0 0.0
        %3718 = vmatprep.subr.mxu0 0.0
        %3719 = vmatpush1.msra.mxu0 0.0
        %3720 = vmatprep.subr.mxu0 0.0
        %3721 = vmatpush1.msra.mxu0 0.0
        %3722 = vmatprep.subr.mxu0 0.0
        %3723 = vmatpush1.msra.mxu0 0.0
        %3724 = vmatprep.subr.mxu0 0.0
        %3725 = vmatpush1.msra.mxu0 0.0
        %3726 = vmatprep.subr.mxu0 0.0
        %3727 = vmatpush1.msra.mxu0 0.0
        %3728 = vmatprep.subr.mxu0 0.0
        %3729 = vmatpush1.msra.mxu0 0.0
        %3730 = vmatprep.subr.mxu0 0.0
        %3731 = vmatpush1.msra.mxu0 0.0
        %3732 = vmatprep.subr.mxu0 0.0
        %3733 = vmatpush1.msra.mxu0 0.0
        %3734 = vmatprep.subr.mxu0 0.0
        %3735 = vmatpush1.msra.mxu0 0.0
        %3736 = vmatprep.subr.mxu0 0.0
        %3737 = vmatpush1.msra.mxu0 0.0
        %3738 = vmatprep.subr.mxu0 0.0
        %3739 = vmatpush1.msra.mxu0 0.0
        %3740 = vmatprep.subr.mxu0 0.0
        %3741 = vmatpush1.msra.mxu0 0.0
        %3742 = vmatprep.mubr.f32.mxu0 0.0
        %3743 = vmatmul.mubr.f32.gmra.mrb[0].mxu0 %v3624
        %v3744 = vpop.f32.mrb[0].mxu0
        %v3745 = vadd.f32 0.0, %v3744
        %v3746 = vpop.f32.mrb[0].mxu0
        %3747 = vdwg.mxu0
        %v3748 = vmax.f32 %v3745, 0.0
        %v3749 = vld [vmem:[#allocation14] sm:$0xff]
        %v3750 = vld [vmem:[#allocation14 + $0x8] sm:$0xff]
        %v3751 = vld [vmem:[#allocation14 + $0x10] sm:$0xff]
        %v3752 = vld [vmem:[#allocation14 + $0x18] sm:$0xff]
        %v3753 = vld [vmem:[#allocation14 + $0x20] sm:$0xff]
        %v3754 = vld [vmem:[#allocation14 + $0x28] sm:$0xff]
        %v3755 = vld [vmem:[#allocation14 + $0x30] sm:$0xff]
        %v3756 = vld [vmem:[#allocation14 + $0x38] sm:$0xff]
        %v3757 = vld [vmem:[#allocation14 + $0x40] sm:$0xff]
        %v3758 = vld [vmem:[#allocation14 + $0x48] sm:$0xff]
        %v3759 = vld [vmem:[#allocation14 + $0x50] sm:$0xff]
        %v3760 = vld [vmem:[#allocation14 + $0x58] sm:$0xff]
        %v3761 = vld [vmem:[#allocation14 + $0x60] sm:$0xff]
        %v3762 = vld [vmem:[#allocation14 + $0x68] sm:$0xff]
        %v3763 = vld [vmem:[#allocation14 + $0x70] sm:$0xff]
        %v3764 = vld [vmem:[#allocation14 + $0x78] sm:$0xff]
        %3765 = vmatprep.subr.mxu0 0.0
        %3766 = vmatpush1.msra.mxu0 %v3662
        %3767 = vmatprep.subr.mxu0 0.0
        %3768 = vmatpush1.msra.mxu0 %v3663
        %3769 = vmatprep.subr.mxu0 0.0
        %3770 = vmatpush1.msra.mxu0 %v3664
        %3771 = vmatprep.subr.mxu0 0.0
        %3772 = vmatpush1.msra.mxu0 %v3665
        %3773 = vmatprep.subr.mxu0 0.0
        %3774 = vmatpush1.msra.mxu0 %v3666
        %3775 = vmatprep.subr.mxu0 0.0
        %3776 = vmatpush1.msra.mxu0 %v3667
        %3777 = vmatprep.subr.mxu0 0.0
        %3778 = vmatpush1.msra.mxu0 %v3668
        %3779 = vmatprep.subr.mxu0 0.0
        %3780 = vmatpush1.msra.mxu0 %v3669
        %3781 = vmatprep.subr.mxu0 0.0
        %3782 = vmatpush1.msra.mxu0 %v3670
        %3783 = vmatprep.subr.mxu0 0.0
        %3784 = vmatpush1.msra.mxu0 %v3671
        %3785 = vmatprep.subr.mxu0 0.0
        %3786 = vmatpush1.msra.mxu0 %v3672
        %3787 = vmatprep.subr.mxu0 0.0
        %3788 = vmatpush1.msra.mxu0 %v3673
        %3789 = vmatprep.subr.mxu0 0.0
        %3790 = vmatpush1.msra.mxu0 %v3674
        %3791 = vmatprep.subr.mxu0 0.0
        %3792 = vmatpush1.msra.mxu0 %v3675
        %3793 = vmatprep.subr.mxu0 0.0
        %3794 = vmatpush1.msra.mxu0 %v3676
        %3795 = vmatprep.subr.mxu0 0.0
        %3796 = vmatpush1.msra.mxu0 %v3677
        %3797 = vmatprep.subr.mxu0 0.0
        %3798 = vmatpush1.msra.mxu0 0.0
        %3799 = vmatprep.subr.mxu0 0.0
        %3800 = vmatpush1.msra.mxu0 0.0
        %3801 = vmatprep.subr.mxu0 0.0
        %3802 = vmatpush1.msra.mxu0 0.0
        %3803 = vmatprep.subr.mxu0 0.0
        %3804 = vmatpush1.msra.mxu0 0.0
        %3805 = vmatprep.subr.mxu0 0.0
        %3806 = vmatpush1.msra.mxu0 0.0
        %3807 = vmatprep.subr.mxu0 0.0
        %3808 = vmatpush1.msra.mxu0 0.0
        %3809 = vmatprep.subr.mxu0 0.0
        %3810 = vmatpush1.msra.mxu0 0.0
        %3811 = vmatprep.subr.mxu0 0.0
        %3812 = vmatpush1.msra.mxu0 0.0
        %3813 = vmatprep.subr.mxu0 0.0
        %3814 = vmatpush1.msra.mxu0 0.0
        %3815 = vmatprep.subr.mxu0 0.0
        %3816 = vmatpush1.msra.mxu0 0.0
        %3817 = vmatprep.subr.mxu0 0.0
        %3818 = vmatpush1.msra.mxu0 0.0
        %3819 = vmatprep.subr.mxu0 0.0
        %3820 = vmatpush1.msra.mxu0 0.0
        %3821 = vmatprep.subr.mxu0 0.0
        %3822 = vmatpush1.msra.mxu0 0.0
        %3823 = vmatprep.subr.mxu0 0.0
        %3824 = vmatpush1.msra.mxu0 0.0
        %3825 = vmatprep.subr.mxu0 0.0
        %3826 = vmatpush1.msra.mxu0 0.0
        %3827 = vmatprep.subr.mxu0 0.0
        %3828 = vmatpush1.msra.mxu0 0.0
        %3829 = vmatprep.mubr.f32.mxu0 0.0
        %3830 = vmatmul.mubr.f32.gmra.mrb[0].mxu0 %v3661
        %v3831 = vpop.f32.mrb[0].mxu0
        %v3832 = vadd.f32 0.0, %v3831
        %v3833 = vpop.f32.mrb[0].mxu0
        %3834 = vdwg.mxu0
        %v3835 = vmax.f32 %v3832, 0.0
        %3836 = vmatprep.subr.mxu0 0.0
        %3837 = vmatpush1.msra.mxu0 %v3749
        %3838 = vmatprep.subr.mxu0 0.0
        %3839 = vmatpush1.msra.mxu0 %v3750
        %3840 = vmatprep.subr.mxu0 0.0
        %3841 = vmatpush1.msra.mxu0 %v3751
        %3842 = vmatprep.subr.mxu0 0.0
        %3843 = vmatpush1.msra.mxu0 %v3752
        %3844 = vmatprep.subr.mxu0 0.0
        %3845 = vmatpush1.msra.mxu0 %v3753
        %3846 = vmatprep.subr.mxu0 0.0
        %3847 = vmatpush1.msra.mxu0 %v3754
        %3848 = vmatprep.subr.mxu0 0.0
        %3849 = vmatpush1.msra.mxu0 %v3755
        %3850 = vmatprep.subr.mxu0 0.0
        %3851 = vmatpush1.msra.mxu0 %v3756
        %3852 = vmatprep.subr.mxu0 0.0
        %3853 = vmatpush1.msra.mxu0 %v3757
        %3854 = vmatprep.subr.mxu0 0.0
        %3855 = vmatpush1.msra.mxu0 %v3758
        %3856 = vmatprep.subr.mxu0 0.0
        %3857 = vmatpush1.msra.mxu0 %v3759
        %3858 = vmatprep.subr.mxu0 0.0
        %3859 = vmatpush1.msra.mxu0 %v3760
        %3860 = vmatprep.subr.mxu0 0.0
        %3861 = vmatpush1.msra.mxu0 %v3761
        %3862 = vmatprep.subr.mxu0 0.0
        %3863 = vmatpush1.msra.mxu0 %v3762
        %3864 = vmatprep.subr.mxu0 0.0
        %3865 = vmatpush1.msra.mxu0 %v3763
        %3866 = vmatprep.subr.mxu0 0.0
        %3867 = vmatpush1.msra.mxu0 %v3764
        %3868 = vmatprep.subr.mxu0 0.0
        %3869 = vmatpush1.msra.mxu0 0.0
        %3870 = vmatprep.subr.mxu0 0.0
        %3871 = vmatpush1.msra.mxu0 0.0
        %3872 = vmatprep.subr.mxu0 0.0
        %3873 = vmatpush1.msra.mxu0 0.0
        %3874 = vmatprep.subr.mxu0 0.0
        %3875 = vmatpush1.msra.mxu0 0.0
        %3876 = vmatprep.subr.mxu0 0.0
        %3877 = vmatpush1.msra.mxu0 0.0
        %3878 = vmatprep.subr.mxu0 0.0
        %3879 = vmatpush1.msra.mxu0 0.0
        %3880 = vmatprep.subr.mxu0 0.0
        %3881 = vmatpush1.msra.mxu0 0.0
        %3882 = vmatprep.subr.mxu0 0.0
        %3883 = vmatpush1.msra.mxu0 0.0
        %3884 = vmatprep.subr.mxu0 0.0
        %3885 = vmatpush1.msra.mxu0 0.0
        %3886 = vmatprep.subr.mxu0 0.0
        %3887 = vmatpush1.msra.mxu0 0.0
        %3888 = vmatprep.subr.mxu0 0.0
        %3889 = vmatpush1.msra.mxu0 0.0
        %3890 = vmatprep.subr.mxu0 0.0
        %3891 = vmatpush1.msra.mxu0 0.0
        %3892 = vmatprep.subr.mxu0 0.0
        %3893 = vmatpush1.msra.mxu0 0.0
        %3894 = vmatprep.subr.mxu0 0.0
        %3895 = vmatpush1.msra.mxu0 0.0
        %3896 = vmatprep.subr.mxu0 0.0
        %3897 = vmatpush1.msra.mxu0 0.0
        %3898 = vmatprep.subr.mxu0 0.0
        %3899 = vmatpush1.msra.mxu0 0.0
        %3900 = vmatprep.mubr.f32.mxu0 0.0
        %3901 = vmatmul.mubr.f32.gmra.mrb[0].mxu0 %v3835
        %v3902 = vpop.f32.mrb[0].mxu0
        %v3903 = vadd.f32 0.0, %v3902
        %v3904 = vpop.f32.mrb[0].mxu0
        %3905 = vdwg.mxu0
        %3906 = vmatprep.subr.mxu0 0.0
        %3907 = vmatpush1.msra.mxu0 %v3749
        %3908 = vmatprep.subr.mxu0 0.0
        %3909 = vmatpush1.msra.mxu0 %v3750
        %3910 = vmatprep.subr.mxu0 0.0
        %3911 = vmatpush1.msra.mxu0 %v3751
        %3912 = vmatprep.subr.mxu0 0.0
        %3913 = vmatpush1.msra.mxu0 %v3752
        %3914 = vmatprep.subr.mxu0 0.0
        %3915 = vmatpush1.msra.mxu0 %v3753
        %3916 = vmatprep.subr.mxu0 0.0
        %3917 = vmatpush1.msra.mxu0 %v3754
        %3918 = vmatprep.subr.mxu0 0.0
        %3919 = vmatpush1.msra.mxu0 %v3755
        %3920 = vmatprep.subr.mxu0 0.0
        %3921 = vmatpush1.msra.mxu0 %v3756
        %3922 = vmatprep.subr.mxu0 0.0
        %3923 = vmatpush1.msra.mxu0 %v3757
        %3924 = vmatprep.subr.mxu0 0.0
        %3925 = vmatpush1.msra.mxu0 %v3758
        %3926 = vmatprep.subr.mxu0 0.0
        %3927 = vmatpush1.msra.mxu0 %v3759
        %3928 = vmatprep.subr.mxu0 0.0
        %3929 = vmatpush1.msra.mxu0 %v3760
        %3930 = vmatprep.subr.mxu0 0.0
        %3931 = vmatpush1.msra.mxu0 %v3761
        %3932 = vmatprep.subr.mxu0 0.0
        %3933 = vmatpush1.msra.mxu0 %v3762
        %3934 = vmatprep.subr.mxu0 0.0
        %3935 = vmatpush1.msra.mxu0 %v3763
        %3936 = vmatprep.subr.mxu0 0.0
        %3937 = vmatpush1.msra.mxu0 %v3764
        %3938 = vmatprep.subr.mxu0 0.0
        %3939 = vmatpush1.msra.mxu0 0.0
        %3940 = vmatprep.subr.mxu0 0.0
        %3941 = vmatpush1.msra.mxu0 0.0
        %3942 = vmatprep.subr.mxu0 0.0
        %3943 = vmatpush1.msra.mxu0 0.0
        %3944 = vmatprep.subr.mxu0 0.0
        %3945 = vmatpush1.msra.mxu0 0.0
        %3946 = vmatprep.subr.mxu0 0.0
        %3947 = vmatpush1.msra.mxu0 0.0
        %3948 = vmatprep.subr.mxu0 0.0
        %3949 = vmatpush1.msra.mxu0 0.0
        %3950 = vmatprep.subr.mxu0 0.0
        %3951 = vmatpush1.msra.mxu0 0.0
        %3952 = vmatprep.subr.mxu0 0.0
        %3953 = vmatpush1.msra.mxu0 0.0
        %3954 = vmatprep.subr.mxu0 0.0
        %3955 = vmatpush1.msra.mxu0 0.0
        %3956 = vmatprep.subr.mxu0 0.0
        %3957 = vmatpush1.msra.mxu0 0.0
        %3958 = vmatprep.subr.mxu0 0.0
        %3959 = vmatpush1.msra.mxu0 0.0
        %3960 = vmatprep.subr.mxu0 0.0
        %3961 = vmatpush1.msra.mxu0 0.0
        %3962 = vmatprep.subr.mxu0 0.0
        %3963 = vmatpush1.msra.mxu0 0.0
        %3964 = vmatprep.subr.mxu0 0.0
        %3965 = vmatpush1.msra.mxu0 0.0
        %3966 = vmatprep.subr.mxu0 0.0
        %3967 = vmatpush1.msra.mxu0 0.0
        %3968 = vmatprep.subr.mxu0 0.0
        %3969 = vmatpush1.msra.mxu0 0.0
        %3970 = vmatprep.mubr.f32.mxu0 0.0
        %3971 = vmatmul.mubr.f32.gmra.mrb[0].mxu0 %v3748
        %v3972 = vpop.f32.mrb[0].mxu0
        %v3973 = vadd.f32 %v3903, %v3972
        %v3974 = vpop.f32.mrb[0].mxu0
        %3975 = vdwg.mxu0
        %v3976 = vxor.u32 %v3973, 2147483648
        %v3977 = vmul.f32 %v3976, 1.442695
        %v3978 = vpow.pop %v3977
        %v3979 = vadd.f32 %v3978, 1.0
        %v3980 = vrcp.pop %v3979
        %v3981 = vmul.f32 1.0, %v3980
        %v3982 = vlaneseq
        %v3983 = vshrl.u32 %v3982, 7
        %v3984 = vsub.s32 0, %v3983
        %v3985 = vrot.slane %v3981, %v3984
        %v3986 = vmul.f32 %v3554, %v3985
        %v3987 = vmul.f32 %v3555, %v3985
        %v3988 = vmul.f32 %v3556, %v3985
        %v3989 = vmul.f32 %v3557, %v3985
        %v3990 = vmul.f32 %v3558, %v3985
        %v3991 = vmul.f32 %v3559, %v3985
        %v3992 = vmul.f32 %v3560, %v3985
        %v3993 = vmul.f32 %v3561, %v3985
        %v3994 = vmul.f32 %v3562, %v3985
        %v3995 = vmul.f32 %v3563, %v3985
        %v3996 = vmul.f32 %v3564, %v3985
        %v3997 = vmul.f32 %v3565, %v3985
        %v3998 = vmul.f32 %v3566, %v3985
        %v3999 = vmul.f32 %v3567, %v3985
        %v4000 = vmul.f32 %v3568, %v3985
        %v4001 = vmul.f32 %v3569, %v3985
        %v4002 = vmul.f32 %v3570, %v3985
        %v4003 = vmul.f32 %v3571, %v3985
        %v4004 = vmul.f32 %v3572, %v3985
        %v4005 = vmul.f32 %v3573, %v3985
        %v4006 = vmul.f32 %v3574, %v3985
        %v4007 = vmul.f32 %v3575, %v3985
        %v4008 = vmul.f32 %v3576, %v3985
        %v4009 = vmul.f32 %v3577, %v3985
        %v4010 = vmul.f32 %v3578, %v3985
        %v4011 = vmul.f32 %v3579, %v3985
        %v4012 = vmul.f32 %v3580, %v3985
        %v4013 = vmul.f32 %v3581, %v3985
        %v4014 = vmul.f32 %v3582, %v3985
        %v4015 = vmul.f32 %v3583, %v3985
        %v4016 = vmul.f32 %v3584, %v3985
        %v4017 = vmul.f32 %v3585, %v3985
        %4018 = vadd.xlane.f32.xlu0 %v3986
        %v4019 = vpop.xlane.xlu0 %4018
        %4020 = vadd.xlane.f32.xlu0 %v3987
        %v4021 = vpop.xlane.xlu0 %4020
        %4022 = vadd.xlane.f32.xlu0 %v3988
        %v4023 = vpop.xlane.xlu0 %4022
        %4024 = vadd.xlane.f32.xlu0 %v3989
        %v4025 = vpop.xlane.xlu0 %4024
        %4026 = vadd.xlane.f32.xlu0 %v3990
        %v4027 = vpop.xlane.xlu0 %4026
        %4028 = vadd.xlane.f32.xlu0 %v3991
        %v4029 = vpop.xlane.xlu0 %4028
        %4030 = vadd.xlane.f32.xlu0 %v3992
        %v4031 = vpop.xlane.xlu0 %4030
        %4032 = vadd.xlane.f32.xlu0 %v3993
        %v4033 = vpop.xlane.xlu0 %4032
        %4034 = vadd.xlane.f32.xlu0 %v3994
        %v4035 = vpop.xlane.xlu0 %4034
        %4036 = vadd.xlane.f32.xlu0 %v3995
        %v4037 = vpop.xlane.xlu0 %4036
        %4038 = vadd.xlane.f32.xlu0 %v3996
        %v4039 = vpop.xlane.xlu0 %4038
        %4040 = vadd.xlane.f32.xlu0 %v3997
        %v4041 = vpop.xlane.xlu0 %4040
        %4042 = vadd.xlane.f32.xlu0 %v3998
        %v4043 = vpop.xlane.xlu0 %4042
        %4044 = vadd.xlane.f32.xlu0 %v3999
        %v4045 = vpop.xlane.xlu0 %4044
        %4046 = vadd.xlane.f32.xlu0 %v4000
        %v4047 = vpop.xlane.xlu0 %4046
        %4048 = vadd.xlane.f32.xlu0 %v4001
        %v4049 = vpop.xlane.xlu0 %4048
        %4050 = vadd.xlane.f32.xlu0 %v4002
        %v4051 = vpop.xlane.xlu0 %4050
        %4052 = vadd.xlane.f32.xlu0 %v4003
        %v4053 = vpop.xlane.xlu0 %4052
        %4054 = vadd.xlane.f32.xlu0 %v4004
        %v4055 = vpop.xlane.xlu0 %4054
        %4056 = vadd.xlane.f32.xlu0 %v4005
        %v4057 = vpop.xlane.xlu0 %4056
        %4058 = vadd.xlane.f32.xlu0 %v4006
        %v4059 = vpop.xlane.xlu0 %4058
        %4060 = vadd.xlane.f32.xlu0 %v4007
        %v4061 = vpop.xlane.xlu0 %4060
        %4062 = vadd.xlane.f32.xlu0 %v4008
        %v4063 = vpop.xlane.xlu0 %4062
        %4064 = vadd.xlane.f32.xlu0 %v4009
        %v4065 = vpop.xlane.xlu0 %4064
        %4066 = vadd.xlane.f32.xlu0 %v4010
        %v4067 = vpop.xlane.xlu0 %4066
        %4068 = vadd.xlane.f32.xlu0 %v4011
        %v4069 = vpop.xlane.xlu0 %4068
        %4070 = vadd.xlane.f32.xlu0 %v4012
        %v4071 = vpop.xlane.xlu0 %4070
        %4072 = vadd.xlane.f32.xlu0 %v4013
        %v4073 = vpop.xlane.xlu0 %4072
        %4074 = vadd.xlane.f32.xlu0 %v4014
        %v4075 = vpop.xlane.xlu0 %4074
        %4076 = vadd.xlane.f32.xlu0 %v4015
        %v4077 = vpop.xlane.xlu0 %4076
        %4078 = vadd.xlane.f32.xlu0 %v4016
        %v4079 = vpop.xlane.xlu0 %4078
        %4080 = vadd.xlane.f32.xlu0 %v4017
        %v4081 = vpop.xlane.xlu0 %4080
        %v4082 = vmul.f32 %v4019, 0.03125
        %v4083 = vmul.f32 %v4021, 0.03125
        %v4084 = vmul.f32 %v4023, 0.03125
        %v4085 = vmul.f32 %v4025, 0.03125
        %v4086 = vmul.f32 %v4027, 0.03125
        %v4087 = vmul.f32 %v4029, 0.03125
        %v4088 = vmul.f32 %v4031, 0.03125
        %v4089 = vmul.f32 %v4033, 0.03125
        %v4090 = vmul.f32 %v4035, 0.03125
        %v4091 = vmul.f32 %v4037, 0.03125
        %v4092 = vmul.f32 %v4039, 0.03125
        %v4093 = vmul.f32 %v4041, 0.03125
        %v4094 = vmul.f32 %v4043, 0.03125
        %v4095 = vmul.f32 %v4045, 0.03125
        %v4096 = vmul.f32 %v4047, 0.03125
        %v4097 = vmul.f32 %v4049, 0.03125
        %v4098 = vmul.f32 %v4051, 0.03125
        %v4099 = vmul.f32 %v4053, 0.03125
        %v4100 = vmul.f32 %v4055, 0.03125
        %v4101 = vmul.f32 %v4057, 0.03125
        %v4102 = vmul.f32 %v4059, 0.03125
        %v4103 = vmul.f32 %v4061, 0.03125
        %v4104 = vmul.f32 %v4063, 0.03125
        %v4105 = vmul.f32 %v4065, 0.03125
        %v4106 = vmul.f32 %v4067, 0.03125
        %v4107 = vmul.f32 %v4069, 0.03125
        %v4108 = vmul.f32 %v4071, 0.03125
        %v4109 = vmul.f32 %v4073, 0.03125
        %v4110 = vmul.f32 %v4075, 0.03125
        %v4111 = vmul.f32 %v4077, 0.03125
        %v4112 = vmul.f32 %v4079, 0.03125
        %v4113 = vmul.f32 %v4081, 0.03125
        %v4114 = vlaneseq
        %v4115 = vand.u32 %v4114, 127
        %vm4116 = vcmp.lt.s32.totalorder %v4115, 32
        %v4117 = vsel %vm4116, %v3986, -inf
        %v4118 = vsel %vm4116, %v3987, -inf
        %v4119 = vsel %vm4116, %v3988, -inf
        %v4120 = vsel %vm4116, %v3989, -inf
        %v4121 = vsel %vm4116, %v3990, -inf
        %v4122 = vsel %vm4116, %v3991, -inf
        %v4123 = vsel %vm4116, %v3992, -inf
        %v4124 = vsel %vm4116, %v3993, -inf
        %v4125 = vsel %vm4116, %v3994, -inf
        %v4126 = vsel %vm4116, %v3995, -inf
        %v4127 = vsel %vm4116, %v3996, -inf
        %v4128 = vsel %vm4116, %v3997, -inf
        %v4129 = vsel %vm4116, %v3998, -inf
        %v4130 = vsel %vm4116, %v3999, -inf
        %v4131 = vsel %vm4116, %v4000, -inf
        %v4132 = vsel %vm4116, %v4001, -inf
        %v4133 = vsel %vm4116, %v4002, -inf
        %v4134 = vsel %vm4116, %v4003, -inf
        %v4135 = vsel %vm4116, %v4004, -inf
        %v4136 = vsel %vm4116, %v4005, -inf
        %v4137 = vsel %vm4116, %v4006, -inf
        %v4138 = vsel %vm4116, %v4007, -inf
        %v4139 = vsel %vm4116, %v4008, -inf
        %v4140 = vsel %vm4116, %v4009, -inf
        %v4141 = vsel %vm4116, %v4010, -inf
        %v4142 = vsel %vm4116, %v4011, -inf
        %v4143 = vsel %vm4116, %v4012, -inf
        %v4144 = vsel %vm4116, %v4013, -inf
        %v4145 = vsel %vm4116, %v4014, -inf
        %v4146 = vsel %vm4116, %v4015, -inf
        %v4147 = vsel %vm4116, %v4016, -inf
        %v4148 = vsel %vm4116, %v4017, -inf
        %4149 = vmax.xlane.f32.xlu0 %v4117
        %v4150 = vpop.xlane.xlu0 %4149
        %4151 = vmax.xlane.f32.xlu0 %v4118
        %v4152 = vpop.xlane.xlu0 %4151
        %4153 = vmax.xlane.f32.xlu0 %v4119
        %v4154 = vpop.xlane.xlu0 %4153
        %4155 = vmax.xlane.f32.xlu0 %v4120
        %v4156 = vpop.xlane.xlu0 %4155
        %4157 = vmax.xlane.f32.xlu0 %v4121
        %v4158 = vpop.xlane.xlu0 %4157
        %4159 = vmax.xlane.f32.xlu0 %v4122
        %v4160 = vpop.xlane.xlu0 %4159
        %4161 = vmax.xlane.f32.xlu0 %v4123
        %v4162 = vpop.xlane.xlu0 %4161
        %4163 = vmax.xlane.f32.xlu0 %v4124
        %v4164 = vpop.xlane.xlu0 %4163
        %4165 = vmax.xlane.f32.xlu0 %v4125
        %v4166 = vpop.xlane.xlu0 %4165
        %4167 = vmax.xlane.f32.xlu0 %v4126
        %v4168 = vpop.xlane.xlu0 %4167
        %4169 = vmax.xlane.f32.xlu0 %v4127
        %v4170 = vpop.xlane.xlu0 %4169
        %4171 = vmax.xlane.f32.xlu0 %v4128
        %v4172 = vpop.xlane.xlu0 %4171
        %4173 = vmax.xlane.f32.xlu0 %v4129
        %v4174 = vpop.xlane.xlu0 %4173
        %4175 = vmax.xlane.f32.xlu0 %v4130
        %v4176 = vpop.xlane.xlu0 %4175
        %4177 = vmax.xlane.f32.xlu0 %v4131
        %v4178 = vpop.xlane.xlu0 %4177
        %4179 = vmax.xlane.f32.xlu0 %v4132
        %v4180 = vpop.xlane.xlu0 %4179
        %4181 = vmax.xlane.f32.xlu0 %v4133
        %v4182 = vpop.xlane.xlu0 %4181
        %4183 = vmax.xlane.f32.xlu0 %v4134
        %v4184 = vpop.xlane.xlu0 %4183
        %4185 = vmax.xlane.f32.xlu0 %v4135
        %v4186 = vpop.xlane.xlu0 %4185
        %4187 = vmax.xlane.f32.xlu0 %v4136
        %v4188 = vpop.xlane.xlu0 %4187
        %4189 = vmax.xlane.f32.xlu0 %v4137
        %v4190 = vpop.xlane.xlu0 %4189
        %4191 = vmax.xlane.f32.xlu0 %v4138
        %v4192 = vpop.xlane.xlu0 %4191
        %4193 = vmax.xlane.f32.xlu0 %v4139
        %v4194 = vpop.xlane.xlu0 %4193
        %4195 = vmax.xlane.f32.xlu0 %v4140
        %v4196 = vpop.xlane.xlu0 %4195
        %4197 = vmax.xlane.f32.xlu0 %v4141
        %v4198 = vpop.xlane.xlu0 %4197
        %4199 = vmax.xlane.f32.xlu0 %v4142
        %v4200 = vpop.xlane.xlu0 %4199
        %4201 = vmax.xlane.f32.xlu0 %v4143
        %v4202 = vpop.xlane.xlu0 %4201
        %4203 = vmax.xlane.f32.xlu0 %v4144
        %v4204 = vpop.xlane.xlu0 %4203
        %4205 = vmax.xlane.f32.xlu0 %v4145
        %v4206 = vpop.xlane.xlu0 %4205
        %4207 = vmax.xlane.f32.xlu0 %v4146
        %v4208 = vpop.xlane.xlu0 %4207
        %4209 = vmax.xlane.f32.xlu0 %v4147
        %v4210 = vpop.xlane.xlu0 %4209
        %4211 = vmax.xlane.f32.xlu0 %v4148
        %v4212 = vpop.xlane.xlu0 %4211
        %vm4213 = vcmask 139264
        %4214 = vst.msk [vmem:[#allocation4] sm:$0x1] %vm4213, 0.0
        %4215 = vst.msk [vmem:[#allocation4 + $0x18] sm:$0x1] %vm4213, 0.0
        %4216 = vst.msk [vmem:[#allocation4 + $0x11] sm:$0x1] %vm4213, 0.0
        %4217 = vst.msk [vmem:[#allocation4 + $0x29] sm:$0x1] %vm4213, 0.0
        %vm4218 = vcmask 7168
        %4219 = vst.msk [vmem:[#allocation4] sm:$0xff] %vm4218, 0.0
        %4220 = vst.msk [vmem:[#allocation4 + $0x8] sm:$0xff] %vm4218, 0.0
        %vm4221 = vcmask 1024
        %4222 = vst.msk [vmem:[#allocation4 + $0x10] sm:$0x3] %vm4221, 0.0
        %4223 = vst.msk [vmem:[#allocation4 + $0x18] sm:$0xff] %vm4218, 0.0
        %4224 = vst.msk [vmem:[#allocation4 + $0x20] sm:$0xff] %vm4218, 0.0
        %4225 = vst.msk [vmem:[#allocation4 + $0x28] sm:$0x3] %vm4221, 0.0
        %vm4226 = vcmask 146568
        %4227 = vst.msk [vmem:[#allocation4] sm:$0xff] %vm4226, 0.0
        %4228 = vst.msk [vmem:[#allocation4 + $0x8] sm:$0xff] %vm4226, 0.0
        %vm4229 = vcmask 140424
        %4230 = vst.msk [vmem:[#allocation4 + $0x10] sm:$0x3] %vm4229, 0.0
        %4231 = vst.msk [vmem:[#allocation4 + $0x18] sm:$0xff] %vm4226, 0.0
        %4232 = vst.msk [vmem:[#allocation4 + $0x20] sm:$0xff] %vm4226, 0.0
        %4233 = vst.msk [vmem:[#allocation4 + $0x28] sm:$0x3] %vm4229, 0.0
        %v4266 = vadd.s32 %v4115, 4294967295
        %v4267 = vlaneseq
        %v4268 = vshrl.u32 %v4267, 7
        %v4269 = vsub.s32 %v4266, %v4268
        %v4270 = vrot.slane %v4082, %v4269
        %v4271 = vadd.s32 %v4115, 4294967287
        %v4272 = vlaneseq
        %v4273 = vshrl.u32 %v4272, 7
        %v4274 = vsub.s32 %v4271, %v4273
        %v4275 = vrot.slane %v4083, %v4274
        %vm4276 = vcmask 138312
        %v4277 = vsel %vm4276, %v4275, %v4270
        %v4278 = vlaneseq
        %v4279 = vshrl.u32 %v4278, 7
        %v4280 = vsub.s32 %v4266, %v4279
        %v4281 = vrot.slane %v4084, %v4280
        %v4282 = vlaneseq
        %v4283 = vshrl.u32 %v4282, 7
        %v4284 = vsub.s32 %v4271, %v4283
        %v4285 = vrot.slane %v4085, %v4284
        %v4286 = vsel %vm4276, %v4285, %v4281
        %v4287 = vlaneseq
        %v4288 = vshrl.u32 %v4287, 7
        %v4289 = vsub.s32 %v4266, %v4288
        %v4290 = vrot.slane %v4086, %v4289
        %v4291 = vlaneseq
        %v4292 = vshrl.u32 %v4291, 7
        %v4293 = vsub.s32 %v4271, %v4292
        %v4294 = vrot.slane %v4087, %v4293
        %v4295 = vsel %vm4276, %v4294, %v4290
        %v4296 = vlaneseq
        %v4297 = vshrl.u32 %v4296, 7
        %v4298 = vsub.s32 %v4266, %v4297
        %v4299 = vrot.slane %v4088, %v4298
        %v4300 = vlaneseq
        %v4301 = vshrl.u32 %v4300, 7
        %v4302 = vsub.s32 %v4271, %v4301
        %v4303 = vrot.slane %v4089, %v4302
        %v4304 = vsel %vm4276, %v4303, %v4299
        %v4305 = vlaneseq
        %v4306 = vshrl.u32 %v4305, 7
        %v4307 = vsub.s32 %v4266, %v4306
        %v4308 = vrot.slane %v4090, %v4307
        %v4309 = vlaneseq
        %v4310 = vshrl.u32 %v4309, 7
        %v4311 = vsub.s32 %v4271, %v4310
        %v4312 = vrot.slane %v4091, %v4311
        %v4313 = vsel %vm4276, %v4312, %v4308
        %v4314 = vlaneseq
        %v4315 = vshrl.u32 %v4314, 7
        %v4316 = vsub.s32 %v4266, %v4315
        %v4317 = vrot.slane %v4092, %v4316
        %v4318 = vlaneseq
        %v4319 = vshrl.u32 %v4318, 7
        %v4320 = vsub.s32 %v4271, %v4319
        %v4321 = vrot.slane %v4093, %v4320
        %v4322 = vsel %vm4276, %v4321, %v4317
        %v4323 = vlaneseq
        %v4324 = vshrl.u32 %v4323, 7
        %v4325 = vsub.s32 %v4266, %v4324
        %v4326 = vrot.slane %v4094, %v4325
        %v4327 = vlaneseq
        %v4328 = vshrl.u32 %v4327, 7
        %v4329 = vsub.s32 %v4271, %v4328
        %v4330 = vrot.slane %v4095, %v4329
        %v4331 = vsel %vm4276, %v4330, %v4326
        %v4332 = vlaneseq
        %v4333 = vshrl.u32 %v4332, 7
        %v4334 = vsub.s32 %v4266, %v4333
        %v4335 = vrot.slane %v4096, %v4334
        %v4336 = vlaneseq
        %v4337 = vshrl.u32 %v4336, 7
        %v4338 = vsub.s32 %v4271, %v4337
        %v4339 = vrot.slane %v4097, %v4338
        %v4340 = vsel %vm4276, %v4339, %v4335
        %v4341 = vlaneseq
        %v4342 = vshrl.u32 %v4341, 7
        %v4343 = vsub.s32 %v4266, %v4342
        %v4344 = vrot.slane %v4098, %v4343
        %v4345 = vlaneseq
        %v4346 = vshrl.u32 %v4345, 7
        %v4347 = vsub.s32 %v4271, %v4346
        %v4348 = vrot.slane %v4099, %v4347
        %v4349 = vsel %vm4276, %v4348, %v4344
        %v4350 = vlaneseq
        %v4351 = vshrl.u32 %v4350, 7
        %v4352 = vsub.s32 %v4266, %v4351
        %v4353 = vrot.slane %v4100, %v4352
        %v4354 = vlaneseq
        %v4355 = vshrl.u32 %v4354, 7
        %v4356 = vsub.s32 %v4271, %v4355
        %v4357 = vrot.slane %v4101, %v4356
        %v4358 = vsel %vm4276, %v4357, %v4353
        %v4359 = vlaneseq
        %v4360 = vshrl.u32 %v4359, 7
        %v4361 = vsub.s32 %v4266, %v4360
        %v4362 = vrot.slane %v4102, %v4361
        %v4363 = vlaneseq
        %v4364 = vshrl.u32 %v4363, 7
        %v4365 = vsub.s32 %v4271, %v4364
        %v4366 = vrot.slane %v4103, %v4365
        %v4367 = vsel %vm4276, %v4366, %v4362
        %v4368 = vlaneseq
        %v4369 = vshrl.u32 %v4368, 7
        %v4370 = vsub.s32 %v4266, %v4369
        %v4371 = vrot.slane %v4104, %v4370
        %v4372 = vlaneseq
        %v4373 = vshrl.u32 %v4372, 7
        %v4374 = vsub.s32 %v4271, %v4373
        %v4375 = vrot.slane %v4105, %v4374
        %v4376 = vsel %vm4276, %v4375, %v4371
        %v4377 = vlaneseq
        %v4378 = vshrl.u32 %v4377, 7
        %v4379 = vsub.s32 %v4266, %v4378
        %v4380 = vrot.slane %v4106, %v4379
        %v4381 = vlaneseq
        %v4382 = vshrl.u32 %v4381, 7
        %v4383 = vsub.s32 %v4271, %v4382
        %v4384 = vrot.slane %v4107, %v4383
        %v4385 = vsel %vm4276, %v4384, %v4380
        %v4386 = vlaneseq
        %v4387 = vshrl.u32 %v4386, 7
        %v4388 = vsub.s32 %v4266, %v4387
        %v4389 = vrot.slane %v4108, %v4388
        %v4390 = vlaneseq
        %v4391 = vshrl.u32 %v4390, 7
        %v4392 = vsub.s32 %v4271, %v4391
        %v4393 = vrot.slane %v4109, %v4392
        %v4394 = vsel %vm4276, %v4393, %v4389
        %v4395 = vlaneseq
        %v4396 = vshrl.u32 %v4395, 7
        %v4397 = vsub.s32 %v4266, %v4396
        %v4398 = vrot.slane %v4110, %v4397
        %v4399 = vlaneseq
        %v4400 = vshrl.u32 %v4399, 7
        %v4401 = vsub.s32 %v4271, %v4400
        %v4402 = vrot.slane %v4111, %v4401
        %v4403 = vsel %vm4276, %v4402, %v4398
        %v4404 = vlaneseq
        %v4405 = vshrl.u32 %v4404, 7
        %v4406 = vsub.s32 %v4266, %v4405
        %v4407 = vrot.slane %v4112, %v4406
        %v4408 = vlaneseq
        %v4409 = vshrl.u32 %v4408, 7
        %v4410 = vsub.s32 %v4271, %v4409
        %v4411 = vrot.slane %v4113, %v4410
        %v4412 = vsel %vm4276, %v4411, %v4407
        %vm4413 = vcmask 1041409
        %v4414 = vsel %vm4413, %v4286, %v4277
        %vm4415 = vcmask 1042434
        %v4416 = vsel %vm4415, %v4295, %v4414
        %vm4417 = vcmask 1043459
        %v4418 = vsel %vm4417, %v4304, %v4416
        %vm4419 = vcmask 1044484
        %v4420 = vsel %vm4419, %v4313, %v4418
        %vm4421 = vcmask 1045509
        %v4422 = vsel %vm4421, %v4322, %v4420
        %vm4423 = vcmask 1046534
        %v4424 = vsel %vm4423, %v4331, %v4422
        %vm4425 = vcmask 1047559
        %v4426 = vsel %vm4425, %v4340, %v4424
        %v4427 = vsel %vm4413, %v4358, %v4349
        %v4428 = vsel %vm4415, %v4367, %v4427
        %v4429 = vsel %vm4417, %v4376, %v4428
        %v4430 = vsel %vm4419, %v4385, %v4429
        %v4431 = vsel %vm4421, %v4394, %v4430
        %v4432 = vsel %vm4423, %v4403, %v4431
        %v4433 = vsel %vm4425, %v4412, %v4432
        %vm4436 = vcmask 138248
        %4437 = vst.msk [vmem:[#allocation4 + $0x1] sm:$0xff] %vm4436, %v4426
        %4438 = vst.msk [vmem:[#allocation4 + $0x9] sm:$0xff] %vm4436, %v4433
        %v4471 = vlaneseq
        %v4472 = vshrl.u32 %v4471, 7
        %v4473 = vsub.s32 %v4266, %v4472
        %v4474 = vrot.slane %v4150, %v4473
        %v4475 = vlaneseq
        %v4476 = vshrl.u32 %v4475, 7
        %v4477 = vsub.s32 %v4271, %v4476
        %v4478 = vrot.slane %v4152, %v4477
        %v4479 = vsel %vm4276, %v4478, %v4474
        %v4480 = vlaneseq
        %v4481 = vshrl.u32 %v4480, 7
        %v4482 = vsub.s32 %v4266, %v4481
        %v4483 = vrot.slane %v4154, %v4482
        %v4484 = vlaneseq
        %v4485 = vshrl.u32 %v4484, 7
        %v4486 = vsub.s32 %v4271, %v4485
        %v4487 = vrot.slane %v4156, %v4486
        %v4488 = vsel %vm4276, %v4487, %v4483
        %v4489 = vlaneseq
        %v4490 = vshrl.u32 %v4489, 7
        %v4491 = vsub.s32 %v4266, %v4490
        %v4492 = vrot.slane %v4158, %v4491
        %v4493 = vlaneseq
        %v4494 = vshrl.u32 %v4493, 7
        %v4495 = vsub.s32 %v4271, %v4494
        %v4496 = vrot.slane %v4160, %v4495
        %v4497 = vsel %vm4276, %v4496, %v4492
        %v4498 = vlaneseq
        %v4499 = vshrl.u32 %v4498, 7
        %v4500 = vsub.s32 %v4266, %v4499
        %v4501 = vrot.slane %v4162, %v4500
        %v4502 = vlaneseq
        %v4503 = vshrl.u32 %v4502, 7
        %v4504 = vsub.s32 %v4271, %v4503
        %v4505 = vrot.slane %v4164, %v4504
        %v4506 = vsel %vm4276, %v4505, %v4501
        %v4507 = vlaneseq
        %v4508 = vshrl.u32 %v4507, 7
        %v4509 = vsub.s32 %v4266, %v4508
        %v4510 = vrot.slane %v4166, %v4509
        %v4511 = vlaneseq
        %v4512 = vshrl.u32 %v4511, 7
        %v4513 = vsub.s32 %v4271, %v4512
        %v4514 = vrot.slane %v4168, %v4513
        %v4515 = vsel %vm4276, %v4514, %v4510
        %v4516 = vlaneseq
        %v4517 = vshrl.u32 %v4516, 7
        %v4518 = vsub.s32 %v4266, %v4517
        %v4519 = vrot.slane %v4170, %v4518
        %v4520 = vlaneseq
        %v4521 = vshrl.u32 %v4520, 7
        %v4522 = vsub.s32 %v4271, %v4521
        %v4523 = vrot.slane %v4172, %v4522
        %v4524 = vsel %vm4276, %v4523, %v4519
        %v4525 = vlaneseq
        %v4526 = vshrl.u32 %v4525, 7
        %v4527 = vsub.s32 %v4266, %v4526
        %v4528 = vrot.slane %v4174, %v4527
        %v4529 = vlaneseq
        %v4530 = vshrl.u32 %v4529, 7
        %v4531 = vsub.s32 %v4271, %v4530
        %v4532 = vrot.slane %v4176, %v4531
        %v4533 = vsel %vm4276, %v4532, %v4528
        %v4534 = vlaneseq
        %v4535 = vshrl.u32 %v4534, 7
        %v4536 = vsub.s32 %v4266, %v4535
        %v4537 = vrot.slane %v4178, %v4536
        %v4538 = vlaneseq
        %v4539 = vshrl.u32 %v4538, 7
        %v4540 = vsub.s32 %v4271, %v4539
        %v4541 = vrot.slane %v4180, %v4540
        %v4542 = vsel %vm4276, %v4541, %v4537
        %v4543 = vlaneseq
        %v4544 = vshrl.u32 %v4543, 7
        %v4545 = vsub.s32 %v4266, %v4544
        %v4546 = vrot.slane %v4182, %v4545
        %v4547 = vlaneseq
        %v4548 = vshrl.u32 %v4547, 7
        %v4549 = vsub.s32 %v4271, %v4548
        %v4550 = vrot.slane %v4184, %v4549
        %v4551 = vsel %vm4276, %v4550, %v4546
        %v4552 = vlaneseq
        %v4553 = vshrl.u32 %v4552, 7
        %v4554 = vsub.s32 %v4266, %v4553
        %v4555 = vrot.slane %v4186, %v4554
        %v4556 = vlaneseq
        %v4557 = vshrl.u32 %v4556, 7
        %v4558 = vsub.s32 %v4271, %v4557
        %v4559 = vrot.slane %v4188, %v4558
        %v4560 = vsel %vm4276, %v4559, %v4555
        %v4561 = vlaneseq
        %v4562 = vshrl.u32 %v4561, 7
        %v4563 = vsub.s32 %v4266, %v4562
        %v4564 = vrot.slane %v4190, %v4563
        %v4565 = vlaneseq
        %v4566 = vshrl.u32 %v4565, 7
        %v4567 = vsub.s32 %v4271, %v4566
        %v4568 = vrot.slane %v4192, %v4567
        %v4569 = vsel %vm4276, %v4568, %v4564
        %v4570 = vlaneseq
        %v4571 = vshrl.u32 %v4570, 7
        %v4572 = vsub.s32 %v4266, %v4571
        %v4573 = vrot.slane %v4194, %v4572
        %v4574 = vlaneseq
        %v4575 = vshrl.u32 %v4574, 7
        %v4576 = vsub.s32 %v4271, %v4575
        %v4577 = vrot.slane %v4196, %v4576
        %v4578 = vsel %vm4276, %v4577, %v4573
        %v4579 = vlaneseq
        %v4580 = vshrl.u32 %v4579, 7
        %v4581 = vsub.s32 %v4266, %v4580
        %v4582 = vrot.slane %v4198, %v4581
        %v4583 = vlaneseq
        %v4584 = vshrl.u32 %v4583, 7
        %v4585 = vsub.s32 %v4271, %v4584
        %v4586 = vrot.slane %v4200, %v4585
        %v4587 = vsel %vm4276, %v4586, %v4582
        %v4588 = vlaneseq
        %v4589 = vshrl.u32 %v4588, 7
        %v4590 = vsub.s32 %v4266, %v4589
        %v4591 = vrot.slane %v4202, %v4590
        %v4592 = vlaneseq
        %v4593 = vshrl.u32 %v4592, 7
        %v4594 = vsub.s32 %v4271, %v4593
        %v4595 = vrot.slane %v4204, %v4594
        %v4596 = vsel %vm4276, %v4595, %v4591
        %v4597 = vlaneseq
        %v4598 = vshrl.u32 %v4597, 7
        %v4599 = vsub.s32 %v4266, %v4598
        %v4600 = vrot.slane %v4206, %v4599
        %v4601 = vlaneseq
        %v4602 = vshrl.u32 %v4601, 7
        %v4603 = vsub.s32 %v4271, %v4602
        %v4604 = vrot.slane %v4208, %v4603
        %v4605 = vsel %vm4276, %v4604, %v4600
        %v4606 = vlaneseq
        %v4607 = vshrl.u32 %v4606, 7
        %v4608 = vsub.s32 %v4266, %v4607
        %v4609 = vrot.slane %v4210, %v4608
        %v4610 = vlaneseq
        %v4611 = vshrl.u32 %v4610, 7
        %v4612 = vsub.s32 %v4271, %v4611
        %v4613 = vrot.slane %v4212, %v4612
        %v4614 = vsel %vm4276, %v4613, %v4609
        %v4615 = vsel %vm4413, %v4488, %v4479
        %v4616 = vsel %vm4415, %v4497, %v4615
        %v4617 = vsel %vm4417, %v4506, %v4616
        %v4618 = vsel %vm4419, %v4515, %v4617
        %v4619 = vsel %vm4421, %v4524, %v4618
        %v4620 = vsel %vm4423, %v4533, %v4619
        %v4621 = vsel %vm4425, %v4542, %v4620
        %v4622 = vsel %vm4413, %v4560, %v4551
        %v4623 = vsel %vm4415, %v4569, %v4622
        %v4624 = vsel %vm4417, %v4578, %v4623
        %v4625 = vsel %vm4419, %v4587, %v4624
        %v4626 = vsel %vm4421, %v4596, %v4625
        %v4627 = vsel %vm4423, %v4605, %v4626
        %v4628 = vsel %vm4425, %v4614, %v4627
        %s4631 = scalar_lea.vmem [#allocation4], 24
        %4632 = vst.msk [vmem:[%s4631 + $0x1] sm:$0xff] %vm4436, %v4621
        %4633 = vst.msk [vmem:[%s4631 + $0x9] sm:$0xff] %vm4436, %v4628
        %s4634 = sld [smem:[#allocation15]]
        %v4635 = vld [vmem:[#allocation4] sm:$0xff]
        %v4636 = vld [vmem:[#allocation4 + $0x8] sm:$0xff]
        %v4637 = vstv %s4634
        %v4638 = vmul.f32 %v4635, %v4637
        %v4639 = vmul.f32 %v4636, %v4637
        %s4640 = sld [smem:[#allocation15 + $0x1]]
        %v4641 = vstv %s4640
        %v4642 = vmul.f32 %v4635, %v4641
        %v4643 = vmul.f32 %v4636, %v4641
        %4646 = vrot.lane.b32.xlu0 %v4642, 127
        %v4647 = vpop.permute.xlu0 %4646
        %4648 = vrot.lane.b32.xlu0 %v4643, 127
        %v4649 = vpop.permute.xlu0 %4648
        %v4652 = vadd.f32 %v4638, %v4647
        %v4653 = vadd.f32 %v4639, %v4649
        %s4654 = sld [smem:[#allocation15 + $0x2]]
        %v4655 = vstv %s4654
        %v4656 = vmul.f32 %v4635, %v4655
        %v4657 = vmul.f32 %v4636, %v4655
        %4660 = vrot.lane.b32.xlu0 %v4656, 126
        %v4661 = vpop.permute.xlu0 %4660
        %4662 = vrot.lane.b32.xlu0 %v4657, 126
        %v4663 = vpop.permute.xlu0 %4662
        %v4666 = vadd.f32 %v4652, %v4661
        %v4667 = vadd.f32 %v4653, %v4663
        %s4668 = sld [smem:[#allocation15 + $0x3]]
        %v4669 = vld [vmem:[#allocation4 + $0x1] sm:$0xff]
        %v4670 = vld [vmem:[#allocation4 + $0x9] sm:$0xff]
        %v4671 = vstv %s4668
        %v4672 = vmul.f32 %v4669, %v4671
        %v4673 = vmul.f32 %v4670, %v4671
        %v4674 = vadd.f32 %v4666, %v4672
        %v4675 = vadd.f32 %v4667, %v4673
        %s4676 = sld [smem:[#allocation15 + $0x4]]
        %v4677 = vstv %s4676
        %v4678 = vmul.f32 %v4669, %v4677
        %v4679 = vmul.f32 %v4670, %v4677
        %4682 = vrot.lane.b32.xlu0 %v4678, 127
        %v4683 = vpop.permute.xlu0 %4682
        %4684 = vrot.lane.b32.xlu0 %v4679, 127
        %v4685 = vpop.permute.xlu0 %4684
        %v4688 = vadd.f32 %v4674, %v4683
        %v4689 = vadd.f32 %v4675, %v4685
        %s4690 = sld [smem:[#allocation15 + $0x5]]
        %v4691 = vstv %s4690
        %v4692 = vmul.f32 %v4669, %v4691
        %v4693 = vmul.f32 %v4670, %v4691
        %4696 = vrot.lane.b32.xlu0 %v4692, 126
        %v4697 = vpop.permute.xlu0 %4696
        %4698 = vrot.lane.b32.xlu0 %v4693, 126
        %v4699 = vpop.permute.xlu0 %4698
        %v4702 = vadd.f32 %v4688, %v4697
        %v4703 = vadd.f32 %v4689, %v4699
        %s4704 = sld [smem:[#allocation15 + $0x6]]
        %v4705 = vld [vmem:[#allocation4 + $0x2] sm:$0xff]
        %v4706 = vld [vmem:[#allocation4 + $0xa] sm:$0xff]
        %v4707 = vstv %s4704
        %v4708 = vmul.f32 %v4705, %v4707
        %v4709 = vmul.f32 %v4706, %v4707
        %v4710 = vadd.f32 %v4702, %v4708
        %v4711 = vadd.f32 %v4703, %v4709
        %s4712 = sld [smem:[#allocation15 + $0x7]]
        %v4713 = vstv %s4712
        %v4714 = vmul.f32 %v4705, %v4713
        %v4715 = vmul.f32 %v4706, %v4713
        %4718 = vrot.lane.b32.xlu0 %v4714, 127
        %v4719 = vpop.permute.xlu0 %4718
        %4720 = vrot.lane.b32.xlu0 %v4715, 127
        %v4721 = vpop.permute.xlu0 %4720
        %v4724 = vadd.f32 %v4710, %v4719
        %v4725 = vadd.f32 %v4711, %v4721
        %s4726 = sld [smem:[#allocation15 + $0x8]]
        %v4727 = vstv %s4726
        %v4728 = vmul.f32 %v4705, %v4727
        %v4729 = vmul.f32 %v4706, %v4727
        %4732 = vrot.lane.b32.xlu0 %v4728, 126
        %v4733 = vpop.permute.xlu0 %4732
        %4734 = vrot.lane.b32.xlu0 %v4729, 126
        %v4735 = vpop.permute.xlu0 %4734
        %v4738 = vadd.f32 %v4724, %v4733
        %v4739 = vadd.f32 %v4725, %v4735
        %s4740 = sld [smem:[#allocation15 + $0x9]]
        %v4741 = vld [vmem:[%s4631] sm:$0xff]
        %v4742 = vld [vmem:[%s4631 + $0x8] sm:$0xff]
        %v4743 = vstv %s4740
        %v4744 = vmul.f32 %v4741, %v4743
        %v4745 = vmul.f32 %v4742, %v4743
        %v4746 = vadd.f32 %v4738, %v4744
        %v4747 = vadd.f32 %v4739, %v4745
        %s4748 = sld [smem:[#allocation15 + $0xa]]
        %v4749 = vstv %s4748
        %v4750 = vmul.f32 %v4741, %v4749
        %v4751 = vmul.f32 %v4742, %v4749
        %4754 = vrot.lane.b32.xlu0 %v4750, 127
        %v4755 = vpop.permute.xlu0 %4754
        %4756 = vrot.lane.b32.xlu0 %v4751, 127
        %v4757 = vpop.permute.xlu0 %4756
        %v4760 = vadd.f32 %v4746, %v4755
        %v4761 = vadd.f32 %v4747, %v4757
        %s4762 = sld [smem:[#allocation15 + $0xb]]
        %v4763 = vstv %s4762
        %v4764 = vmul.f32 %v4741, %v4763
        %v4765 = vmul.f32 %v4742, %v4763
        %4768 = vrot.lane.b32.xlu0 %v4764, 126
        %v4769 = vpop.permute.xlu0 %4768
        %4770 = vrot.lane.b32.xlu0 %v4765, 126
        %v4771 = vpop.permute.xlu0 %4770
        %v4774 = vadd.f32 %v4760, %v4769
        %v4775 = vadd.f32 %v4761, %v4771
        %s4776 = sld [smem:[#allocation15 + $0xc]]
        %v4777 = vld [vmem:[%s4631 + $0x1] sm:$0xff]
        %v4778 = vld [vmem:[%s4631 + $0x9] sm:$0xff]
        %v4779 = vstv %s4776
        %v4780 = vmul.f32 %v4777, %v4779
        %v4781 = vmul.f32 %v4778, %v4779
        %v4782 = vadd.f32 %v4774, %v4780
        %v4783 = vadd.f32 %v4775, %v4781
        %s4784 = sld [smem:[#allocation15 + $0xd]]
        %v4785 = vstv %s4784
        %v4786 = vmul.f32 %v4777, %v4785
        %v4787 = vmul.f32 %v4778, %v4785
        %4790 = vrot.lane.b32.xlu0 %v4786, 127
        %v4791 = vpop.permute.xlu0 %4790
        %4792 = vrot.lane.b32.xlu0 %v4787, 127
        %v4793 = vpop.permute.xlu0 %4792
        %v4796 = vadd.f32 %v4782, %v4791
        %v4797 = vadd.f32 %v4783, %v4793
        %s4798 = sld [smem:[#allocation15 + $0xe]]
        %v4799 = vstv %s4798
        %v4800 = vmul.f32 %v4777, %v4799
        %v4801 = vmul.f32 %v4778, %v4799
        %4804 = vrot.lane.b32.xlu0 %v4800, 126
        %v4805 = vpop.permute.xlu0 %4804
        %4806 = vrot.lane.b32.xlu0 %v4801, 126
        %v4807 = vpop.permute.xlu0 %4806
        %v4810 = vadd.f32 %v4796, %v4805
        %v4811 = vadd.f32 %v4797, %v4807
        %s4812 = sld [smem:[#allocation15 + $0xf]]
        %v4813 = vld [vmem:[%s4631 + $0x2] sm:$0xff]
        %v4814 = vld [vmem:[%s4631 + $0xa] sm:$0xff]
        %v4815 = vstv %s4812
        %v4816 = vmul.f32 %v4813, %v4815
        %v4817 = vmul.f32 %v4814, %v4815
        %v4818 = vadd.f32 %v4810, %v4816
        %v4819 = vadd.f32 %v4811, %v4817
        %s4820 = sld [smem:[#allocation15 + $0x10]]
        %v4821 = vstv %s4820
        %v4822 = vmul.f32 %v4813, %v4821
        %v4823 = vmul.f32 %v4814, %v4821
        %4826 = vrot.lane.b32.xlu0 %v4822, 127
        %v4827 = vpop.permute.xlu0 %4826
        %4828 = vrot.lane.b32.xlu0 %v4823, 127
        %v4829 = vpop.permute.xlu0 %4828
        %v4832 = vadd.f32 %v4818, %v4827
        %v4833 = vadd.f32 %v4819, %v4829
        %s4834 = sld [smem:[#allocation15 + $0x11]]
        %v4835 = vstv %s4834
        %v4836 = vmul.f32 %v4813, %v4835
        %v4837 = vmul.f32 %v4814, %v4835
        %4840 = vrot.lane.b32.xlu0 %v4836, 126
        %v4841 = vpop.permute.xlu0 %4840
        %4842 = vrot.lane.b32.xlu0 %v4837, 126
        %v4843 = vpop.permute.xlu0 %4842
        %v4846 = vadd.f32 %v4832, %v4841
        %v4847 = vadd.f32 %v4833, %v4843
        %v4848 = vxor.u32 %v4846, 2147483648
        %v4849 = vxor.u32 %v4847, 2147483648
        %v4850 = vmul.f32 %v4848, 1.442695
        %v4851 = vpow.pop %v4850
        %v4852 = vmul.f32 %v4849, 1.442695
        %v4853 = vpow.pop %v4852
        %v4854 = vadd.f32 %v4851, 1.0
        %v4855 = vadd.f32 %v4853, 1.0
        %v4856 = vrcp.pop %v4854
        %v4857 = vmul.f32 1.0, %v4856
        %v4858 = vrcp.pop %v4855
        %v4859 = vmul.f32 1.0, %v4858
        %v4860 = vlaneseq
        %v4861 = vshrl.u32 %v4860, 7
        %v4862 = vsub.s32 0, %v4861
        %v4863 = vrot.slane %v4857, %v4862
        %4865 = vbcast.lane.b32.xlu0 %v4863, 256
        %v4866 = vpop.permute.xlu0 %4865
        %s4868 = sor.u32 256, 8
        %4869 = vbcast.lane.b32.xlu0 %v4863, %s4868
        %v4870 = vpop.permute.xlu0 %4869
        %v4871 = vlaneseq
        %v4872 = vshrl.u32 %v4871, 7
        %v4873 = vsub.s32 1, %v4872
        %v4874 = vrot.slane %v4857, %v4873
        %4876 = vbcast.lane.b32.xlu0 %v4874, 256
        %v4877 = vpop.permute.xlu0 %4876
        %s4879 = sor.u32 256, 8
        %4880 = vbcast.lane.b32.xlu0 %v4874, %s4879
        %v4881 = vpop.permute.xlu0 %4880
        %v4882 = vlaneseq
        %v4883 = vshrl.u32 %v4882, 7
        %v4884 = vsub.s32 2, %v4883
        %v4885 = vrot.slane %v4857, %v4884
        %4887 = vbcast.lane.b32.xlu0 %v4885, 256
        %v4888 = vpop.permute.xlu0 %4887
        %s4890 = sor.u32 256, 8
        %4891 = vbcast.lane.b32.xlu0 %v4885, %s4890
        %v4892 = vpop.permute.xlu0 %4891
        %v4893 = vlaneseq
        %v4894 = vshrl.u32 %v4893, 7
        %v4895 = vsub.s32 3, %v4894
        %v4896 = vrot.slane %v4857, %v4895
        %4898 = vbcast.lane.b32.xlu0 %v4896, 256
        %v4899 = vpop.permute.xlu0 %4898
        %s4901 = sor.u32 256, 8
        %4902 = vbcast.lane.b32.xlu0 %v4896, %s4901
        %v4903 = vpop.permute.xlu0 %4902
        %v4904 = vlaneseq
        %v4905 = vshrl.u32 %v4904, 7
        %v4906 = vsub.s32 4, %v4905
        %v4907 = vrot.slane %v4857, %v4906
        %4909 = vbcast.lane.b32.xlu0 %v4907, 256
        %v4910 = vpop.permute.xlu0 %4909
        %s4912 = sor.u32 256, 8
        %4913 = vbcast.lane.b32.xlu0 %v4907, %s4912
        %v4914 = vpop.permute.xlu0 %4913
        %v4915 = vlaneseq
        %v4916 = vshrl.u32 %v4915, 7
        %v4917 = vsub.s32 5, %v4916
        %v4918 = vrot.slane %v4857, %v4917
        %4920 = vbcast.lane.b32.xlu0 %v4918, 256
        %v4921 = vpop.permute.xlu0 %4920
        %s4923 = sor.u32 256, 8
        %4924 = vbcast.lane.b32.xlu0 %v4918, %s4923
        %v4925 = vpop.permute.xlu0 %4924
        %v4926 = vlaneseq
        %v4927 = vshrl.u32 %v4926, 7
        %v4928 = vsub.s32 6, %v4927
        %v4929 = vrot.slane %v4857, %v4928
        %4931 = vbcast.lane.b32.xlu0 %v4929, 256
        %v4932 = vpop.permute.xlu0 %4931
        %s4934 = sor.u32 256, 8
        %4935 = vbcast.lane.b32.xlu0 %v4929, %s4934
        %v4936 = vpop.permute.xlu0 %4935
        %v4937 = vlaneseq
        %v4938 = vshrl.u32 %v4937, 7
        %v4939 = vsub.s32 7, %v4938
        %v4940 = vrot.slane %v4857, %v4939
        %4942 = vbcast.lane.b32.xlu0 %v4940, 256
        %v4943 = vpop.permute.xlu0 %4942
        %s4945 = sor.u32 256, 8
        %4946 = vbcast.lane.b32.xlu0 %v4940, %s4945
        %v4947 = vpop.permute.xlu0 %4946
        %v4948 = vlaneseq
        %v4949 = vshrl.u32 %v4948, 7
        %v4950 = vsub.s32 0, %v4949
        %v4951 = vrot.slane %v4859, %v4950
        %4953 = vbcast.lane.b32.xlu0 %v4951, 256
        %v4954 = vpop.permute.xlu0 %4953
        %s4956 = sor.u32 256, 8
        %4957 = vbcast.lane.b32.xlu0 %v4951, %s4956
        %v4958 = vpop.permute.xlu0 %4957
        %v4959 = vlaneseq
        %v4960 = vshrl.u32 %v4959, 7
        %v4961 = vsub.s32 1, %v4960
        %v4962 = vrot.slane %v4859, %v4961
        %4964 = vbcast.lane.b32.xlu0 %v4962, 256
        %v4965 = vpop.permute.xlu0 %4964
        %s4967 = sor.u32 256, 8
        %4968 = vbcast.lane.b32.xlu0 %v4962, %s4967
        %v4969 = vpop.permute.xlu0 %4968
        %v4970 = vlaneseq
        %v4971 = vshrl.u32 %v4970, 7
        %v4972 = vsub.s32 2, %v4971
        %v4973 = vrot.slane %v4859, %v4972
        %4975 = vbcast.lane.b32.xlu0 %v4973, 256
        %v4976 = vpop.permute.xlu0 %4975
        %s4978 = sor.u32 256, 8
        %4979 = vbcast.lane.b32.xlu0 %v4973, %s4978
        %v4980 = vpop.permute.xlu0 %4979
        %v4981 = vlaneseq
        %v4982 = vshrl.u32 %v4981, 7
        %v4983 = vsub.s32 3, %v4982
        %v4984 = vrot.slane %v4859, %v4983
        %4986 = vbcast.lane.b32.xlu0 %v4984, 256
        %v4987 = vpop.permute.xlu0 %4986
        %s4989 = sor.u32 256, 8
        %4990 = vbcast.lane.b32.xlu0 %v4984, %s4989
        %v4991 = vpop.permute.xlu0 %4990
        %v4992 = vlaneseq
        %v4993 = vshrl.u32 %v4992, 7
        %v4994 = vsub.s32 4, %v4993
        %v4995 = vrot.slane %v4859, %v4994
        %4997 = vbcast.lane.b32.xlu0 %v4995, 256
        %v4998 = vpop.permute.xlu0 %4997
        %s5000 = sor.u32 256, 8
        %5001 = vbcast.lane.b32.xlu0 %v4995, %s5000
        %v5002 = vpop.permute.xlu0 %5001
        %v5003 = vlaneseq
        %v5004 = vshrl.u32 %v5003, 7
        %v5005 = vsub.s32 5, %v5004
        %v5006 = vrot.slane %v4859, %v5005
        %5008 = vbcast.lane.b32.xlu0 %v5006, 256
        %v5009 = vpop.permute.xlu0 %5008
        %s5011 = sor.u32 256, 8
        %5012 = vbcast.lane.b32.xlu0 %v5006, %s5011
        %v5013 = vpop.permute.xlu0 %5012
        %v5014 = vlaneseq
        %v5015 = vshrl.u32 %v5014, 7
        %v5016 = vsub.s32 6, %v5015
        %v5017 = vrot.slane %v4859, %v5016
        %5019 = vbcast.lane.b32.xlu0 %v5017, 256
        %v5020 = vpop.permute.xlu0 %5019
        %s5022 = sor.u32 256, 8
        %5023 = vbcast.lane.b32.xlu0 %v5017, %s5022
        %v5024 = vpop.permute.xlu0 %5023
        %v5025 = vlaneseq
        %v5026 = vshrl.u32 %v5025, 7
        %v5027 = vsub.s32 7, %v5026
        %v5028 = vrot.slane %v4859, %v5027
        %5030 = vbcast.lane.b32.xlu0 %v5028, 256
        %v5031 = vpop.permute.xlu0 %5030
        %s5033 = sor.u32 256, 8
        %5034 = vbcast.lane.b32.xlu0 %v5028, %s5033
        %v5035 = vpop.permute.xlu0 %5034
        %v5036 = vmul.f32 %v3986, %v4866
        %v5037 = vmul.f32 %v3987, %v4870
        %v5038 = vmul.f32 %v3988, %v4877
        %v5039 = vmul.f32 %v3989, %v4881
        %v5040 = vmul.f32 %v3990, %v4888
        %v5041 = vmul.f32 %v3991, %v4892
        %v5042 = vmul.f32 %v3992, %v4899
        %v5043 = vmul.f32 %v3993, %v4903
        %v5044 = vmul.f32 %v3994, %v4910
        %v5045 = vmul.f32 %v3995, %v4914
        %v5046 = vmul.f32 %v3996, %v4921
        %v5047 = vmul.f32 %v3997, %v4925
        %v5048 = vmul.f32 %v3998, %v4932
        %v5049 = vmul.f32 %v3999, %v4936
        %v5050 = vmul.f32 %v4000, %v4943
        %v5051 = vmul.f32 %v4001, %v4947
        %v5052 = vmul.f32 %v4002, %v4954
        %v5053 = vmul.f32 %v4003, %v4958
        %v5054 = vmul.f32 %v4004, %v4965
        %v5055 = vmul.f32 %v4005, %v4969
        %v5056 = vmul.f32 %v4006, %v4976
        %v5057 = vmul.f32 %v4007, %v4980
        %v5058 = vmul.f32 %v4008, %v4987
        %v5059 = vmul.f32 %v4009, %v4991
        %v5060 = vmul.f32 %v4010, %v4998
        %v5061 = vmul.f32 %v4011, %v5002
        %v5062 = vmul.f32 %v4012, %v5009
        %v5063 = vmul.f32 %v4013, %v5013
        %v5064 = vmul.f32 %v4014, %v5020
        %v5065 = vmul.f32 %v4015, %v5024
        %v5066 = vmul.f32 %v4016, %v5031
        %v5067 = vmul.f32 %v4017, %v5035
        %v5068 = vld [vmem:[%s392] sm:$0xf]
        %v5069 = vld [vmem:[%s392 + $0x4] sm:$0xf]
        %v5070 = vld [vmem:[%s392 + $0x8] sm:$0xf]
        %v5071 = vld [vmem:[%s392 + $0xc] sm:$0xf]
        %v5072 = vld [vmem:[%s392 + $0x10] sm:$0xf]
        %v5073 = vld [vmem:[%s392 + $0x14] sm:$0xf]
        %v5074 = vld [vmem:[%s392 + $0x18] sm:$0xf]
        %v5075 = vld [vmem:[%s392 + $0x1c] sm:$0xf]
        %v5076 = vld [vmem:[%s392 + $0x20] sm:$0xf]
        %v5077 = vld [vmem:[%s392 + $0x24] sm:$0xf]
        %v5078 = vld [vmem:[%s392 + $0x28] sm:$0xf]
        %v5079 = vld [vmem:[%s392 + $0x2c] sm:$0xf]
        %v5080 = vld [vmem:[%s392 + $0x30] sm:$0xf]
        %v5081 = vld [vmem:[%s392 + $0x34] sm:$0xf]
        %v5082 = vld [vmem:[%s392 + $0x38] sm:$0xf]
        %v5083 = vld [vmem:[%s392 + $0x3c] sm:$0xf]
        %v5084 = vld [vmem:[%s392 + $0x40] sm:$0xf]
        %v5085 = vld [vmem:[%s392 + $0x44] sm:$0xf]
        %v5086 = vld [vmem:[%s392 + $0x48] sm:$0xf]
        %v5087 = vld [vmem:[%s392 + $0x4c] sm:$0xf]
        %v5088 = vld [vmem:[%s392 + $0x50] sm:$0xf]
        %v5089 = vld [vmem:[%s392 + $0x54] sm:$0xf]
        %v5090 = vld [vmem:[%s392 + $0x58] sm:$0xf]
        %v5091 = vld [vmem:[%s392 + $0x5c] sm:$0xf]
        %v5092 = vld [vmem:[%s392 + $0x60] sm:$0xf]
        %v5093 = vld [vmem:[%s392 + $0x64] sm:$0xf]
        %v5094 = vld [vmem:[%s392 + $0x68] sm:$0xf]
        %v5095 = vld [vmem:[%s392 + $0x6c] sm:$0xf]
        %v5096 = vld [vmem:[%s392 + $0x70] sm:$0xf]
        %v5097 = vld [vmem:[%s392 + $0x74] sm:$0xf]
        %v5098 = vld [vmem:[%s392 + $0x78] sm:$0xf]
        %v5099 = vld [vmem:[%s392 + $0x7c] sm:$0xf]
        %v5100 = vunpack.c.l.bf16 %v5068
        %v5101 = vunpack.c.l.bf16 %v5069
        %v5102 = vunpack.c.l.bf16 %v5070
        %v5103 = vunpack.c.l.bf16 %v5071
        %v5104 = vunpack.c.l.bf16 %v5072
        %v5105 = vunpack.c.l.bf16 %v5073
        %v5106 = vunpack.c.l.bf16 %v5074
        %v5107 = vunpack.c.l.bf16 %v5075
        %v5108 = vunpack.c.l.bf16 %v5076
        %v5109 = vunpack.c.l.bf16 %v5077
        %v5110 = vunpack.c.l.bf16 %v5078
        %v5111 = vunpack.c.l.bf16 %v5079
        %v5112 = vunpack.c.l.bf16 %v5080
        %v5113 = vunpack.c.l.bf16 %v5081
        %v5114 = vunpack.c.l.bf16 %v5082
        %v5115 = vunpack.c.l.bf16 %v5083
        %v5116 = vunpack.c.l.bf16 %v5084
        %v5117 = vunpack.c.l.bf16 %v5085
        %v5118 = vunpack.c.l.bf16 %v5086
        %v5119 = vunpack.c.l.bf16 %v5087
        %v5120 = vunpack.c.l.bf16 %v5088
        %v5121 = vunpack.c.l.bf16 %v5089
        %v5122 = vunpack.c.l.bf16 %v5090
        %v5123 = vunpack.c.l.bf16 %v5091
        %v5124 = vunpack.c.l.bf16 %v5092
        %v5125 = vunpack.c.l.bf16 %v5093
        %v5126 = vunpack.c.l.bf16 %v5094
        %v5127 = vunpack.c.l.bf16 %v5095
        %v5128 = vunpack.c.l.bf16 %v5096
        %v5129 = vunpack.c.l.bf16 %v5097
        %v5130 = vunpack.c.l.bf16 %v5098
        %v5131 = vunpack.c.l.bf16 %v5099
        %v5132 = vadd.f32 %v5036, %v5100
        %v5133 = vadd.f32 %v5037, %v5101
        %v5134 = vadd.f32 %v5038, %v5102
        %v5135 = vadd.f32 %v5039, %v5103
        %v5136 = vadd.f32 %v5040, %v5104
        %v5137 = vadd.f32 %v5041, %v5105
        %v5138 = vadd.f32 %v5042, %v5106
        %v5139 = vadd.f32 %v5043, %v5107
        %v5140 = vadd.f32 %v5044, %v5108
        %v5141 = vadd.f32 %v5045, %v5109
        %v5142 = vadd.f32 %v5046, %v5110
        %v5143 = vadd.f32 %v5047, %v5111
        %v5144 = vadd.f32 %v5048, %v5112
        %v5145 = vadd.f32 %v5049, %v5113
        %v5146 = vadd.f32 %v5050, %v5114
        %v5147 = vadd.f32 %v5051, %v5115
        %v5148 = vadd.f32 %v5052, %v5116
        %v5149 = vadd.f32 %v5053, %v5117
        %v5150 = vadd.f32 %v5054, %v5118
        %v5151 = vadd.f32 %v5055, %v5119
        %v5152 = vadd.f32 %v5056, %v5120
        %v5153 = vadd.f32 %v5057, %v5121
        %v5154 = vadd.f32 %v5058, %v5122
        %v5155 = vadd.f32 %v5059, %v5123
        %v5156 = vadd.f32 %v5060, %v5124
        %v5157 = vadd.f32 %v5061, %v5125
        %v5158 = vadd.f32 %v5062, %v5126
        %v5159 = vadd.f32 %v5063, %v5127
        %v5160 = vadd.f32 %v5064, %v5128
        %v5161 = vadd.f32 %v5065, %v5129
        %v5162 = vadd.f32 %v5066, %v5130
        %v5163 = vadd.f32 %v5067, %v5131
        %5164 = vst [vmem:[%s449] sm:$0xff] %v5132
        %5165 = vst [vmem:[%s449 + $0x8] sm:$0xff] %v5133
        %5166 = vst [vmem:[%s449 + $0x10] sm:$0xff] %v5134
        %5167 = vst [vmem:[%s449 + $0x18] sm:$0xff] %v5135
        %5168 = vst [vmem:[%s449 + $0x20] sm:$0xff] %v5136
        %5169 = vst [vmem:[%s449 + $0x28] sm:$0xff] %v5137
        %5170 = vst [vmem:[%s449 + $0x30] sm:$0xff] %v5138
        %5171 = vst [vmem:[%s449 + $0x38] sm:$0xff] %v5139
        %5172 = vst [vmem:[%s449 + $0x40] sm:$0xff] %v5140
        %5173 = vst [vmem:[%s449 + $0x48] sm:$0xff] %v5141
        %5174 = vst [vmem:[%s449 + $0x50] sm:$0xff] %v5142
        %5175 = vst [vmem:[%s449 + $0x58] sm:$0xff] %v5143
        %5176 = vst [vmem:[%s449 + $0x60] sm:$0xff] %v5144
        %5177 = vst [vmem:[%s449 + $0x68] sm:$0xff] %v5145
        %5178 = vst [vmem:[%s449 + $0x70] sm:$0xff] %v5146
        %5179 = vst [vmem:[%s449 + $0x78] sm:$0xff] %v5147
        %5180 = vst [vmem:[%s449 + $0x80] sm:$0xff] %v5148
        %5181 = vst [vmem:[%s449 + $0x88] sm:$0xff] %v5149
        %5182 = vst [vmem:[%s449 + $0x90] sm:$0xff] %v5150
        %5183 = vst [vmem:[%s449 + $0x98] sm:$0xff] %v5151
        %5184 = vst [vmem:[%s449 + $0xa0] sm:$0xff] %v5152
        %5185 = vst [vmem:[%s449 + $0xa8] sm:$0xff] %v5153
        %5186 = vst [vmem:[%s449 + $0xb0] sm:$0xff] %v5154
        %5187 = vst [vmem:[%s449 + $0xb8] sm:$0xff] %v5155
        %5188 = vst [vmem:[%s449 + $0xc0] sm:$0xff] %v5156
        %5189 = vst [vmem:[%s449 + $0xc8] sm:$0xff] %v5157
        %5190 = vst [vmem:[%s449 + $0xd0] sm:$0xff] %v5158
        %5191 = vst [vmem:[%s449 + $0xd8] sm:$0xff] %v5159
        %5192 = vst [vmem:[%s449 + $0xe0] sm:$0xff] %v5160
        %5193 = vst [vmem:[%s449 + $0xe8] sm:$0xff] %v5161
        %5194 = vst [vmem:[%s449 + $0xf0] sm:$0xff] %v5162
        %5195 = vst [vmem:[%s449 + $0xf8] sm:$0xff] %v5163
        %s5196 = sand.u32 %s253, 1
        %s5197 = scalar_lea.sflag [#allocation7], %s5196
        %s5198 = sand.u32 %s253, 1
        %s5199 = smul.addr %s5198, 256
        %s5200 = scalar_lea.vmem [#allocation16], %s5199
        // Predicated region
        $region85: #{tpu_custom_call.1} parent=59 // pred_check
          %p5201 = pneg %p263
        $region86: #{tpu_custom_call.1} parent=59 // pred_check_branch
          %5203 = sbr.rel (%p5201) target = $region88
        $region87: #{tpu_custom_call.1} parent=59 // pred_region
          %s5205 = ssub.s32 4096, 4096
          %5206 = vsyncadd %s5197, %s5205
          %s5207 = smul.addr %s30, 32
          %s5208 = smul.addr %s5207, 128
          %s5209 = scalar_lea.hbm %s10, %s5208
          %s5210 = sshll.u32 %s5200, 4
          %s5211 = int_to_ptr.vmem [resolvable:$true] %s5210
          %5216 = dma.vmem_to_hbm [thread:$0]  %s5211, 4096, %s5209, %s5197, 128, 128, 8
        $region88: #{tpu_custom_call.1} parent=59 // pred_fallthru
          _
      $region60: #{tpu_custom_call.1} parent=5 // pred_fallthru
        _
      %p5217 = scmp.le.s32.totalorder 2, %s25
      // Predicated region
      $region89: #{tpu_custom_call.1} parent=5 // pred_check
        %p5218 = pneg %p5217
      $region90: #{tpu_custom_call.1} parent=5 // pred_check_branch
        %5220 = sbr.rel (%p5218) target = $region92
      $region91: #{tpu_custom_call.1} parent=5 // pred_region
        %s5221 = ssub.s32 %s25, 2
        // Predicated region
        $region93: #{tpu_custom_call.1} parent=91 // pred_check
          %p5222 = pneg %p269
        $region94: #{tpu_custom_call.1} parent=91 // pred_check_branch
          %5224 = sbr.rel (%p5222) target = $region96
        $region95: #{tpu_custom_call.1} parent=91 // pred_region
          %s5225 = sand.u32 %s254, 1
          %s5226 = scalar_lea.sflag [#allocation7], %s5225
          %s5227 = sand.u32 %s254, 1
          %s5228 = smul.addr %s5227, 256
          %s5229 = scalar_lea.vmem [#allocation16], %s5228
          %5230 = dma.done %s5226, 4096
        $region96: #{tpu_custom_call.1} parent=91 // pred_fallthru
          _
      $region92: #{tpu_custom_call.1} parent=5 // pred_fallthru
        _
    $region6: #{tpu_custom_call.1} parent=1 // loop_footer
      %s29 = sadd.s32 1, %s25
    $region7: #{tpu_custom_call.1} parent=1 // loop_footer_branch
      %24 = sbr.rel target = $region3
    $region8: #{tpu_custom_call.1} parent=1 // loop_exit
      _
    %5231 = vsyncpa [#allocation6], 1
    %s5232 = scalar_lea.sflag [#allocation6], 1
    %5233 = vsyncpa %s5232, 1
    %5234 = vsyncpa [#allocation10], 1
    %5235 = vsyncpa [#allocation13], 1
    %5236 = vsyncpa [#allocation7], 1
    %s5237 = scalar_lea.sflag [#allocation7], 1
    %5238 = vsyncpa %s5237, 1
    %5239 = vsyncpa [#allocation8], 1
    %s5240 = scalar_lea.sflag [#allocation8], 1
    %5241 = vsyncpa %s5240, 1

</llo_original>
